<compile_context>
chip_gen: v6e
topology: v6e:2x2x1
jax: 0.10.0
libtpu: 0.0.40
codegen_flags: <defaults>
</compile_context>

<pallas_src>
import functools

import jax
import jax.numpy as jnp
from jax.experimental import pallas as pl
from jax.experimental.pallas import tpu as pltpu

LRELU_SLOPE = 0.2
_MAX_TOH = 8   # output rows handled per grid step (static unroll bound inside the kernels)
               # TODO(synk): switch the per-row loop to lax.fori_loop for much larger tiles.


def _round_up(x, m):
    return ((x + m - 1) // m) * m


# ----------------------------- Pallas kernels ------------------------------

def _conv_row(x_ref, w_taps, t, ow):
    """Conv for one output row of the tile: 4 bf16 matmuls, f32 accumulation.

    x_ref block: (1, toh+1, OW+1, 4*Cin) space-to-depth input (+1 row / +1 col halo).
    w_taps[dh][dw]: (4*Cin, Cpad) bf16 tap matrices.  Returns (OW, Cpad) f32.
    """
    acc = None
    for dh in range(2):
        for dw in range(2):
            tap = x_ref[0, t + dh, dw:dw + ow, :]            # (OW, 4*Cin) bf16
            part = jnp.dot(tap, w_taps[dh][dw],
                           preferred_element_type=jnp.float32)
            acc = part if acc is None else acc + part
    return acc


def conv_stats_only_kernel(x_ref, w_ref, stat_ref, *, toh, ow, cpad):
    """Recompute path, pass 1: per-tile per-channel sum / sum-of-squares only."""
    w_taps = [[w_ref[dh, dw] for dw in range(2)] for dh in range(2)]
    s = jnp.zeros((1, cpad), jnp.float32)
    ss = jnp.zeros((1, cpad), jnp.float32)
    for t in range(toh):
        row = _conv_row(x_ref, w_taps, t, ow)
        s = s + jnp.sum(row, axis=0, keepdims=True)
        ss = ss + jnp.sum(row * row, axis=0, keepdims=True)
    # Direct row stores; rows 2..7 of the stat block are never read by the glue.
    stat_ref[0, 0:1, :] = s
    stat_ref[0, 1:2, :] = ss


def conv_stats_store_kernel(x_ref, w_ref, y_ref, stat_ref, *, toh, ow, cpad):
    """Store path, pass 1: conv (stored as bf16) + per-tile stats partials."""
    w_taps = [[w_ref[dh, dw] for dw in range(2)] for dh in range(2)]
    s = jnp.zeros((1, cpad), jnp.float32)
    ss = jnp.zeros((1, cpad), jnp.float32)
    for t in range(toh):
        row = _conv_row(x_ref, w_taps, t, ow)
        y_ref[0, t] = row.astype(y_ref.dtype)
        s = s + jnp.sum(row, axis=0, keepdims=True)
        ss = ss + jnp.sum(row * row, axis=0, keepdims=True)
    stat_ref[0, 0:1, :] = s
    stat_ref[0, 1:2, :] = ss


def conv_bn_lrelu_kernel(x_ref, w_ref, p_ref, o_ref, *, toh, ow):
    """Recompute path, pass 2: conv recomputed + fused BN affine + LeakyReLU (f32 math)."""
    w_taps = [[w_ref[dh, dw] for dw in range(2)] for dh in range(2)]
    scale = p_ref[0:1, :]
    shift = p_ref[1:2, :]
    for t in range(toh):
        row = _conv_row(x_ref, w_taps, t, ow)                # f32
        out = row * scale + shift
        o_ref[0, t] = jnp.where(out >= 0.0, out, LRELU_SLOPE * out).astype(o_ref.dtype)


def bn_lrelu_kernel(y_ref, p_ref, o_ref):
    """Store path, pass 2: BN affine + LeakyReLU on the bf16 intermediate (f32 math)."""
    y = y_ref[0].astype(jnp.float32)                         # (toh, OW, Cpad)
    scale = p_ref[0:1, :][None]                              # (1, 1, Cpad)
    shift = p_ref[1:2, :][None]
    out = y * scale + shift
    o_ref[0] = jnp.where(out >= 0.0, out, LRELU_SLOPE * out).astype(o_ref.dtype)


# ------------------------------- wrapper ------------------------------------

def down_block(x, w, gamma, beta, *, eps=1e-5, out_layout="NCHW", force_store=None):
    """x: [N, Cin, H, W] f32; w: [Cout, Cin, 4, 4]; gamma/beta: [Cout].  NCHW f32 out."""
    N, Cin, H, W = x.shape
    Cout, Cin_w, KH, KW = w.shape
    assert (KH, KW) == (4, 4)
    assert Cin_w == Cin
    assert H % 2 == 0 and W % 2 == 0, "k=4,s=2,p=1 DownBlock assumes even H and W"
    OH, OW = H // 2, W // 2
    M = N * OH * OW

    Cpad = _round_up(Cout, 128)   # lane-dense stores, full MXU N occupancy
    Kp = 4 * Cin                  # packed K of one space-to-depth tap
    # TODO(synk): for Cout <= 64 a transposed (Cout-on-sublanes, M-on-lanes) layout would
    # avoid the 128-lane zero-channel inflation of the intermediates / output.

    # --- glue: reflect pad -> NHWC -> space-to-depth (stride 2 folded into channels) ---
    xb = x.astype(jnp.bfloat16)
    xp = jnp.pad(xb, ((0, 0), (0, 0), (1, 1), (1, 1)), mode="reflect")   # NCHW, H+2, W+2
    xp = jnp.transpose(xp, (0, 2, 3, 1))                                 # N, H+2, W+2, Cin
    xs = xp.reshape(N, OH + 1, 2, OW + 1, 2, Cin)
    xs = jnp.transpose(xs, (0, 1, 3, 2, 4, 5)).reshape(N, OH + 1, OW + 1, Kp)

    # weight -> per-(dh,dw) tap matrices (4*Cin, Cpad), channel order (rh, rw, cin)
    w2 = jnp.transpose(w, (2, 3, 1, 0)).reshape(2, 2, 2, 2, Cin, Cout)   # dh,rh,dw,rw,ci,co
    w2 = jnp.transpose(w2, (0, 2, 1, 3, 4, 5)).reshape(2, 2, Kp, Cout)
    w2 = jnp.pad(w2, ((0, 0), (0, 0), (0, 0), (0, Cpad - Cout))).astype(jnp.bfloat16)

    # --- generation-aware VMEM budget (v7x: 64 MiB/TC, v5e/v6e: 128 MiB) ---
    try:
        vmem_cap = int(getattr(pltpu.get_tpu_info(), "vmem_capacity_bytes", 0)) or (128 << 20)
    except Exception:
        vmem_cap = 128 << 20
    vmem_limit = max(32 << 20, min((vmem_cap * 3) // 4, 96 << 20))
    budget = vmem_limit // 2       # headroom for compiler scratch / spills

    def _blk_bytes(rows, sub, lanes, itemsize):
        # VMEM footprint of one buffered block; last two dims pad to the native tile.
        return rows * _round_up(sub, 16 if itemsize == 2 else 8) * _round_up(lanes, 128) * itemsize

    def _vmem_usage(toh):
        x_blk = _blk_bytes(toh + 1, OW + 1, Kp, 2)
        w_blk = _blk_bytes(4, Kp, Cpad, 2)         # resident weight taps (counted!)
        y_blk = _blk_bytes(toh, OW, Cpad, 2)       # bf16 intermediate (store path)
        o_blk = _blk_bytes(toh, OW, Cpad, 4)       # f32 output
        st_blk = _blk_bytes(1, 8, Cpad, 4)
        p_blk = _blk_bytes(1, 8, Cpad, 4)
        k1 = x_blk + w_blk + y_blk + st_blk
        k2 = max(y_blk + p_blk + o_blk, x_blk + w_blk + p_blk + o_blk)
        return 2 * max(k1, k2)                     # double-buffered pipeline

    cands = [d for d in range(min(OH, _MAX_TOH), 0, -1) if OH % d == 0]
    fitting = [d for d in cands if _vmem_usage(d) <= budget] or [1]
    toh = fitting[0]
    if N * (OH // toh) < 2:                        # keep both v7x TensorCores busy
        for d in fitting:
            if N * (OH // d) >= 2:
                toh = d
                break
    n_rb = OH // toh
    n_tiles = N * n_rb

    # per-tile row blocks with a 1-row halo (only ~1/toh extra input-side bytes)
    xs2 = jnp.stack([xs[:, r * toh: r * toh + toh + 1] for r in range(n_rb)], axis=1)
    xs2 = xs2.reshape(n_tiles, toh + 1, OW + 1, Kp)

    cparams = pltpu.CompilerParams(
        dimension_semantics=("parallel",),
        vmem_limit_bytes=vmem_limit,
    )
    x_spec = pl.BlockSpec((1, toh + 1, OW + 1, Kp), lambda i: (i, 0, 0, 0))
    w_spec = pl.BlockSpec((2, 2, Kp, Cpad), lambda i: (0, 0, 0, 0))
    y_spec = pl.BlockSpec((1, toh, OW, Cpad), lambda i: (i, 0, 0, 0))
    st_spec = pl.BlockSpec((1, 8, Cpad), lambda i: (i, 0, 0))
    p_spec = pl.BlockSpec((8, Cpad), lambda i: (0, 0))

    K_full = Cin * KH * KW
    # Recompute the conv in pass 2 when re-reading its (small) inputs is cheaper than a
    # bf16 intermediate round-trip; otherwise store the intermediate as bf16.
    recompute = (2 * K_full < 8 * Cpad) if force_store is None else (not force_store)

    if recompute:
        stats = pl.pallas_call(
            functools.partial(conv_stats_only_kernel, toh=toh, ow=OW, cpad=Cpad),
            out_shape=jax.ShapeDtypeStruct((n_tiles, 8, Cpad), jnp.float32),
            grid_spec=pltpu.PrefetchScalarGridSpec(
                num_scalar_prefetch=0, grid=(n_tiles,),
                in_specs=[x_spec, w_spec], out_specs=st_spec),
            compiler_params=cparams,
        )(xs2, w2)
        conv_bf16 = None
    else:
        conv_bf16, stats = pl.pallas_call(
            functools.partial(conv_stats_store_kernel, toh=toh, ow=OW, cpad=Cpad),
            out_shape=(
                jax.ShapeDtypeStruct((n_tiles, toh, OW, Cpad), jnp.bfloat16),
                jax.ShapeDtypeStruct((n_tiles, 8, Cpad), jnp.float32),
            ),
            grid_spec=pltpu.PrefetchScalarGridSpec(
                num_scalar_prefetch=0, grid=(n_tiles,),
                in_specs=[x_spec, w_spec], out_specs=[y_spec, st_spec]),
            compiler_params=cparams,
        )(xs2, w2)

    # --- glue: reduce partials -> batch stats (training-mode BN, biased var), fold affine ---
    # TODO(synk): E[x^2]-E[x]^2 in f32 can cancel when |mean| >> std; per-tile
    # (count, mean, M2) partials merged Welford-style would be the robust variant.
    ch_sum = jnp.sum(stats[:, 0, :], axis=0)
    ch_sumsq = jnp.sum(stats[:, 1, :], axis=0)
    mean = ch_sum / M
    var = jnp.maximum(ch_sumsq / M - mean * mean, 0.0)
    inv_std = jax.lax.rsqrt(var + eps)
    gamma_p = jnp.pad(gamma.astype(jnp.float32), (0, Cpad - Cout))
    beta_p = jnp.pad(beta.astype(jnp.float32), (0, Cpad - Cout))
    scale = gamma_p * inv_std
    shift = beta_p - mean * scale
    params = jnp.zeros((8, Cpad), jnp.float32).at[0].set(scale).at[1].set(shift)

    out_shape = jax.ShapeDtypeStruct((n_tiles, toh, OW, Cpad), jnp.float32)
    if recompute:
        out_t = pl.pallas_call(
            functools.partial(conv_bn_lrelu_kernel, toh=toh, ow=OW),
            out_shape=out_shape,
            grid_spec=pltpu.PrefetchScalarGridSpec(
                num_scalar_prefetch=0, grid=(n_tiles,),
                in_specs=[x_spec, w_spec, p_spec], out_specs=y_spec),
            compiler_params=cparams,
        )(xs2, w2, params)
    else:
        # (input_output_aliases skipped here: the bf16 intermediate and f32 output differ in dtype)
        out_t = pl.pallas_call(
            bn_lrelu_kernel,
            out_shape=out_shape,
            grid_spec=pltpu.PrefetchScalarGridSpec(
                num_scalar_prefetch=0, grid=(n_tiles,),
                in_specs=[y_spec, p_spec], out_specs=y_spec),
            compiler_params=cparams,
        )(conv_bf16, params)

    out = out_t.reshape(N, OH, OW, Cpad)[..., :Cout]
    if out_layout == "NHWC":
        return out
    return jnp.transpose(out, (0, 3, 1, 2))


# ------------------------------ reference -----------------------------------

def reference(x, w, gamma, beta, eps=1e-5, slope=0.2, cast_bf16=False):
    xc = x.astype(jnp.bfloat16) if cast_bf16 else x
    wc = w.astype(jnp.bfloat16) if cast_bf16 else w
    xp = jnp.pad(xc, ((0, 0), (0, 0), (1, 1), (1, 1)), mode="reflect")
    y = jax.lax.conv_general_dilated(
        xp, wc, window_strides=(2, 2), padding="VALID",
        dimension_numbers=("NCHW", "OIHW", "NCHW"),
        preferred_element_type=jnp.float32)
    mean = y.mean(axis=(0, 2, 3), keepdims=True)
    var = y.var(axis=(0, 2, 3), keepdims=True)   # biased, as in BN training
    yn = (y - mean) * jax.lax.rsqrt(var + eps)
    out = yn * gamma.reshape(1, -1, 1, 1).astype(jnp.float32) \
        + beta.reshape(1, -1, 1, 1).astype(jnp.float32)
    return jnp.where(out >= 0, out, slope * out)


# --------------------------------- main --------------------------------------

if __name__ == "__main__":
    key = jax.random.PRNGKey(0)
    k_x, k_w, k_g, k_b = jax.random.split(key, 4)

    N, Cin, H, W = 2, 4, 16, 16
    Cout = 8

    x = jax.random.normal(k_x, (N, Cin, H, W), dtype=jnp.float32)
    w = jax.random.normal(k_w, (Cout, Cin, 4, 4), dtype=jnp.float32) * 0.1
    gamma = 1.0 + 0.1 * jax.random.normal(k_g, (Cout,), dtype=jnp.float32)
    beta = 0.1 * jax.random.normal(k_b, (Cout,), dtype=jnp.float32)

    f_fused = jax.jit(down_block)                                      # recompute path (small K)
    f_store = jax.jit(functools.partial(down_block, force_store=True))  # bf16-intermediate path

    out = jax.block_until_ready(f_fused(x, w, gamma, beta))
    assert out.shape == (N, Cout, H // 2, W // 2), out.shape
    assert bool(jnp.all(jnp.isfinite(out)))

    # Tight check vs a reference using the same bf16 matmul inputs (f32 accumulation).
    ref_bf16 = reference(x, w, gamma, beta, cast_bf16=True)
    err = float(jnp.max(jnp.abs(out - ref_bf16)))
    assert err < 2e-3, err

    # Loose check vs the pure-f32 PyTorch-equivalent math (bf16 cast error only).
    ref_f32 = reference(x, w, gamma, beta, cast_bf16=False)
    err32 = float(jnp.max(jnp.abs(out - ref_f32)))
    assert err32 < 1e-1, err32

    # Also exercise the bf16-intermediate (store) path used for large-Cin layers.
    out_s = jax.block_until_ready(f_store(x, w, gamma, beta))
    assert bool(jnp.all(jnp.isfinite(out_s)))
    err_s = float(jnp.max(jnp.abs(out_s - out)))
    assert err_s < 2e-2, err_s

    print("KERNEL_OK")
</pallas_src>

<mosaic_0001>
module attributes {stable_mosaic.version = 11 : i64} {
  func.func @conv_stats_only_kernel(%arg0: i32, %arg1: memref<1x9x9x16xbf16, #tpu.memory_space<vmem>>, %arg2: memref<2x2x16x128xbf16, #tpu.memory_space<vmem>>, %arg3: memref<1x8x128xf32, #tpu.memory_space<vmem>>) attributes {dimension_semantics = [#tpu.dimension_semantics<parallel>], iteration_bounds = array<i64: 2>, scalar_prefetch = 0 : i64, scratch_operands = 0 : i64, tpu.core_type = #tpu.core_type<tc>, window_params = [{transform_indices = @transform_0, window_bounds = array<i64: 1, 9, 9, 16>}, {pipeline_mode = #tpu.pipeline_mode<synchronous>, transform_indices = @transform_1, window_bounds = array<i64: 2, 2, 16, 128>}, {transform_indices = @transform_2, window_bounds = array<i64: 1, 8, 128>}]} {
    %c0 = arith.constant 0 : index
    %c0_0 = arith.constant 0 : index
    %c0_1 = arith.constant 0 : index
    %c0_2 = arith.constant 0 : index
    %0 = vector.load %arg2[%c0, %c0_0, %c0_1, %c0_2] : memref<2x2x16x128xbf16, #tpu.memory_space<vmem>>, vector<1x1x16x128xbf16>
    %1 = vector.shape_cast %0 : vector<1x1x16x128xbf16> to vector<16x128xbf16>
    %c0_3 = arith.constant 0 : index
    %c1 = arith.constant 1 : index
    %c0_4 = arith.constant 0 : index
    %c0_5 = arith.constant 0 : index
    %2 = vector.load %arg2[%c0_3, %c1, %c0_4, %c0_5] : memref<2x2x16x128xbf16, #tpu.memory_space<vmem>>, vector<1x1x16x128xbf16>
    %3 = vector.shape_cast %2 : vector<1x1x16x128xbf16> to vector<16x128xbf16>
    %c1_6 = arith.constant 1 : index
    %c0_7 = arith.constant 0 : index
    %c0_8 = arith.constant 0 : index
    %c0_9 = arith.constant 0 : index
    %4 = vector.load %arg2[%c1_6, %c0_7, %c0_8, %c0_9] : memref<2x2x16x128xbf16, #tpu.memory_space<vmem>>, vector<1x1x16x128xbf16>
    %5 = vector.shape_cast %4 : vector<1x1x16x128xbf16> to vector<16x128xbf16>
    %c1_10 = arith.constant 1 : index
    %c1_11 = arith.constant 1 : index
    %c0_12 = arith.constant 0 : index
    %c0_13 = arith.constant 0 : index
    %6 = vector.load %arg2[%c1_10, %c1_11, %c0_12, %c0_13] : memref<2x2x16x128xbf16, #tpu.memory_space<vmem>>, vector<1x1x16x128xbf16>
    %7 = vector.shape_cast %6 : vector<1x1x16x128xbf16> to vector<16x128xbf16>
    %cst = arith.constant 0.000000e+00 : f32
    %8 = vector.broadcast %cst : f32 to vector<1x128xf32>
    %cst_14 = arith.constant 0.000000e+00 : f32
    %9 = vector.broadcast %cst_14 : f32 to vector<1x128xf32>
    %c0_15 = arith.constant 0 : index
    %c0_16 = arith.constant 0 : index
    %c0_17 = arith.constant 0 : index
    %c0_18 = arith.constant 0 : index
    %10 = vector.load %arg1[%c0_15, %c0_16, %c0_17, %c0_18] : memref<1x9x9x16xbf16, #tpu.memory_space<vmem>>, vector<1x1x8x16xbf16>
    %11 = vector.shape_cast %10 : vector<1x1x8x16xbf16> to vector<8x16xbf16>
    %cst_19 = arith.constant dense<0.000000e+00> : vector<8x128xf32>
    %12 = tpu.matmul %11, %1, %cst_19 {dimension_numbers = #tpu.dot_dimension_numbers<[1], [0], [0], [1], [0, 0, 1, 1], [], []>} : vector<8x16xbf16>, vector<16x128xbf16>, vector<8x128xf32> -> vector<8x128xf32>
    %c0_20 = arith.constant 0 : index
    %c0_21 = arith.constant 0 : index
    %c1_22 = arith.constant 1 : index
    %c0_23 = arith.constant 0 : index
    %13 = vector.load %arg1[%c0_20, %c0_21, %c1_22, %c0_23] : memref<1x9x9x16xbf16, #tpu.memory_space<vmem>>, vector<1x1x8x16xbf16>
    %14 = vector.shape_cast %13 : vector<1x1x8x16xbf16> to vector<8x16xbf16>
    %cst_24 = arith.constant dense<0.000000e+00> : vector<8x128xf32>
    %15 = tpu.matmul %14, %3, %cst_24 {dimension_numbers = #tpu.dot_dimension_numbers<[1], [0], [0], [1], [0, 0, 1, 1], [], []>} : vector<8x16xbf16>, vector<16x128xbf16>, vector<8x128xf32> -> vector<8x128xf32>
    %16 = arith.addf %12, %15 : vector<8x128xf32>
    %c0_25 = arith.constant 0 : index
    %c1_26 = arith.constant 1 : index
    %c0_27 = arith.constant 0 : index
    %c0_28 = arith.constant 0 : index
    %17 = vector.load %arg1[%c0_25, %c1_26, %c0_27, %c0_28] : memref<1x9x9x16xbf16, #tpu.memory_space<vmem>>, vector<1x1x8x16xbf16>
    %18 = vector.shape_cast %17 : vector<1x1x8x16xbf16> to vector<8x16xbf16>
    %cst_29 = arith.constant dense<0.000000e+00> : vector<8x128xf32>
    %19 = tpu.matmul %18, %5, %cst_29 {dimension_numbers = #tpu.dot_dimension_numbers<[1], [0], [0], [1], [0, 0, 1, 1], [], []>} : vector<8x16xbf16>, vector<16x128xbf16>, vector<8x128xf32> -> vector<8x128xf32>
    %20 = arith.addf %16, %19 : vector<8x128xf32>
    %c0_30 = arith.constant 0 : index
    %c1_31 = arith.constant 1 : index
    %c1_32 = arith.constant 1 : index
    %c0_33 = arith.constant 0 : index
    %21 = vector.load %arg1[%c0_30, %c1_31, %c1_32, %c0_33] : memref<1x9x9x16xbf16, #tpu.memory_space<vmem>>, vector<1x1x8x16xbf16>
    %22 = vector.shape_cast %21 : vector<1x1x8x16xbf16> to vector<8x16xbf16>
    %cst_34 = arith.constant dense<0.000000e+00> : vector<8x128xf32>
    %23 = tpu.matmul %22, %7, %cst_34 {dimension_numbers = #tpu.dot_dimension_numbers<[1], [0], [0], [1], [0, 0, 1, 1], [], []>} : vector<8x16xbf16>, vector<16x128xbf16>, vector<8x128xf32> -> vector<8x128xf32>
    %24 = arith.addf %20, %23 : vector<8x128xf32>
    %cst_35 = arith.constant dense<0.000000e+00> : vector<128xf32>
    %25 = vector.multi_reduction <add>, %24, %cst_35 [0] : vector<8x128xf32> to vector<128xf32>
    %26 = vector.shape_cast %25 : vector<128xf32> to vector<1x128xf32>
    %27 = arith.addf %8, %26 : vector<1x128xf32>
    %28 = arith.mulf %24, %24 : vector<8x128xf32>
    %cst_36 = arith.constant dense<0.000000e+00> : vector<128xf32>
    %29 = vector.multi_reduction <add>, %28, %cst_36 [0] : vector<8x128xf32> to vector<128xf32>
    %30 = vector.shape_cast %29 : vector<128xf32> to vector<1x128xf32>
    %31 = arith.addf %9, %30 : vector<1x128xf32>
    %c0_37 = arith.constant 0 : index
    %c1_38 = arith.constant 1 : index
    %c0_39 = arith.constant 0 : index
    %c0_40 = arith.constant 0 : index
    %32 = vector.load %arg1[%c0_37, %c1_38, %c0_39, %c0_40] : memref<1x9x9x16xbf16, #tpu.memory_space<vmem>>, vector<1x1x8x16xbf16>
    %33 = vector.shape_cast %32 : vector<1x1x8x16xbf16> to vector<8x16xbf16>
    %cst_41 = arith.constant dense<0.000000e+00> : vector<8x128xf32>
    %34 = tpu.matmul %33, %1, %cst_41 {dimension_numbers = #tpu.dot_dimension_numbers<[1], [0], [0], [1], [0, 0, 1, 1], [], []>} : vector<8x16xbf16>, vector<16x128xbf16>, vector<8x128xf32> -> vector<8x128xf32>
    %c0_42 = arith.constant 0 : index
    %c1_43 = arith.constant 1 : index
    %c1_44 = arith.constant 1 : index
    %c0_45 = arith.constant 0 : index
    %35 = vector.load %arg1[%c0_42, %c1_43, %c1_44, %c0_45] : memref<1x9x9x16xbf16, #tpu.memory_space<vmem>>, vector<1x1x8x16xbf16>
    %36 = vector.shape_cast %35 : vector<1x1x8x16xbf16> to vector<8x16xbf16>
    %cst_46 = arith.constant dense<0.000000e+00> : vector<8x128xf32>
    %37 = tpu.matmul %36, %3, %cst_46 {dimension_numbers = #tpu.dot_dimension_numbers<[1], [0], [0], [1], [0, 0, 1, 1], [], []>} : vector<8x16xbf16>, vector<16x128xbf16>, vector<8x128xf32> -> vector<8x128xf32>
    %38 = arith.addf %34, %37 : vector<8x128xf32>
    %c0_47 = arith.constant 0 : index
    %c2 = arith.constant 2 : index
    %c0_48 = arith.constant 0 : index
    %c0_49 = arith.constant 0 : index
    %39 = vector.load %arg1[%c0_47, %c2, %c0_48, %c0_49] : memref<1x9x9x16xbf16, #tpu.memory_space<vmem>>, vector<1x1x8x16xbf16>
    %40 = vector.shape_cast %39 : vector<1x1x8x16xbf16> to vector<8x16xbf16>
    %cst_50 = arith.constant dense<0.000000e+00> : vector<8x128xf32>
    %41 = tpu.matmul %40, %5, %cst_50 {dimension_numbers = #tpu.dot_dimension_numbers<[1], [0], [0], [1], [0, 0, 1, 1], [], []>} : vector<8x16xbf16>, vector<16x128xbf16>, vector<8x128xf32> -> vector<8x128xf32>
    %42 = arith.addf %38, %41 : vector<8x128xf32>
    %c0_51 = arith.constant 0 : index
    %c2_52 = arith.constant 2 : index
    %c1_53 = arith.constant 1 : index
    %c0_54 = arith.constant 0 : index
    %43 = vector.load %arg1[%c0_51, %c2_52, %c1_53, %c0_54] : memref<1x9x9x16xbf16, #tpu.memory_space<vmem>>, vector<1x1x8x16xbf16>
    %44 = vector.shape_cast %43 : vector<1x1x8x16xbf16> to vector<8x16xbf16>
    %cst_55 = arith.constant dense<0.000000e+00> : vector<8x128xf32>
    %45 = tpu.matmul %44, %7, %cst_55 {dimension_numbers = #tpu.dot_dimension_numbers<[1], [0], [0], [1], [0, 0, 1, 1], [], []>} : vector<8x16xbf16>, vector<16x128xbf16>, vector<8x128xf32> -> vector<8x128xf32>
    %46 = arith.addf %42, %45 : vector<8x128xf32>
    %cst_56 = arith.constant dense<0.000000e+00> : vector<128xf32>
    %47 = vector.multi_reduction <add>, %46, %cst_56 [0] : vector<8x128xf32> to vector<128xf32>
    %48 = vector.shape_cast %47 : vector<128xf32> to vector<1x128xf32>
    %49 = arith.addf %27, %48 : vector<1x128xf32>
    %50 = arith.mulf %46, %46 : vector<8x128xf32>
    %cst_57 = arith.constant dense<0.000000e+00> : vector<128xf32>
    %51 = vector.multi_reduction <add>, %50, %cst_57 [0] : vector<8x128xf32> to vector<128xf32>
    %52 = vector.shape_cast %51 : vector<128xf32> to vector<1x128xf32>
    %53 = arith.addf %31, %52 : vector<1x128xf32>
    %c0_58 = arith.constant 0 : index
    %c2_59 = arith.constant 2 : index
    %c0_60 = arith.constant 0 : index
    %c0_61 = arith.constant 0 : index
    %54 = vector.load %arg1[%c0_58, %c2_59, %c0_60, %c0_61] : memref<1x9x9x16xbf16, #tpu.memory_space<vmem>>, vector<1x1x8x16xbf16>
    %55 = vector.shape_cast %54 : vector<1x1x8x16xbf16> to vector<8x16xbf16>
    %cst_62 = arith.constant dense<0.000000e+00> : vector<8x128xf32>
    %56 = tpu.matmul %55, %1, %cst_62 {dimension_numbers = #tpu.dot_dimension_numbers<[1], [0], [0], [1], [0, 0, 1, 1], [], []>} : vector<8x16xbf16>, vector<16x128xbf16>, vector<8x128xf32> -> vector<8x128xf32>
    %c0_63 = arith.constant 0 : index
    %c2_64 = arith.constant 2 : index
    %c1_65 = arith.constant 1 : index
    %c0_66 = arith.constant 0 : index
    %57 = vector.load %arg1[%c0_63, %c2_64, %c1_65, %c0_66] : memref<1x9x9x16xbf16, #tpu.memory_space<vmem>>, vector<1x1x8x16xbf16>
    %58 = vector.shape_cast %57 : vector<1x1x8x16xbf16> to vector<8x16xbf16>
    %cst_67 = arith.constant dense<0.000000e+00> : vector<8x128xf32>
    %59 = tpu.matmul %58, %3, %cst_67 {dimension_numbers = #tpu.dot_dimension_numbers<[1], [0], [0], [1], [0, 0, 1, 1], [], []>} : vector<8x16xbf16>, vector<16x128xbf16>, vector<8x128xf32> -> vector<8x128xf32>
    %60 = arith.addf %56, %59 : vector<8x128xf32>
    %c0_68 = arith.constant 0 : index
    %c3 = arith.constant 3 : index
    %c0_69 = arith.constant 0 : index
    %c0_70 = arith.constant 0 : index
    %61 = vector.load %arg1[%c0_68, %c3, %c0_69, %c0_70] : memref<1x9x9x16xbf16, #tpu.memory_space<vmem>>, vector<1x1x8x16xbf16>
    %62 = vector.shape_cast %61 : vector<1x1x8x16xbf16> to vector<8x16xbf16>
    %cst_71 = arith.constant dense<0.000000e+00> : vector<8x128xf32>
    %63 = tpu.matmul %62, %5, %cst_71 {dimension_numbers = #tpu.dot_dimension_numbers<[1], [0], [0], [1], [0, 0, 1, 1], [], []>} : vector<8x16xbf16>, vector<16x128xbf16>, vector<8x128xf32> -> vector<8x128xf32>
    %64 = arith.addf %60, %63 : vector<8x128xf32>
    %c0_72 = arith.constant 0 : index
    %c3_73 = arith.constant 3 : index
    %c1_74 = arith.constant 1 : index
    %c0_75 = arith.constant 0 : index
    %65 = vector.load %arg1[%c0_72, %c3_73, %c1_74, %c0_75] : memref<1x9x9x16xbf16, #tpu.memory_space<vmem>>, vector<1x1x8x16xbf16>
    %66 = vector.shape_cast %65 : vector<1x1x8x16xbf16> to vector<8x16xbf16>
    %cst_76 = arith.constant dense<0.000000e+00> : vector<8x128xf32>
    %67 = tpu.matmul %66, %7, %cst_76 {dimension_numbers = #tpu.dot_dimension_numbers<[1], [0], [0], [1], [0, 0, 1, 1], [], []>} : vector<8x16xbf16>, vector<16x128xbf16>, vector<8x128xf32> -> vector<8x128xf32>
    %68 = arith.addf %64, %67 : vector<8x128xf32>
    %cst_77 = arith.constant dense<0.000000e+00> : vector<128xf32>
    %69 = vector.multi_reduction <add>, %68, %cst_77 [0] : vector<8x128xf32> to vector<128xf32>
    %70 = vector.shape_cast %69 : vector<128xf32> to vector<1x128xf32>
    %71 = arith.addf %49, %70 : vector<1x128xf32>
    %72 = arith.mulf %68, %68 : vector<8x128xf32>
    %cst_78 = arith.constant dense<0.000000e+00> : vector<128xf32>
    %73 = vector.multi_reduction <add>, %72, %cst_78 [0] : vector<8x128xf32> to vector<128xf32>
    %74 = vector.shape_cast %73 : vector<128xf32> to vector<1x128xf32>
    %75 = arith.addf %53, %74 : vector<1x128xf32>
    %c0_79 = arith.constant 0 : index
    %c3_80 = arith.constant 3 : index
    %c0_81 = arith.constant 0 : index
    %c0_82 = arith.constant 0 : index
    %76 = vector.load %arg1[%c0_79, %c3_80, %c0_81, %c0_82] : memref<1x9x9x16xbf16, #tpu.memory_space<vmem>>, vector<1x1x8x16xbf16>
    %77 = vector.shape_cast %76 : vector<1x1x8x16xbf16> to vector<8x16xbf16>
    %cst_83 = arith.constant dense<0.000000e+00> : vector<8x128xf32>
    %78 = tpu.matmul %77, %1, %cst_83 {dimension_numbers = #tpu.dot_dimension_numbers<[1], [0], [0], [1], [0, 0, 1, 1], [], []>} : vector<8x16xbf16>, vector<16x128xbf16>, vector<8x128xf32> -> vector<8x128xf32>
    %c0_84 = arith.constant 0 : index
    %c3_85 = arith.constant 3 : index
    %c1_86 = arith.constant 1 : index
    %c0_87 = arith.constant 0 : index
    %79 = vector.load %arg1[%c0_84, %c3_85, %c1_86, %c0_87] : memref<1x9x9x16xbf16, #tpu.memory_space<vmem>>, vector<1x1x8x16xbf16>
    %80 = vector.shape_cast %79 : vector<1x1x8x16xbf16> to vector<8x16xbf16>
    %cst_88 = arith.constant dense<0.000000e+00> : vector<8x128xf32>
    %81 = tpu.matmul %80, %3, %cst_88 {dimension_numbers = #tpu.dot_dimension_numbers<[1], [0], [0], [1], [0, 0, 1, 1], [], []>} : vector<8x16xbf16>, vector<16x128xbf16>, vector<8x128xf32> -> vector<8x128xf32>
    %82 = arith.addf %78, %81 : vector<8x128xf32>
    %c0_89 = arith.constant 0 : index
    %c4 = arith.constant 4 : index
    %c0_90 = arith.constant 0 : index
    %c0_91 = arith.constant 0 : index
    %83 = vector.load %arg1[%c0_89, %c4, %c0_90, %c0_91] : memref<1x9x9x16xbf16, #tpu.memory_space<vmem>>, vector<1x1x8x16xbf16>
    %84 = vector.shape_cast %83 : vector<1x1x8x16xbf16> to vector<8x16xbf16>
    %cst_92 = arith.constant dense<0.000000e+00> : vector<8x128xf32>
    %85 = tpu.matmul %84, %5, %cst_92 {dimension_numbers = #tpu.dot_dimension_numbers<[1], [0], [0], [1], [0, 0, 1, 1], [], []>} : vector<8x16xbf16>, vector<16x128xbf16>, vector<8x128xf32> -> vector<8x128xf32>
    %86 = arith.addf %82, %85 : vector<8x128xf32>
    %c0_93 = arith.constant 0 : index
    %c4_94 = arith.constant 4 : index
    %c1_95 = arith.constant 1 : index
    %c0_96 = arith.constant 0 : index
    %87 = vector.load %arg1[%c0_93, %c4_94, %c1_95, %c0_96] : memref<1x9x9x16xbf16, #tpu.memory_space<vmem>>, vector<1x1x8x16xbf16>
    %88 = vector.shape_cast %87 : vector<1x1x8x16xbf16> to vector<8x16xbf16>
    %cst_97 = arith.constant dense<0.000000e+00> : vector<8x128xf32>
    %89 = tpu.matmul %88, %7, %cst_97 {dimension_numbers = #tpu.dot_dimension_numbers<[1], [0], [0], [1], [0, 0, 1, 1], [], []>} : vector<8x16xbf16>, vector<16x128xbf16>, vector<8x128xf32> -> vector<8x128xf32>
    %90 = arith.addf %86, %89 : vector<8x128xf32>
    %cst_98 = arith.constant dense<0.000000e+00> : vector<128xf32>
    %91 = vector.multi_reduction <add>, %90, %cst_98 [0] : vector<8x128xf32> to vector<128xf32>
    %92 = vector.shape_cast %91 : vector<128xf32> to vector<1x128xf32>
    %93 = arith.addf %71, %92 : vector<1x128xf32>
    %94 = arith.mulf %90, %90 : vector<8x128xf32>
    %cst_99 = arith.constant dense<0.000000e+00> : vector<128xf32>
    %95 = vector.multi_reduction <add>, %94, %cst_99 [0] : vector<8x128xf32> to vector<128xf32>
    %96 = vector.shape_cast %95 : vector<128xf32> to vector<1x128xf32>
    %97 = arith.addf %75, %96 : vector<1x128xf32>
    %c0_100 = arith.constant 0 : index
    %c4_101 = arith.constant 4 : index
    %c0_102 = arith.constant 0 : index
    %c0_103 = arith.constant 0 : index
    %98 = vector.load %arg1[%c0_100, %c4_101, %c0_102, %c0_103] : memref<1x9x9x16xbf16, #tpu.memory_space<vmem>>, vector<1x1x8x16xbf16>
    %99 = vector.shape_cast %98 : vector<1x1x8x16xbf16> to vector<8x16xbf16>
    %cst_104 = arith.constant dense<0.000000e+00> : vector<8x128xf32>
    %100 = tpu.matmul %99, %1, %cst_104 {dimension_numbers = #tpu.dot_dimension_numbers<[1], [0], [0], [1], [0, 0, 1, 1], [], []>} : vector<8x16xbf16>, vector<16x128xbf16>, vector<8x128xf32> -> vector<8x128xf32>
    %c0_105 = arith.constant 0 : index
    %c4_106 = arith.constant 4 : index
    %c1_107 = arith.constant 1 : index
    %c0_108 = arith.constant 0 : index
    %101 = vector.load %arg1[%c0_105, %c4_106, %c1_107, %c0_108] : memref<1x9x9x16xbf16, #tpu.memory_space<vmem>>, vector<1x1x8x16xbf16>
    %102 = vector.shape_cast %101 : vector<1x1x8x16xbf16> to vector<8x16xbf16>
    %cst_109 = arith.constant dense<0.000000e+00> : vector<8x128xf32>
    %103 = tpu.matmul %102, %3, %cst_109 {dimension_numbers = #tpu.dot_dimension_numbers<[1], [0], [0], [1], [0, 0, 1, 1], [], []>} : vector<8x16xbf16>, vector<16x128xbf16>, vector<8x128xf32> -> vector<8x128xf32>
    %104 = arith.addf %100, %103 : vector<8x128xf32>
    %c0_110 = arith.constant 0 : index
    %c5 = arith.constant 5 : index
    %c0_111 = arith.constant 0 : index
    %c0_112 = arith.constant 0 : index
    %105 = vector.load %arg1[%c0_110, %c5, %c0_111, %c0_112] : memref<1x9x9x16xbf16, #tpu.memory_space<vmem>>, vector<1x1x8x16xbf16>
    %106 = vector.shape_cast %105 : vector<1x1x8x16xbf16> to vector<8x16xbf16>
    %cst_113 = arith.constant dense<0.000000e+00> : vector<8x128xf32>
    %107 = tpu.matmul %106, %5, %cst_113 {dimension_numbers = #tpu.dot_dimension_numbers<[1], [0], [0], [1], [0, 0, 1, 1], [], []>} : vector<8x16xbf16>, vector<16x128xbf16>, vector<8x128xf32> -> vector<8x128xf32>
    %108 = arith.addf %104, %107 : vector<8x128xf32>
    %c0_114 = arith.constant 0 : index
    %c5_115 = arith.constant 5 : index
    %c1_116 = arith.constant 1 : index
    %c0_117 = arith.constant 0 : index
    %109 = vector.load %arg1[%c0_114, %c5_115, %c1_116, %c0_117] : memref<1x9x9x16xbf16, #tpu.memory_space<vmem>>, vector<1x1x8x16xbf16>
    %110 = vector.shape_cast %109 : vector<1x1x8x16xbf16> to vector<8x16xbf16>
    %cst_118 = arith.constant dense<0.000000e+00> : vector<8x128xf32>
    %111 = tpu.matmul %110, %7, %cst_118 {dimension_numbers = #tpu.dot_dimension_numbers<[1], [0], [0], [1], [0, 0, 1, 1], [], []>} : vector<8x16xbf16>, vector<16x128xbf16>, vector<8x128xf32> -> vector<8x128xf32>
    %112 = arith.addf %108, %111 : vector<8x128xf32>
    %cst_119 = arith.constant dense<0.000000e+00> : vector<128xf32>
    %113 = vector.multi_reduction <add>, %112, %cst_119 [0] : vector<8x128xf32> to vector<128xf32>
    %114 = vector.shape_cast %113 : vector<128xf32> to vector<1x128xf32>
    %115 = arith.addf %93, %114 : vector<1x128xf32>
    %116 = arith.mulf %112, %112 : vector<8x128xf32>
    %cst_120 = arith.constant dense<0.000000e+00> : vector<128xf32>
    %117 = vector.multi_reduction <add>, %116, %cst_120 [0] : vector<8x128xf32> to vector<128xf32>
    %118 = vector.shape_cast %117 : vector<128xf32> to vector<1x128xf32>
    %119 = arith.addf %97, %118 : vector<1x128xf32>
    %c0_121 = arith.constant 0 : index
    %c5_122 = arith.constant 5 : index
    %c0_123 = arith.constant 0 : index
    %c0_124 = arith.constant 0 : index
    %120 = vector.load %arg1[%c0_121, %c5_122, %c0_123, %c0_124] : memref<1x9x9x16xbf16, #tpu.memory_space<vmem>>, vector<1x1x8x16xbf16>
    %121 = vector.shape_cast %120 : vector<1x1x8x16xbf16> to vector<8x16xbf16>
    %cst_125 = arith.constant dense<0.000000e+00> : vector<8x128xf32>
    %122 = tpu.matmul %121, %1, %cst_125 {dimension_numbers = #tpu.dot_dimension_numbers<[1], [0], [0], [1], [0, 0, 1, 1], [], []>} : vector<8x16xbf16>, vector<16x128xbf16>, vector<8x128xf32> -> vector<8x128xf32>
    %c0_126 = arith.constant 0 : index
    %c5_127 = arith.constant 5 : index
    %c1_128 = arith.constant 1 : index
    %c0_129 = arith.constant 0 : index
    %123 = vector.load %arg1[%c0_126, %c5_127, %c1_128, %c0_129] : memref<1x9x9x16xbf16, #tpu.memory_space<vmem>>, vector<1x1x8x16xbf16>
    %124 = vector.shape_cast %123 : vector<1x1x8x16xbf16> to vector<8x16xbf16>
    %cst_130 = arith.constant dense<0.000000e+00> : vector<8x128xf32>
    %125 = tpu.matmul %124, %3, %cst_130 {dimension_numbers = #tpu.dot_dimension_numbers<[1], [0], [0], [1], [0, 0, 1, 1], [], []>} : vector<8x16xbf16>, vector<16x128xbf16>, vector<8x128xf32> -> vector<8x128xf32>
    %126 = arith.addf %122, %125 : vector<8x128xf32>
    %c0_131 = arith.constant 0 : index
    %c6 = arith.constant 6 : index
    %c0_132 = arith.constant 0 : index
    %c0_133 = arith.constant 0 : index
    %127 = vector.load %arg1[%c0_131, %c6, %c0_132, %c0_133] : memref<1x9x9x16xbf16, #tpu.memory_space<vmem>>, vector<1x1x8x16xbf16>
    %128 = vector.shape_cast %127 : vector<1x1x8x16xbf16> to vector<8x16xbf16>
    %cst_134 = arith.constant dense<0.000000e+00> : vector<8x128xf32>
    %129 = tpu.matmul %128, %5, %cst_134 {dimension_numbers = #tpu.dot_dimension_numbers<[1], [0], [0], [1], [0, 0, 1, 1], [], []>} : vector<8x16xbf16>, vector<16x128xbf16>, vector<8x128xf32> -> vector<8x128xf32>
    %130 = arith.addf %126, %129 : vector<8x128xf32>
    %c0_135 = arith.constant 0 : index
    %c6_136 = arith.constant 6 : index
    %c1_137 = arith.constant 1 : index
    %c0_138 = arith.constant 0 : index
    %131 = vector.load %arg1[%c0_135, %c6_136, %c1_137, %c0_138] : memref<1x9x9x16xbf16, #tpu.memory_space<vmem>>, vector<1x1x8x16xbf16>
    %132 = vector.shape_cast %131 : vector<1x1x8x16xbf16> to vector<8x16xbf16>
    %cst_139 = arith.constant dense<0.000000e+00> : vector<8x128xf32>
    %133 = tpu.matmul %132, %7, %cst_139 {dimension_numbers = #tpu.dot_dimension_numbers<[1], [0], [0], [1], [0, 0, 1, 1], [], []>} : vector<8x16xbf16>, vector<16x128xbf16>, vector<8x128xf32> -> vector<8x128xf32>
    %134 = arith.addf %130, %133 : vector<8x128xf32>
    %cst_140 = arith.constant dense<0.000000e+00> : vector<128xf32>
    %135 = vector.multi_reduction <add>, %134, %cst_140 [0] : vector<8x128xf32> to vector<128xf32>
    %136 = vector.shape_cast %135 : vector<128xf32> to vector<1x128xf32>
    %137 = arith.addf %115, %136 : vector<1x128xf32>
    %138 = arith.mulf %134, %134 : vector<8x128xf32>
    %cst_141 = arith.constant dense<0.000000e+00> : vector<128xf32>
    %139 = vector.multi_reduction <add>, %138, %cst_141 [0] : vector<8x128xf32> to vector<128xf32>
    %140 = vector.shape_cast %139 : vector<128xf32> to vector<1x128xf32>
    %141 = arith.addf %119, %140 : vector<1x128xf32>
    %c0_142 = arith.constant 0 : index
    %c6_143 = arith.constant 6 : index
    %c0_144 = arith.constant 0 : index
    %c0_145 = arith.constant 0 : index
    %142 = vector.load %arg1[%c0_142, %c6_143, %c0_144, %c0_145] : memref<1x9x9x16xbf16, #tpu.memory_space<vmem>>, vector<1x1x8x16xbf16>
    %143 = vector.shape_cast %142 : vector<1x1x8x16xbf16> to vector<8x16xbf16>
    %cst_146 = arith.constant dense<0.000000e+00> : vector<8x128xf32>
    %144 = tpu.matmul %143, %1, %cst_146 {dimension_numbers = #tpu.dot_dimension_numbers<[1], [0], [0], [1], [0, 0, 1, 1], [], []>} : vector<8x16xbf16>, vector<16x128xbf16>, vector<8x128xf32> -> vector<8x128xf32>
    %c0_147 = arith.constant 0 : index
    %c6_148 = arith.constant 6 : index
    %c1_149 = arith.constant 1 : index
    %c0_150 = arith.constant 0 : index
    %145 = vector.load %arg1[%c0_147, %c6_148, %c1_149, %c0_150] : memref<1x9x9x16xbf16, #tpu.memory_space<vmem>>, vector<1x1x8x16xbf16>
    %146 = vector.shape_cast %145 : vector<1x1x8x16xbf16> to vector<8x16xbf16>
    %cst_151 = arith.constant dense<0.000000e+00> : vector<8x128xf32>
    %147 = tpu.matmul %146, %3, %cst_151 {dimension_numbers = #tpu.dot_dimension_numbers<[1], [0], [0], [1], [0, 0, 1, 1], [], []>} : vector<8x16xbf16>, vector<16x128xbf16>, vector<8x128xf32> -> vector<8x128xf32>
    %148 = arith.addf %144, %147 : vector<8x128xf32>
    %c0_152 = arith.constant 0 : index
    %c7 = arith.constant 7 : index
    %c0_153 = arith.constant 0 : index
    %c0_154 = arith.constant 0 : index
    %149 = vector.load %arg1[%c0_152, %c7, %c0_153, %c0_154] : memref<1x9x9x16xbf16, #tpu.memory_space<vmem>>, vector<1x1x8x16xbf16>
    %150 = vector.shape_cast %149 : vector<1x1x8x16xbf16> to vector<8x16xbf16>
    %cst_155 = arith.constant dense<0.000000e+00> : vector<8x128xf32>
    %151 = tpu.matmul %150, %5, %cst_155 {dimension_numbers = #tpu.dot_dimension_numbers<[1], [0], [0], [1], [0, 0, 1, 1], [], []>} : vector<8x16xbf16>, vector<16x128xbf16>, vector<8x128xf32> -> vector<8x128xf32>
    %152 = arith.addf %148, %151 : vector<8x128xf32>
    %c0_156 = arith.constant 0 : index
    %c7_157 = arith.constant 7 : index
    %c1_158 = arith.constant 1 : index
    %c0_159 = arith.constant 0 : index
    %153 = vector.load %arg1[%c0_156, %c7_157, %c1_158, %c0_159] : memref<1x9x9x16xbf16, #tpu.memory_space<vmem>>, vector<1x1x8x16xbf16>
    %154 = vector.shape_cast %153 : vector<1x1x8x16xbf16> to vector<8x16xbf16>
    %cst_160 = arith.constant dense<0.000000e+00> : vector<8x128xf32>
    %155 = tpu.matmul %154, %7, %cst_160 {dimension_numbers = #tpu.dot_dimension_numbers<[1], [0], [0], [1], [0, 0, 1, 1], [], []>} : vector<8x16xbf16>, vector<16x128xbf16>, vector<8x128xf32> -> vector<8x128xf32>
    %156 = arith.addf %152, %155 : vector<8x128xf32>
    %cst_161 = arith.constant dense<0.000000e+00> : vector<128xf32>
    %157 = vector.multi_reduction <add>, %156, %cst_161 [0] : vector<8x128xf32> to vector<128xf32>
    %158 = vector.shape_cast %157 : vector<128xf32> to vector<1x128xf32>
    %159 = arith.addf %137, %158 : vector<1x128xf32>
    %160 = arith.mulf %156, %156 : vector<8x128xf32>
    %cst_162 = arith.constant dense<0.000000e+00> : vector<128xf32>
    %161 = vector.multi_reduction <add>, %160, %cst_162 [0] : vector<8x128xf32> to vector<128xf32>
    %162 = vector.shape_cast %161 : vector<128xf32> to vector<1x128xf32>
    %163 = arith.addf %141, %162 : vector<1x128xf32>
    %c0_163 = arith.constant 0 : index
    %c7_164 = arith.constant 7 : index
    %c0_165 = arith.constant 0 : index
    %c0_166 = arith.constant 0 : index
    %164 = vector.load %arg1[%c0_163, %c7_164, %c0_165, %c0_166] : memref<1x9x9x16xbf16, #tpu.memory_space<vmem>>, vector<1x1x8x16xbf16>
    %165 = vector.shape_cast %164 : vector<1x1x8x16xbf16> to vector<8x16xbf16>
    %cst_167 = arith.constant dense<0.000000e+00> : vector<8x128xf32>
    %166 = tpu.matmul %165, %1, %cst_167 {dimension_numbers = #tpu.dot_dimension_numbers<[1], [0], [0], [1], [0, 0, 1, 1], [], []>} : vector<8x16xbf16>, vector<16x128xbf16>, vector<8x128xf32> -> vector<8x128xf32>
    %c0_168 = arith.constant 0 : index
    %c7_169 = arith.constant 7 : index
    %c1_170 = arith.constant 1 : index
    %c0_171 = arith.constant 0 : index
    %167 = vector.load %arg1[%c0_168, %c7_169, %c1_170, %c0_171] : memref<1x9x9x16xbf16, #tpu.memory_space<vmem>>, vector<1x1x8x16xbf16>
    %168 = vector.shape_cast %167 : vector<1x1x8x16xbf16> to vector<8x16xbf16>
    %cst_172 = arith.constant dense<0.000000e+00> : vector<8x128xf32>
    %169 = tpu.matmul %168, %3, %cst_172 {dimension_numbers = #tpu.dot_dimension_numbers<[1], [0], [0], [1], [0, 0, 1, 1], [], []>} : vector<8x16xbf16>, vector<16x128xbf16>, vector<8x128xf32> -> vector<8x128xf32>
    %170 = arith.addf %166, %169 : vector<8x128xf32>
    %c0_173 = arith.constant 0 : index
    %c8 = arith.constant 8 : index
    %c0_174 = arith.constant 0 : index
    %c0_175 = arith.constant 0 : index
    %171 = vector.load %arg1[%c0_173, %c8, %c0_174, %c0_175] : memref<1x9x9x16xbf16, #tpu.memory_space<vmem>>, vector<1x1x8x16xbf16>
    %172 = vector.shape_cast %171 : vector<1x1x8x16xbf16> to vector<8x16xbf16>
    %cst_176 = arith.constant dense<0.000000e+00> : vector<8x128xf32>
    %173 = tpu.matmul %172, %5, %cst_176 {dimension_numbers = #tpu.dot_dimension_numbers<[1], [0], [0], [1], [0, 0, 1, 1], [], []>} : vector<8x16xbf16>, vector<16x128xbf16>, vector<8x128xf32> -> vector<8x128xf32>
    %174 = arith.addf %170, %173 : vector<8x128xf32>
    %c0_177 = arith.constant 0 : index
    %c8_178 = arith.constant 8 : index
    %c1_179 = arith.constant 1 : index
    %c0_180 = arith.constant 0 : index
    %175 = vector.load %arg1[%c0_177, %c8_178, %c1_179, %c0_180] : memref<1x9x9x16xbf16, #tpu.memory_space<vmem>>, vector<1x1x8x16xbf16>
    %176 = vector.shape_cast %175 : vector<1x1x8x16xbf16> to vector<8x16xbf16>
    %cst_181 = arith.constant dense<0.000000e+00> : vector<8x128xf32>
    %177 = tpu.matmul %176, %7, %cst_181 {dimension_numbers = #tpu.dot_dimension_numbers<[1], [0], [0], [1], [0, 0, 1, 1], [], []>} : vector<8x16xbf16>, vector<16x128xbf16>, vector<8x128xf32> -> vector<8x128xf32>
    %178 = arith.addf %174, %177 : vector<8x128xf32>
    %cst_182 = arith.constant dense<0.000000e+00> : vector<128xf32>
    %179 = vector.multi_reduction <add>, %178, %cst_182 [0] : vector<8x128xf32> to vector<128xf32>
    %180 = vector.shape_cast %179 : vector<128xf32> to vector<1x128xf32>
    %181 = arith.addf %159, %180 : vector<1x128xf32>
    %182 = arith.mulf %178, %178 : vector<8x128xf32>
    %cst_183 = arith.constant dense<0.000000e+00> : vector<128xf32>
    %183 = vector.multi_reduction <add>, %182, %cst_183 [0] : vector<8x128xf32> to vector<128xf32>
    %184 = vector.shape_cast %183 : vector<128xf32> to vector<1x128xf32>
    %185 = arith.addf %163, %184 : vector<1x128xf32>
    %c0_184 = arith.constant 0 : index
    %c0_185 = arith.constant 0 : index
    %c0_186 = arith.constant 0 : index
    %186 = vector.load %arg3[%c0_184, %c0_185, %c0_186] : memref<1x8x128xf32, #tpu.memory_space<vmem>>, vector<1x1x128xf32>
    %187 = vector.shape_cast %186 : vector<1x1x128xf32> to vector<1x128xf32>
    %188 = vector.shape_cast %181 : vector<1x128xf32> to vector<1x1x128xf32>
    tpu.vector_store %arg3[%c0_184, %c0_185, %c0_186], %188 {strides = array<i32>} : memref<1x8x128xf32, #tpu.memory_space<vmem>>, vector<1x1x128xf32>,
    %c0_187 = arith.constant 0 : index
    %c1_188 = arith.constant 1 : index
    %c0_189 = arith.constant 0 : index
    %189 = vector.load %arg3[%c0_187, %c1_188, %c0_189] : memref<1x8x128xf32, #tpu.memory_space<vmem>>, vector<1x1x128xf32>
    %190 = vector.shape_cast %189 : vector<1x1x128xf32> to vector<1x128xf32>
    %191 = vector.shape_cast %185 : vector<1x128xf32> to vector<1x1x128xf32>
    tpu.vector_store %arg3[%c0_187, %c1_188, %c0_189], %191 {strides = array<i32>} : memref<1x8x128xf32, #tpu.memory_space<vmem>>, vector<1x1x128xf32>,
    return
  }
  func.func @transform_0(%arg0: i32) -> (i32, i32, i32, i32) {
    %c0_i32 = arith.constant 0 : i32
    %c0_i32_0 = arith.constant 0 : i32
    %c0_i32_1 = arith.constant 0 : i32
    %c0_i32_2 = arith.constant 0 : i32
    return %arg0, %c0_i32, %c0_i32_0, %c0_i32_1 : i32, i32, i32, i32
  }
  func.func @transform_1(%arg0: i32) -> (i32, i32, i32, i32) {
    %c0_i32 = arith.constant 0 : i32
    %c0_i32_0 = arith.constant 0 : i32
    %c0_i32_1 = arith.constant 0 : i32
    %c0_i32_2 = arith.constant 0 : i32
    %c0_i32_3 = arith.constant 0 : i32
    return %c0_i32, %c0_i32_0, %c0_i32_1, %c0_i32_2 : i32, i32, i32, i32
  }
  func.func @transform_2(%arg0: i32) -> (i32, i32, i32) {
    %c0_i32 = arith.constant 0 : i32
    %c0_i32_0 = arith.constant 0 : i32
    %c0_i32_1 = arith.constant 0 : i32
    return %arg0, %c0_i32, %c0_i32_0 : i32, i32, i32
  }
}

module attributes {stable_mosaic.version = 11 : i64} {
  func.func @conv_bn_lrelu_kernel(%arg0: i32, %arg1: memref<1x9x9x16xbf16, #tpu.memory_space<vmem>>, %arg2: memref<2x2x16x128xbf16, #tpu.memory_space<vmem>>, %arg3: memref<8x128xf32, #tpu.memory_space<vmem>>, %arg4: memref<1x8x8x128xf32, #tpu.memory_space<vmem>>) attributes {dimension_semantics = [#tpu.dimension_semantics<parallel>], iteration_bounds = array<i64: 2>, scalar_prefetch = 0 : i64, scratch_operands = 0 : i64, tpu.core_type = #tpu.core_type<tc>, window_params = [{transform_indices = @transform_0, window_bounds = array<i64: 1, 9, 9, 16>}, {pipeline_mode = #tpu.pipeline_mode<synchronous>, transform_indices = @transform_1, window_bounds = array<i64: 2, 2, 16, 128>}, {pipeline_mode = #tpu.pipeline_mode<synchronous>, transform_indices = @transform_2, window_bounds = array<i64: 8, 128>}, {transform_indices = @transform_3, window_bounds = array<i64: 1, 8, 8, 128>}]} {
    %c0 = arith.constant 0 : index
    %c0_0 = arith.constant 0 : index
    %c0_1 = arith.constant 0 : index
    %c0_2 = arith.constant 0 : index
    %0 = vector.load %arg2[%c0, %c0_0, %c0_1, %c0_2] : memref<2x2x16x128xbf16, #tpu.memory_space<vmem>>, vector<1x1x16x128xbf16>
    %1 = vector.shape_cast %0 : vector<1x1x16x128xbf16> to vector<16x128xbf16>
    %c0_3 = arith.constant 0 : index
    %c1 = arith.constant 1 : index
    %c0_4 = arith.constant 0 : index
    %c0_5 = arith.constant 0 : index
    %2 = vector.load %arg2[%c0_3, %c1, %c0_4, %c0_5] : memref<2x2x16x128xbf16, #tpu.memory_space<vmem>>, vector<1x1x16x128xbf16>
    %3 = vector.shape_cast %2 : vector<1x1x16x128xbf16> to vector<16x128xbf16>
    %c1_6 = arith.constant 1 : index
    %c0_7 = arith.constant 0 : index
    %c0_8 = arith.constant 0 : index
    %c0_9 = arith.constant 0 : index
    %4 = vector.load %arg2[%c1_6, %c0_7, %c0_8, %c0_9] : memref<2x2x16x128xbf16, #tpu.memory_space<vmem>>, vector<1x1x16x128xbf16>
    %5 = vector.shape_cast %4 : vector<1x1x16x128xbf16> to vector<16x128xbf16>
    %c1_10 = arith.constant 1 : index
    %c1_11 = arith.constant 1 : index
    %c0_12 = arith.constant 0 : index
    %c0_13 = arith.constant 0 : index
    %6 = vector.load %arg2[%c1_10, %c1_11, %c0_12, %c0_13] : memref<2x2x16x128xbf16, #tpu.memory_space<vmem>>, vector<1x1x16x128xbf16>
    %7 = vector.shape_cast %6 : vector<1x1x16x128xbf16> to vector<16x128xbf16>
    %c0_14 = arith.constant 0 : index
    %c0_15 = arith.constant 0 : index
    %8 = vector.load %arg3[%c0_14, %c0_15] : memref<8x128xf32, #tpu.memory_space<vmem>>, vector<1x128xf32>
    %c1_16 = arith.constant 1 : index
    %c0_17 = arith.constant 0 : index
    %9 = vector.load %arg3[%c1_16, %c0_17] : memref<8x128xf32, #tpu.memory_space<vmem>>, vector<1x128xf32>
    %c0_18 = arith.constant 0 : index
    %c0_19 = arith.constant 0 : index
    %c0_20 = arith.constant 0 : index
    %c0_21 = arith.constant 0 : index
    %10 = vector.load %arg1[%c0_18, %c0_19, %c0_20, %c0_21] : memref<1x9x9x16xbf16, #tpu.memory_space<vmem>>, vector<1x1x8x16xbf16>
    %11 = vector.shape_cast %10 : vector<1x1x8x16xbf16> to vector<8x16xbf16>
    %cst = arith.constant dense<0.000000e+00> : vector<8x128xf32>
    %12 = tpu.matmul %11, %1, %cst {dimension_numbers = #tpu.dot_dimension_numbers<[1], [0], [0], [1], [0, 0, 1, 1], [], []>} : vector<8x16xbf16>, vector<16x128xbf16>, vector<8x128xf32> -> vector<8x128xf32>
    %c0_22 = arith.constant 0 : index
    %c0_23 = arith.constant 0 : index
    %c1_24 = arith.constant 1 : index
    %c0_25 = arith.constant 0 : index
    %13 = vector.load %arg1[%c0_22, %c0_23, %c1_24, %c0_25] : memref<1x9x9x16xbf16, #tpu.memory_space<vmem>>, vector<1x1x8x16xbf16>
    %14 = vector.shape_cast %13 : vector<1x1x8x16xbf16> to vector<8x16xbf16>
    %cst_26 = arith.constant dense<0.000000e+00> : vector<8x128xf32>
    %15 = tpu.matmul %14, %3, %cst_26 {dimension_numbers = #tpu.dot_dimension_numbers<[1], [0], [0], [1], [0, 0, 1, 1], [], []>} : vector<8x16xbf16>, vector<16x128xbf16>, vector<8x128xf32> -> vector<8x128xf32>
    %16 = arith.addf %12, %15 : vector<8x128xf32>
    %c0_27 = arith.constant 0 : index
    %c1_28 = arith.constant 1 : index
    %c0_29 = arith.constant 0 : index
    %c0_30 = arith.constant 0 : index
    %17 = vector.load %arg1[%c0_27, %c1_28, %c0_29, %c0_30] : memref<1x9x9x16xbf16, #tpu.memory_space<vmem>>, vector<1x1x8x16xbf16>
    %18 = vector.shape_cast %17 : vector<1x1x8x16xbf16> to vector<8x16xbf16>
    %cst_31 = arith.constant dense<0.000000e+00> : vector<8x128xf32>
    %19 = tpu.matmul %18, %5, %cst_31 {dimension_numbers = #tpu.dot_dimension_numbers<[1], [0], [0], [1], [0, 0, 1, 1], [], []>} : vector<8x16xbf16>, vector<16x128xbf16>, vector<8x128xf32> -> vector<8x128xf32>
    %20 = arith.addf %16, %19 : vector<8x128xf32>
    %c0_32 = arith.constant 0 : index
    %c1_33 = arith.constant 1 : index
    %c1_34 = arith.constant 1 : index
    %c0_35 = arith.constant 0 : index
    %21 = vector.load %arg1[%c0_32, %c1_33, %c1_34, %c0_35] : memref<1x9x9x16xbf16, #tpu.memory_space<vmem>>, vector<1x1x8x16xbf16>
    %22 = vector.shape_cast %21 : vector<1x1x8x16xbf16> to vector<8x16xbf16>
    %cst_36 = arith.constant dense<0.000000e+00> : vector<8x128xf32>
    %23 = tpu.matmul %22, %7, %cst_36 {dimension_numbers = #tpu.dot_dimension_numbers<[1], [0], [0], [1], [0, 0, 1, 1], [], []>} : vector<8x16xbf16>, vector<16x128xbf16>, vector<8x128xf32> -> vector<8x128xf32>
    %24 = arith.addf %20, %23 : vector<8x128xf32>
    %25 = vector.broadcast %8 : vector<1x128xf32> to vector<8x128xf32>
    %26 = arith.mulf %24, %25 : vector<8x128xf32>
    %27 = vector.broadcast %9 : vector<1x128xf32> to vector<8x128xf32>
    %28 = arith.addf %26, %27 : vector<8x128xf32>
    %cst_37 = arith.constant 0.000000e+00 : f32
    %29 = vector.broadcast %cst_37 : f32 to vector<8x128xf32>
    %30 = arith.cmpf oge, %28, %29 : vector<8x128xf32>
    %cst_38 = arith.constant 2.000000e-01 : f32
    %31 = vector.broadcast %cst_38 : f32 to vector<8x128xf32>
    %32 = arith.mulf %31, %28 : vector<8x128xf32>
    %33 = arith.select %30, %28, %32 : vector<8x128xi1>, vector<8x128xf32>
    %c0_39 = arith.constant 0 : index
    %c0_40 = arith.constant 0 : index
    %c0_41 = arith.constant 0 : index
    %c0_42 = arith.constant 0 : index
    %34 = vector.load %arg4[%c0_39, %c0_40, %c0_41, %c0_42] : memref<1x8x8x128xf32, #tpu.memory_space<vmem>>, vector<1x1x8x128xf32>
    %35 = vector.shape_cast %34 : vector<1x1x8x128xf32> to vector<8x128xf32>
    %36 = vector.shape_cast %33 : vector<8x128xf32> to vector<1x1x8x128xf32>
    tpu.vector_store %arg4[%c0_39, %c0_40, %c0_41, %c0_42], %36 {strides = array<i32>} : memref<1x8x8x128xf32, #tpu.memory_space<vmem>>, vector<1x1x8x128xf32>,
    %c0_43 = arith.constant 0 : index
    %c1_44 = arith.constant 1 : index
    %c0_45 = arith.constant 0 : index
    %c0_46 = arith.constant 0 : index
    %37 = vector.load %arg1[%c0_43, %c1_44, %c0_45, %c0_46] : memref<1x9x9x16xbf16, #tpu.memory_space<vmem>>, vector<1x1x8x16xbf16>
    %38 = vector.shape_cast %37 : vector<1x1x8x16xbf16> to vector<8x16xbf16>
    %cst_47 = arith.constant dense<0.000000e+00> : vector<8x128xf32>
    %39 = tpu.matmul %38, %1, %cst_47 {dimension_numbers = #tpu.dot_dimension_numbers<[1], [0], [0], [1], [0, 0, 1, 1], [], []>} : vector<8x16xbf16>, vector<16x128xbf16>, vector<8x128xf32> -> vector<8x128xf32>
    %c0_48 = arith.constant 0 : index
    %c1_49 = arith.constant 1 : index
    %c1_50 = arith.constant 1 : index
    %c0_51 = arith.constant 0 : index
    %40 = vector.load %arg1[%c0_48, %c1_49, %c1_50, %c0_51] : memref<1x9x9x16xbf16, #tpu.memory_space<vmem>>, vector<1x1x8x16xbf16>
    %41 = vector.shape_cast %40 : vector<1x1x8x16xbf16> to vector<8x16xbf16>
    %cst_52 = arith.constant dense<0.000000e+00> : vector<8x128xf32>
    %42 = tpu.matmul %41, %3, %cst_52 {dimension_numbers = #tpu.dot_dimension_numbers<[1], [0], [0], [1], [0, 0, 1, 1], [], []>} : vector<8x16xbf16>, vector<16x128xbf16>, vector<8x128xf32> -> vector<8x128xf32>
    %43 = arith.addf %39, %42 : vector<8x128xf32>
    %c0_53 = arith.constant 0 : index
    %c2 = arith.constant 2 : index
    %c0_54 = arith.constant 0 : index
    %c0_55 = arith.constant 0 : index
    %44 = vector.load %arg1[%c0_53, %c2, %c0_54, %c0_55] : memref<1x9x9x16xbf16, #tpu.memory_space<vmem>>, vector<1x1x8x16xbf16>
    %45 = vector.shape_cast %44 : vector<1x1x8x16xbf16> to vector<8x16xbf16>
    %cst_56 = arith.constant dense<0.000000e+00> : vector<8x128xf32>
    %46 = tpu.matmul %45, %5, %cst_56 {dimension_numbers = #tpu.dot_dimension_numbers<[1], [0], [0], [1], [0, 0, 1, 1], [], []>} : vector<8x16xbf16>, vector<16x128xbf16>, vector<8x128xf32> -> vector<8x128xf32>
    %47 = arith.addf %43, %46 : vector<8x128xf32>
    %c0_57 = arith.constant 0 : index
    %c2_58 = arith.constant 2 : index
    %c1_59 = arith.constant 1 : index
    %c0_60 = arith.constant 0 : index
    %48 = vector.load %arg1[%c0_57, %c2_58, %c1_59, %c0_60] : memref<1x9x9x16xbf16, #tpu.memory_space<vmem>>, vector<1x1x8x16xbf16>
    %49 = vector.shape_cast %48 : vector<1x1x8x16xbf16> to vector<8x16xbf16>
    %cst_61 = arith.constant dense<0.000000e+00> : vector<8x128xf32>
    %50 = tpu.matmul %49, %7, %cst_61 {dimension_numbers = #tpu.dot_dimension_numbers<[1], [0], [0], [1], [0, 0, 1, 1], [], []>} : vector<8x16xbf16>, vector<16x128xbf16>, vector<8x128xf32> -> vector<8x128xf32>
    %51 = arith.addf %47, %50 : vector<8x128xf32>
    %52 = vector.broadcast %8 : vector<1x128xf32> to vector<8x128xf32>
    %53 = arith.mulf %51, %52 : vector<8x128xf32>
    %54 = vector.broadcast %9 : vector<1x128xf32> to vector<8x128xf32>
    %55 = arith.addf %53, %54 : vector<8x128xf32>
    %cst_62 = arith.constant 0.000000e+00 : f32
    %56 = vector.broadcast %cst_62 : f32 to vector<8x128xf32>
    %57 = arith.cmpf oge, %55, %56 : vector<8x128xf32>
    %cst_63 = arith.constant 2.000000e-01 : f32
    %58 = vector.broadcast %cst_63 : f32 to vector<8x128xf32>
    %59 = arith.mulf %58, %55 : vector<8x128xf32>
    %60 = arith.select %57, %55, %59 : vector<8x128xi1>, vector<8x128xf32>
    %c0_64 = arith.constant 0 : index
    %c1_65 = arith.constant 1 : index
    %c0_66 = arith.constant 0 : index
    %c0_67 = arith.constant 0 : index
    %61 = vector.load %arg4[%c0_64, %c1_65, %c0_66, %c0_67] : memref<1x8x8x128xf32, #tpu.memory_space<vmem>>, vector<1x1x8x128xf32>
    %62 = vector.shape_cast %61 : vector<1x1x8x128xf32> to vector<8x128xf32>
    %63 = vector.shape_cast %60 : vector<8x128xf32> to vector<1x1x8x128xf32>
    tpu.vector_store %arg4[%c0_64, %c1_65, %c0_66, %c0_67], %63 {strides = array<i32>} : memref<1x8x8x128xf32, #tpu.memory_space<vmem>>, vector<1x1x8x128xf32>,
    %c0_68 = arith.constant 0 : index
    %c2_69 = arith.constant 2 : index
    %c0_70 = arith.constant 0 : index
    %c0_71 = arith.constant 0 : index
    %64 = vector.load %arg1[%c0_68, %c2_69, %c0_70, %c0_71] : memref<1x9x9x16xbf16, #tpu.memory_space<vmem>>, vector<1x1x8x16xbf16>
    %65 = vector.shape_cast %64 : vector<1x1x8x16xbf16> to vector<8x16xbf16>
    %cst_72 = arith.constant dense<0.000000e+00> : vector<8x128xf32>
    %66 = tpu.matmul %65, %1, %cst_72 {dimension_numbers = #tpu.dot_dimension_numbers<[1], [0], [0], [1], [0, 0, 1, 1], [], []>} : vector<8x16xbf16>, vector<16x128xbf16>, vector<8x128xf32> -> vector<8x128xf32>
    %c0_73 = arith.constant 0 : index
    %c2_74 = arith.constant 2 : index
    %c1_75 = arith.constant 1 : index
    %c0_76 = arith.constant 0 : index
    %67 = vector.load %arg1[%c0_73, %c2_74, %c1_75, %c0_76] : memref<1x9x9x16xbf16, #tpu.memory_space<vmem>>, vector<1x1x8x16xbf16>
    %68 = vector.shape_cast %67 : vector<1x1x8x16xbf16> to vector<8x16xbf16>
    %cst_77 = arith.constant dense<0.000000e+00> : vector<8x128xf32>
    %69 = tpu.matmul %68, %3, %cst_77 {dimension_numbers = #tpu.dot_dimension_numbers<[1], [0], [0], [1], [0, 0, 1, 1], [], []>} : vector<8x16xbf16>, vector<16x128xbf16>, vector<8x128xf32> -> vector<8x128xf32>
    %70 = arith.addf %66, %69 : vector<8x128xf32>
    %c0_78 = arith.constant 0 : index
    %c3 = arith.constant 3 : index
    %c0_79 = arith.constant 0 : index
    %c0_80 = arith.constant 0 : index
    %71 = vector.load %arg1[%c0_78, %c3, %c0_79, %c0_80] : memref<1x9x9x16xbf16, #tpu.memory_space<vmem>>, vector<1x1x8x16xbf16>
    %72 = vector.shape_cast %71 : vector<1x1x8x16xbf16> to vector<8x16xbf16>
    %cst_81 = arith.constant dense<0.000000e+00> : vector<8x128xf32>
    %73 = tpu.matmul %72, %5, %cst_81 {dimension_numbers = #tpu.dot_dimension_numbers<[1], [0], [0], [1], [0, 0, 1, 1], [], []>} : vector<8x16xbf16>, vector<16x128xbf16>, vector<8x128xf32> -> vector<8x128xf32>
    %74 = arith.addf %70, %73 : vector<8x128xf32>
    %c0_82 = arith.constant 0 : index
    %c3_83 = arith.constant 3 : index
    %c1_84 = arith.constant 1 : index
    %c0_85 = arith.constant 0 : index
    %75 = vector.load %arg1[%c0_82, %c3_83, %c1_84, %c0_85] : memref<1x9x9x16xbf16, #tpu.memory_space<vmem>>, vector<1x1x8x16xbf16>
    %76 = vector.shape_cast %75 : vector<1x1x8x16xbf16> to vector<8x16xbf16>
    %cst_86 = arith.constant dense<0.000000e+00> : vector<8x128xf32>
    %77 = tpu.matmul %76, %7, %cst_86 {dimension_numbers = #tpu.dot_dimension_numbers<[1], [0], [0], [1], [0, 0, 1, 1], [], []>} : vector<8x16xbf16>, vector<16x128xbf16>, vector<8x128xf32> -> vector<8x128xf32>
    %78 = arith.addf %74, %77 : vector<8x128xf32>
    %79 = vector.broadcast %8 : vector<1x128xf32> to vector<8x128xf32>
    %80 = arith.mulf %78, %79 : vector<8x128xf32>
    %81 = vector.broadcast %9 : vector<1x128xf32> to vector<8x128xf32>
    %82 = arith.addf %80, %81 : vector<8x128xf32>
    %cst_87 = arith.constant 0.000000e+00 : f32
    %83 = vector.broadcast %cst_87 : f32 to vector<8x128xf32>
    %84 = arith.cmpf oge, %82, %83 : vector<8x128xf32>
    %cst_88 = arith.constant 2.000000e-01 : f32
    %85 = vector.broadcast %cst_88 : f32 to vector<8x128xf32>
    %86 = arith.mulf %85, %82 : vector<8x128xf32>
    %87 = arith.select %84, %82, %86 : vector<8x128xi1>, vector<8x128xf32>
    %c0_89 = arith.constant 0 : index
    %c2_90 = arith.constant 2 : index
    %c0_91 = arith.constant 0 : index
    %c0_92 = arith.constant 0 : index
    %88 = vector.load %arg4[%c0_89, %c2_90, %c0_91, %c0_92] : memref<1x8x8x128xf32, #tpu.memory_space<vmem>>, vector<1x1x8x128xf32>
    %89 = vector.shape_cast %88 : vector<1x1x8x128xf32> to vector<8x128xf32>
    %90 = vector.shape_cast %87 : vector<8x128xf32> to vector<1x1x8x128xf32>
    tpu.vector_store %arg4[%c0_89, %c2_90, %c0_91, %c0_92], %90 {strides = array<i32>} : memref<1x8x8x128xf32, #tpu.memory_space<vmem>>, vector<1x1x8x128xf32>,
    %c0_93 = arith.constant 0 : index
    %c3_94 = arith.constant 3 : index
    %c0_95 = arith.constant 0 : index
    %c0_96 = arith.constant 0 : index
    %91 = vector.load %arg1[%c0_93, %c3_94, %c0_95, %c0_96] : memref<1x9x9x16xbf16, #tpu.memory_space<vmem>>, vector<1x1x8x16xbf16>
    %92 = vector.shape_cast %91 : vector<1x1x8x16xbf16> to vector<8x16xbf16>
    %cst_97 = arith.constant dense<0.000000e+00> : vector<8x128xf32>
    %93 = tpu.matmul %92, %1, %cst_97 {dimension_numbers = #tpu.dot_dimension_numbers<[1], [0], [0], [1], [0, 0, 1, 1], [], []>} : vector<8x16xbf16>, vector<16x128xbf16>, vector<8x128xf32> -> vector<8x128xf32>
    %c0_98 = arith.constant 0 : index
    %c3_99 = arith.constant 3 : index
    %c1_100 = arith.constant 1 : index
    %c0_101 = arith.constant 0 : index
    %94 = vector.load %arg1[%c0_98, %c3_99, %c1_100, %c0_101] : memref<1x9x9x16xbf16, #tpu.memory_space<vmem>>, vector<1x1x8x16xbf16>
    %95 = vector.shape_cast %94 : vector<1x1x8x16xbf16> to vector<8x16xbf16>
    %cst_102 = arith.constant dense<0.000000e+00> : vector<8x128xf32>
    %96 = tpu.matmul %95, %3, %cst_102 {dimension_numbers = #tpu.dot_dimension_numbers<[1], [0], [0], [1], [0, 0, 1, 1], [], []>} : vector<8x16xbf16>, vector<16x128xbf16>, vector<8x128xf32> -> vector<8x128xf32>
    %97 = arith.addf %93, %96 : vector<8x128xf32>
    %c0_103 = arith.constant 0 : index
    %c4 = arith.constant 4 : index
    %c0_104 = arith.constant 0 : index
    %c0_105 = arith.constant 0 : index
    %98 = vector.load %arg1[%c0_103, %c4, %c0_104, %c0_105] : memref<1x9x9x16xbf16, #tpu.memory_space<vmem>>, vector<1x1x8x16xbf16>
    %99 = vector.shape_cast %98 : vector<1x1x8x16xbf16> to vector<8x16xbf16>
    %cst_106 = arith.constant dense<0.000000e+00> : vector<8x128xf32>
    %100 = tpu.matmul %99, %5, %cst_106 {dimension_numbers = #tpu.dot_dimension_numbers<[1], [0], [0], [1], [0, 0, 1, 1], [], []>} : vector<8x16xbf16>, vector<16x128xbf16>, vector<8x128xf32> -> vector<8x128xf32>
    %101 = arith.addf %97, %100 : vector<8x128xf32>
    %c0_107 = arith.constant 0 : index
    %c4_108 = arith.constant 4 : index
    %c1_109 = arith.constant 1 : index
    %c0_110 = arith.constant 0 : index
    %102 = vector.load %arg1[%c0_107, %c4_108, %c1_109, %c0_110] : memref<1x9x9x16xbf16, #tpu.memory_space<vmem>>, vector<1x1x8x16xbf16>
    %103 = vector.shape_cast %102 : vector<1x1x8x16xbf16> to vector<8x16xbf16>
    %cst_111 = arith.constant dense<0.000000e+00> : vector<8x128xf32>
    %104 = tpu.matmul %103, %7, %cst_111 {dimension_numbers = #tpu.dot_dimension_numbers<[1], [0], [0], [1], [0, 0, 1, 1], [], []>} : vector<8x16xbf16>, vector<16x128xbf16>, vector<8x128xf32> -> vector<8x128xf32>
    %105 = arith.addf %101, %104 : vector<8x128xf32>
    %106 = vector.broadcast %8 : vector<1x128xf32> to vector<8x128xf32>
    %107 = arith.mulf %105, %106 : vector<8x128xf32>
    %108 = vector.broadcast %9 : vector<1x128xf32> to vector<8x128xf32>
    %109 = arith.addf %107, %108 : vector<8x128xf32>
    %cst_112 = arith.constant 0.000000e+00 : f32
    %110 = vector.broadcast %cst_112 : f32 to vector<8x128xf32>
    %111 = arith.cmpf oge, %109, %110 : vector<8x128xf32>
    %cst_113 = arith.constant 2.000000e-01 : f32
    %112 = vector.broadcast %cst_113 : f32 to vector<8x128xf32>
    %113 = arith.mulf %112, %109 : vector<8x128xf32>
    %114 = arith.select %111, %109, %113 : vector<8x128xi1>, vector<8x128xf32>
    %c0_114 = arith.constant 0 : index
    %c3_115 = arith.constant 3 : index
    %c0_116 = arith.constant 0 : index
    %c0_117 = arith.constant 0 : index
    %115 = vector.load %arg4[%c0_114, %c3_115, %c0_116, %c0_117] : memref<1x8x8x128xf32, #tpu.memory_space<vmem>>, vector<1x1x8x128xf32>
    %116 = vector.shape_cast %115 : vector<1x1x8x128xf32> to vector<8x128xf32>
    %117 = vector.shape_cast %114 : vector<8x128xf32> to vector<1x1x8x128xf32>
    tpu.vector_store %arg4[%c0_114, %c3_115, %c0_116, %c0_117], %117 {strides = array<i32>} : memref<1x8x8x128xf32, #tpu.memory_space<vmem>>, vector<1x1x8x128xf32>,
    %c0_118 = arith.constant 0 : index
    %c4_119 = arith.constant 4 : index
    %c0_120 = arith.constant 0 : index
    %c0_121 = arith.constant 0 : index
    %118 = vector.load %arg1[%c0_118, %c4_119, %c0_120, %c0_121] : memref<1x9x9x16xbf16, #tpu.memory_space<vmem>>, vector<1x1x8x16xbf16>
    %119 = vector.shape_cast %118 : vector<1x1x8x16xbf16> to vector<8x16xbf16>
    %cst_122 = arith.constant dense<0.000000e+00> : vector<8x128xf32>
    %120 = tpu.matmul %119, %1, %cst_122 {dimension_numbers = #tpu.dot_dimension_numbers<[1], [0], [0], [1], [0, 0, 1, 1], [], []>} : vector<8x16xbf16>, vector<16x128xbf16>, vector<8x128xf32> -> vector<8x128xf32>
    %c0_123 = arith.constant 0 : index
    %c4_124 = arith.constant 4 : index
    %c1_125 = arith.constant 1 : index
    %c0_126 = arith.constant 0 : index
    %121 = vector.load %arg1[%c0_123, %c4_124, %c1_125, %c0_126] : memref<1x9x9x16xbf16, #tpu.memory_space<vmem>>, vector<1x1x8x16xbf16>
    %122 = vector.shape_cast %121 : vector<1x1x8x16xbf16> to vector<8x16xbf16>
    %cst_127 = arith.constant dense<0.000000e+00> : vector<8x128xf32>
    %123 = tpu.matmul %122, %3, %cst_127 {dimension_numbers = #tpu.dot_dimension_numbers<[1], [0], [0], [1], [0, 0, 1, 1], [], []>} : vector<8x16xbf16>, vector<16x128xbf16>, vector<8x128xf32> -> vector<8x128xf32>
    %124 = arith.addf %120, %123 : vector<8x128xf32>
    %c0_128 = arith.constant 0 : index
    %c5 = arith.constant 5 : index
    %c0_129 = arith.constant 0 : index
    %c0_130 = arith.constant 0 : index
    %125 = vector.load %arg1[%c0_128, %c5, %c0_129, %c0_130] : memref<1x9x9x16xbf16, #tpu.memory_space<vmem>>, vector<1x1x8x16xbf16>
    %126 = vector.shape_cast %125 : vector<1x1x8x16xbf16> to vector<8x16xbf16>
    %cst_131 = arith.constant dense<0.000000e+00> : vector<8x128xf32>
    %127 = tpu.matmul %126, %5, %cst_131 {dimension_numbers = #tpu.dot_dimension_numbers<[1], [0], [0], [1], [0, 0, 1, 1], [], []>} : vector<8x16xbf16>, vector<16x128xbf16>, vector<8x128xf32> -> vector<8x128xf32>
    %128 = arith.addf %124, %127 : vector<8x128xf32>
    %c0_132 = arith.constant 0 : index
    %c5_133 = arith.constant 5 : index
    %c1_134 = arith.constant 1 : index
    %c0_135 = arith.constant 0 : index
    %129 = vector.load %arg1[%c0_132, %c5_133, %c1_134, %c0_135] : memref<1x9x9x16xbf16, #tpu.memory_space<vmem>>, vector<1x1x8x16xbf16>
    %130 = vector.shape_cast %129 : vector<1x1x8x16xbf16> to vector<8x16xbf16>
    %cst_136 = arith.constant dense<0.000000e+00> : vector<8x128xf32>
    %131 = tpu.matmul %130, %7, %cst_136 {dimension_numbers = #tpu.dot_dimension_numbers<[1], [0], [0], [1], [0, 0, 1, 1], [], []>} : vector<8x16xbf16>, vector<16x128xbf16>, vector<8x128xf32> -> vector<8x128xf32>
    %132 = arith.addf %128, %131 : vector<8x128xf32>
    %133 = vector.broadcast %8 : vector<1x128xf32> to vector<8x128xf32>
    %134 = arith.mulf %132, %133 : vector<8x128xf32>
    %135 = vector.broadcast %9 : vector<1x128xf32> to vector<8x128xf32>
    %136 = arith.addf %134, %135 : vector<8x128xf32>
    %cst_137 = arith.constant 0.000000e+00 : f32
    %137 = vector.broadcast %cst_137 : f32 to vector<8x128xf32>
    %138 = arith.cmpf oge, %136, %137 : vector<8x128xf32>
    %cst_138 = arith.constant 2.000000e-01 : f32
    %139 = vector.broadcast %cst_138 : f32 to vector<8x128xf32>
    %140 = arith.mulf %139, %136 : vector<8x128xf32>
    %141 = arith.select %138, %136, %140 : vector<8x128xi1>, vector<8x128xf32>
    %c0_139 = arith.constant 0 : index
    %c4_140 = arith.constant 4 : index
    %c0_141 = arith.constant 0 : index
    %c0_142 = arith.constant 0 : index
    %142 = vector.load %arg4[%c0_139, %c4_140, %c0_141, %c0_142] : memref<1x8x8x128xf32, #tpu.memory_space<vmem>>, vector<1x1x8x128xf32>
    %143 = vector.shape_cast %142 : vector<1x1x8x128xf32> to vector<8x128xf32>
    %144 = vector.shape_cast %141 : vector<8x128xf32> to vector<1x1x8x128xf32>
    tpu.vector_store %arg4[%c0_139, %c4_140, %c0_141, %c0_142], %144 {strides = array<i32>} : memref<1x8x8x128xf32, #tpu.memory_space<vmem>>, vector<1x1x8x128xf32>,
    %c0_143 = arith.constant 0 : index
    %c5_144 = arith.constant 5 : index
    %c0_145 = arith.constant 0 : index
    %c0_146 = arith.constant 0 : index
    %145 = vector.load %arg1[%c0_143, %c5_144, %c0_145, %c0_146] : memref<1x9x9x16xbf16, #tpu.memory_space<vmem>>, vector<1x1x8x16xbf16>
    %146 = vector.shape_cast %145 : vector<1x1x8x16xbf16> to vector<8x16xbf16>
    %cst_147 = arith.constant dense<0.000000e+00> : vector<8x128xf32>
    %147 = tpu.matmul %146, %1, %cst_147 {dimension_numbers = #tpu.dot_dimension_numbers<[1], [0], [0], [1], [0, 0, 1, 1], [], []>} : vector<8x16xbf16>, vector<16x128xbf16>, vector<8x128xf32> -> vector<8x128xf32>
    %c0_148 = arith.constant 0 : index
    %c5_149 = arith.constant 5 : index
    %c1_150 = arith.constant 1 : index
    %c0_151 = arith.constant 0 : index
    %148 = vector.load %arg1[%c0_148, %c5_149, %c1_150, %c0_151] : memref<1x9x9x16xbf16, #tpu.memory_space<vmem>>, vector<1x1x8x16xbf16>
    %149 = vector.shape_cast %148 : vector<1x1x8x16xbf16> to vector<8x16xbf16>
    %cst_152 = arith.constant dense<0.000000e+00> : vector<8x128xf32>
    %150 = tpu.matmul %149, %3, %cst_152 {dimension_numbers = #tpu.dot_dimension_numbers<[1], [0], [0], [1], [0, 0, 1, 1], [], []>} : vector<8x16xbf16>, vector<16x128xbf16>, vector<8x128xf32> -> vector<8x128xf32>
    %151 = arith.addf %147, %150 : vector<8x128xf32>
    %c0_153 = arith.constant 0 : index
    %c6 = arith.constant 6 : index
    %c0_154 = arith.constant 0 : index
    %c0_155 = arith.constant 0 : index
    %152 = vector.load %arg1[%c0_153, %c6, %c0_154, %c0_155] : memref<1x9x9x16xbf16, #tpu.memory_space<vmem>>, vector<1x1x8x16xbf16>
    %153 = vector.shape_cast %152 : vector<1x1x8x16xbf16> to vector<8x16xbf16>
    %cst_156 = arith.constant dense<0.000000e+00> : vector<8x128xf32>
    %154 = tpu.matmul %153, %5, %cst_156 {dimension_numbers = #tpu.dot_dimension_numbers<[1], [0], [0], [1], [0, 0, 1, 1], [], []>} : vector<8x16xbf16>, vector<16x128xbf16>, vector<8x128xf32> -> vector<8x128xf32>
    %155 = arith.addf %151, %154 : vector<8x128xf32>
    %c0_157 = arith.constant 0 : index
    %c6_158 = arith.constant 6 : index
    %c1_159 = arith.constant 1 : index
    %c0_160 = arith.constant 0 : index
    %156 = vector.load %arg1[%c0_157, %c6_158, %c1_159, %c0_160] : memref<1x9x9x16xbf16, #tpu.memory_space<vmem>>, vector<1x1x8x16xbf16>
    %157 = vector.shape_cast %156 : vector<1x1x8x16xbf16> to vector<8x16xbf16>
    %cst_161 = arith.constant dense<0.000000e+00> : vector<8x128xf32>
    %158 = tpu.matmul %157, %7, %cst_161 {dimension_numbers = #tpu.dot_dimension_numbers<[1], [0], [0], [1], [0, 0, 1, 1], [], []>} : vector<8x16xbf16>, vector<16x128xbf16>, vector<8x128xf32> -> vector<8x128xf32>
    %159 = arith.addf %155, %158 : vector<8x128xf32>
    %160 = vector.broadcast %8 : vector<1x128xf32> to vector<8x128xf32>
    %161 = arith.mulf %159, %160 : vector<8x128xf32>
    %162 = vector.broadcast %9 : vector<1x128xf32> to vector<8x128xf32>
    %163 = arith.addf %161, %162 : vector<8x128xf32>
    %cst_162 = arith.constant 0.000000e+00 : f32
    %164 = vector.broadcast %cst_162 : f32 to vector<8x128xf32>
    %165 = arith.cmpf oge, %163, %164 : vector<8x128xf32>
    %cst_163 = arith.constant 2.000000e-01 : f32
    %166 = vector.broadcast %cst_163 : f32 to vector<8x128xf32>
    %167 = arith.mulf %166, %163 : vector<8x128xf32>
    %168 = arith.select %165, %163, %167 : vector<8x128xi1>, vector<8x128xf32>
    %c0_164 = arith.constant 0 : index
    %c5_165 = arith.constant 5 : index
    %c0_166 = arith.constant 0 : index
    %c0_167 = arith.constant 0 : index
    %169 = vector.load %arg4[%c0_164, %c5_165, %c0_166, %c0_167] : memref<1x8x8x128xf32, #tpu.memory_space<vmem>>, vector<1x1x8x128xf32>
    %170 = vector.shape_cast %169 : vector<1x1x8x128xf32> to vector<8x128xf32>
    %171 = vector.shape_cast %168 : vector<8x128xf32> to vector<1x1x8x128xf32>
    tpu.vector_store %arg4[%c0_164, %c5_165, %c0_166, %c0_167], %171 {strides = array<i32>} : memref<1x8x8x128xf32, #tpu.memory_space<vmem>>, vector<1x1x8x128xf32>,
    %c0_168 = arith.constant 0 : index
    %c6_169 = arith.constant 6 : index
    %c0_170 = arith.constant 0 : index
    %c0_171 = arith.constant 0 : index
    %172 = vector.load %arg1[%c0_168, %c6_169, %c0_170, %c0_171] : memref<1x9x9x16xbf16, #tpu.memory_space<vmem>>, vector<1x1x8x16xbf16>
    %173 = vector.shape_cast %172 : vector<1x1x8x16xbf16> to vector<8x16xbf16>
    %cst_172 = arith.constant dense<0.000000e+00> : vector<8x128xf32>
    %174 = tpu.matmul %173, %1, %cst_172 {dimension_numbers = #tpu.dot_dimension_numbers<[1], [0], [0], [1], [0, 0, 1, 1], [], []>} : vector<8x16xbf16>, vector<16x128xbf16>, vector<8x128xf32> -> vector<8x128xf32>
    %c0_173 = arith.constant 0 : index
    %c6_174 = arith.constant 6 : index
    %c1_175 = arith.constant 1 : index
    %c0_176 = arith.constant 0 : index
    %175 = vector.load %arg1[%c0_173, %c6_174, %c1_175, %c0_176] : memref<1x9x9x16xbf16, #tpu.memory_space<vmem>>, vector<1x1x8x16xbf16>
    %176 = vector.shape_cast %175 : vector<1x1x8x16xbf16> to vector<8x16xbf16>
    %cst_177 = arith.constant dense<0.000000e+00> : vector<8x128xf32>
    %177 = tpu.matmul %176, %3, %cst_177 {dimension_numbers = #tpu.dot_dimension_numbers<[1], [0], [0], [1], [0, 0, 1, 1], [], []>} : vector<8x16xbf16>, vector<16x128xbf16>, vector<8x128xf32> -> vector<8x128xf32>
    %178 = arith.addf %174, %177 : vector<8x128xf32>
    %c0_178 = arith.constant 0 : index
    %c7 = arith.constant 7 : index
    %c0_179 = arith.constant 0 : index
    %c0_180 = arith.constant 0 : index
    %179 = vector.load %arg1[%c0_178, %c7, %c0_179, %c0_180] : memref<1x9x9x16xbf16, #tpu.memory_space<vmem>>, vector<1x1x8x16xbf16>
    %180 = vector.shape_cast %179 : vector<1x1x8x16xbf16> to vector<8x16xbf16>
    %cst_181 = arith.constant dense<0.000000e+00> : vector<8x128xf32>
    %181 = tpu.matmul %180, %5, %cst_181 {dimension_numbers = #tpu.dot_dimension_numbers<[1], [0], [0], [1], [0, 0, 1, 1], [], []>} : vector<8x16xbf16>, vector<16x128xbf16>, vector<8x128xf32> -> vector<8x128xf32>
    %182 = arith.addf %178, %181 : vector<8x128xf32>
    %c0_182 = arith.constant 0 : index
    %c7_183 = arith.constant 7 : index
    %c1_184 = arith.constant 1 : index
    %c0_185 = arith.constant 0 : index
    %183 = vector.load %arg1[%c0_182, %c7_183, %c1_184, %c0_185] : memref<1x9x9x16xbf16, #tpu.memory_space<vmem>>, vector<1x1x8x16xbf16>
    %184 = vector.shape_cast %183 : vector<1x1x8x16xbf16> to vector<8x16xbf16>
    %cst_186 = arith.constant dense<0.000000e+00> : vector<8x128xf32>
    %185 = tpu.matmul %184, %7, %cst_186 {dimension_numbers = #tpu.dot_dimension_numbers<[1], [0], [0], [1], [0, 0, 1, 1], [], []>} : vector<8x16xbf16>, vector<16x128xbf16>, vector<8x128xf32> -> vector<8x128xf32>
    %186 = arith.addf %182, %185 : vector<8x128xf32>
    %187 = vector.broadcast %8 : vector<1x128xf32> to vector<8x128xf32>
    %188 = arith.mulf %186, %187 : vector<8x128xf32>
    %189 = vector.broadcast %9 : vector<1x128xf32> to vector<8x128xf32>
    %190 = arith.addf %188, %189 : vector<8x128xf32>
    %cst_187 = arith.constant 0.000000e+00 : f32
    %191 = vector.broadcast %cst_187 : f32 to vector<8x128xf32>
    %192 = arith.cmpf oge, %190, %191 : vector<8x128xf32>
    %cst_188 = arith.constant 2.000000e-01 : f32
    %193 = vector.broadcast %cst_188 : f32 to vector<8x128xf32>
    %194 = arith.mulf %193, %190 : vector<8x128xf32>
    %195 = arith.select %192, %190, %194 : vector<8x128xi1>, vector<8x128xf32>
    %c0_189 = arith.constant 0 : index
    %c6_190 = arith.constant 6 : index
    %c0_191 = arith.constant 0 : index
    %c0_192 = arith.constant 0 : index
    %196 = vector.load %arg4[%c0_189, %c6_190, %c0_191, %c0_192] : memref<1x8x8x128xf32, #tpu.memory_space<vmem>>, vector<1x1x8x128xf32>
    %197 = vector.shape_cast %196 : vector<1x1x8x128xf32> to vector<8x128xf32>
    %198 = vector.shape_cast %195 : vector<8x128xf32> to vector<1x1x8x128xf32>
    tpu.vector_store %arg4[%c0_189, %c6_190, %c0_191, %c0_192], %198 {strides = array<i32>} : memref<1x8x8x128xf32, #tpu.memory_space<vmem>>, vector<1x1x8x128xf32>,
    %c0_193 = arith.constant 0 : index
    %c7_194 = arith.constant 7 : index
    %c0_195 = arith.constant 0 : index
    %c0_196 = arith.constant 0 : index
    %199 = vector.load %arg1[%c0_193, %c7_194, %c0_195, %c0_196] : memref<1x9x9x16xbf16, #tpu.memory_space<vmem>>, vector<1x1x8x16xbf16>
    %200 = vector.shape_cast %199 : vector<1x1x8x16xbf16> to vector<8x16xbf16>
    %cst_197 = arith.constant dense<0.000000e+00> : vector<8x128xf32>
    %201 = tpu.matmul %200, %1, %cst_197 {dimension_numbers = #tpu.dot_dimension_numbers<[1], [0], [0], [1], [0, 0, 1, 1], [], []>} : vector<8x16xbf16>, vector<16x128xbf16>, vector<8x128xf32> -> vector<8x128xf32>
    %c0_198 = arith.constant 0 : index
    %c7_199 = arith.constant 7 : index
    %c1_200 = arith.constant 1 : index
    %c0_201 = arith.constant 0 : index
    %202 = vector.load %arg1[%c0_198, %c7_199, %c1_200, %c0_201] : memref<1x9x9x16xbf16, #tpu.memory_space<vmem>>, vector<1x1x8x16xbf16>
    %203 = vector.shape_cast %202 : vector<1x1x8x16xbf16> to vector<8x16xbf16>
    %cst_202 = arith.constant dense<0.000000e+00> : vector<8x128xf32>
    %204 = tpu.matmul %203, %3, %cst_202 {dimension_numbers = #tpu.dot_dimension_numbers<[1], [0], [0], [1], [0, 0, 1, 1], [], []>} : vector<8x16xbf16>, vector<16x128xbf16>, vector<8x128xf32> -> vector<8x128xf32>
    %205 = arith.addf %201, %204 : vector<8x128xf32>
    %c0_203 = arith.constant 0 : index
    %c8 = arith.constant 8 : index
    %c0_204 = arith.constant 0 : index
    %c0_205 = arith.constant 0 : index
    %206 = vector.load %arg1[%c0_203, %c8, %c0_204, %c0_205] : memref<1x9x9x16xbf16, #tpu.memory_space<vmem>>, vector<1x1x8x16xbf16>
    %207 = vector.shape_cast %206 : vector<1x1x8x16xbf16> to vector<8x16xbf16>
    %cst_206 = arith.constant dense<0.000000e+00> : vector<8x128xf32>
    %208 = tpu.matmul %207, %5, %cst_206 {dimension_numbers = #tpu.dot_dimension_numbers<[1], [0], [0], [1], [0, 0, 1, 1], [], []>} : vector<8x16xbf16>, vector<16x128xbf16>, vector<8x128xf32> -> vector<8x128xf32>
    %209 = arith.addf %205, %208 : vector<8x128xf32>
    %c0_207 = arith.constant 0 : index
    %c8_208 = arith.constant 8 : index
    %c1_209 = arith.constant 1 : index
    %c0_210 = arith.constant 0 : index
    %210 = vector.load %arg1[%c0_207, %c8_208, %c1_209, %c0_210] : memref<1x9x9x16xbf16, #tpu.memory_space<vmem>>, vector<1x1x8x16xbf16>
    %211 = vector.shape_cast %210 : vector<1x1x8x16xbf16> to vector<8x16xbf16>
    %cst_211 = arith.constant dense<0.000000e+00> : vector<8x128xf32>
    %212 = tpu.matmul %211, %7, %cst_211 {dimension_numbers = #tpu.dot_dimension_numbers<[1], [0], [0], [1], [0, 0, 1, 1], [], []>} : vector<8x16xbf16>, vector<16x128xbf16>, vector<8x128xf32> -> vector<8x128xf32>
    %213 = arith.addf %209, %212 : vector<8x128xf32>
    %214 = vector.broadcast %8 : vector<1x128xf32> to vector<8x128xf32>
    %215 = arith.mulf %213, %214 : vector<8x128xf32>
    %216 = vector.broadcast %9 : vector<1x128xf32> to vector<8x128xf32>
    %217 = arith.addf %215, %216 : vector<8x128xf32>
    %cst_212 = arith.constant 0.000000e+00 : f32
    %218 = vector.broadcast %cst_212 : f32 to vector<8x128xf32>
    %219 = arith.cmpf oge, %217, %218 : vector<8x128xf32>
    %cst_213 = arith.constant 2.000000e-01 : f32
    %220 = vector.broadcast %cst_213 : f32 to vector<8x128xf32>
    %221 = arith.mulf %220, %217 : vector<8x128xf32>
    %222 = arith.select %219, %217, %221 : vector<8x128xi1>, vector<8x128xf32>
    %c0_214 = arith.constant 0 : index
    %c7_215 = arith.constant 7 : index
    %c0_216 = arith.constant 0 : index
    %c0_217 = arith.constant 0 : index
    %223 = vector.load %arg4[%c0_214, %c7_215, %c0_216, %c0_217] : memref<1x8x8x128xf32, #tpu.memory_space<vmem>>, vector<1x1x8x128xf32>
    %224 = vector.shape_cast %223 : vector<1x1x8x128xf32> to vector<8x128xf32>
    %225 = vector.shape_cast %222 : vector<8x128xf32> to vector<1x1x8x128xf32>
    tpu.vector_store %arg4[%c0_214, %c7_215, %c0_216, %c0_217], %225 {strides = array<i32>} : memref<1x8x8x128xf32, #tpu.memory_space<vmem>>, vector<1x1x8x128xf32>,
    return
  }
  func.func @transform_0(%arg0: i32) -> (i32, i32, i32, i32) {
    %c0_i32 = arith.constant 0 : i32
    %c0_i32_0 = arith.constant 0 : i32
    %c0_i32_1 = arith.constant 0 : i32
    %c0_i32_2 = arith.constant 0 : i32
    return %arg0, %c0_i32, %c0_i32_0, %c0_i32_1 : i32, i32, i32, i32
  }
  func.func @transform_1(%arg0: i32) -> (i32, i32, i32, i32) {
    %c0_i32 = arith.constant 0 : i32
    %c0_i32_0 = arith.constant 0 : i32
    %c0_i32_1 = arith.constant 0 : i32
    %c0_i32_2 = arith.constant 0 : i32
    %c0_i32_3 = arith.constant 0 : i32
    return %c0_i32, %c0_i32_0, %c0_i32_1, %c0_i32_2 : i32, i32, i32, i32
  }
  func.func @transform_2(%arg0: i32) -> (i32, i32) {
    %c0_i32 = arith.constant 0 : i32
    %c0_i32_0 = arith.constant 0 : i32
    %c0_i32_1 = arith.constant 0 : i32
    return %c0_i32, %c0_i32_0 : i32, i32
  }
  func.func @transform_3(%arg0: i32) -> (i32, i32, i32, i32) {
    %c0_i32 = arith.constant 0 : i32
    %c0_i32_0 = arith.constant 0 : i32
    %c0_i32_1 = arith.constant 0 : i32
    %c0_i32_2 = arith.constant 0 : i32
    return %arg0, %c0_i32, %c0_i32_0, %c0_i32_1 : i32, i32, i32, i32
  }
}

</mosaic_0001>

<llo_original>
// kernel: down_block.2
$region0: #{down_block.2}
  #allocation0 [shape = 'u32[]', space=smem, size = 0x4, offset = 0x4, fixed_abs, tag = 'smem constant byte address 0x4 - core index']
  #allocation1 [shape = 'u32[144,128]{1,0:T(1,128)}', space=vmem, size = 0x12000, scoped, tag = 'internal scratch']
  %s0 = inlined_call_operand.vmem [shape: bf16[2,9,9,16], index: 0, kind: input, shape index: {}]
  %s1 = inlined_call_operand.vmem [shape: bf16[2,2,16,128], index: 1, kind: input, shape index: {}]
  %s2 = inlined_call_operand.vmem [shape: f32[2,8,128], index: 2, kind: output, shape index: {}]
  %s3 = sld [smem:[#allocation0]]
  $region41: #{down_block.2} parent=0
    _
  %s5 = ssub.s32 1, %s3
  %s6 = scalar_select 0, %s5, %s3
  loop: start=0, step=1, limit=4
  $region2: #{down_block.2} parent=0 // loop_pre_header
    _
  $region3: #{down_block.2} parent=0 // loop_header
    %s8 = sphi 0, %s12
    %p9 = scmp.ge.s32.totalorder %s8, 4
    %s18 = sphi 0, %s20
    %s21 = sphi 0, %s18
    %s22 = sphi 0, %s21
    %s38 = sphi 0, %s22
    %s42 = sphi 0, %s42
    %s44 = sphi 0, %s42
    %s45 = sphi 0, %s44
    %s59 = sphi 0, %s45
    %s65 = sphi 0, %s67
    %s68 = sphi 0, %s65
    %s69 = sphi 0, %s68
    %s85 = sphi 0, %s69
  $region4: #{down_block.2} parent=0 // loop_header_branch
    %11 = sbr.rel (%p9) target = $region8
  $region5: #{down_block.2} parent=0 // loop_body
    %s13 = ssub.s32 %s8, 1
    %s14 = ssub.s32 %s8, 2
    %s15 = sadd.s32 %s8, 1
    %s16 = ssub.s32 %s8, %s15
    %p17 = scmp.eq.s32.totalorder %s16, 0
    %s19 = sadd.s32 %s18, 1
    %s20 = scalar_select %p17, %s18, %s19
    %p23 = pneg %p17
    %p24 = scmp.eq.s32.totalorder %s8, 1
    %p25 = por %p23, %p24
    %p26 = scmp.ne.s32.totalorder %s18, %s21
    %p27 = scmp.eq.s32.totalorder %s8, 0
    %p28 = por %p26, %p27
    %p29 = scmp.ne.s32.totalorder %s18, %s21
    %p30 = scmp.eq.s32.totalorder %s13, 1
    %p31 = por %p29, %p30
    %p32 = scmp.ne.s32.totalorder %s21, %s22
    %p33 = scmp.eq.s32.totalorder %s13, 0
    %p34 = por %p32, %p33
    %p35 = scmp.ne.s32.totalorder %s21, %s22
    %p36 = scmp.eq.s32.totalorder %s14, 1
    %p37 = por %p35, %p36
    %p39 = scmp.ne.s32.totalorder %s22, %s38
    %p40 = scmp.eq.s32.totalorder %s14, 0
    %p41 = por %p39, %p40
    %s43 = sadd.s32 %s42, 1
    %p46 = scmp.eq.s32.totalorder %s8, 1
    %p47 = scmp.ne.s32.totalorder %s42, %s44
    %p48 = scmp.eq.s32.totalorder %s8, 0
    %p49 = por %p47, %p48
    %p50 = scmp.ne.s32.totalorder %s42, %s44
    %p51 = scmp.eq.s32.totalorder %s13, 1
    %p52 = por %p50, %p51
    %p53 = scmp.ne.s32.totalorder %s44, %s45
    %p54 = scmp.eq.s32.totalorder %s13, 0
    %p55 = por %p53, %p54
    %p56 = scmp.ne.s32.totalorder %s44, %s45
    %p57 = scmp.eq.s32.totalorder %s14, 1
    %p58 = por %p56, %p57
    %p60 = scmp.ne.s32.totalorder %s45, %s59
    %p61 = scmp.eq.s32.totalorder %s14, 0
    %p62 = por %p60, %p61
    %s63 = ssub.s32 %s8, %s15
    %p64 = scmp.eq.s32.totalorder %s63, 0
    %s66 = sadd.s32 %s65, 1
    %s67 = scalar_select %p64, %s65, %s66
    %p70 = pneg %p64
    %p71 = scmp.eq.s32.totalorder %s8, 1
    %p72 = por %p70, %p71
    %p73 = scmp.ne.s32.totalorder %s65, %s68
    %p74 = scmp.eq.s32.totalorder %s8, 0
    %p75 = por %p73, %p74
    %p76 = scmp.ne.s32.totalorder %s65, %s68
    %p77 = scmp.eq.s32.totalorder %s13, 1
    %p78 = por %p76, %p77
    %p79 = scmp.ne.s32.totalorder %s68, %s69
    %p80 = scmp.eq.s32.totalorder %s13, 0
    %p81 = por %p79, %p80
    %p82 = scmp.ne.s32.totalorder %s68, %s69
    %p83 = scmp.eq.s32.totalorder %s14, 1
    %p84 = por %p82, %p83
    %p86 = scmp.ne.s32.totalorder %s69, %s85
    %p87 = scmp.eq.s32.totalorder %s14, 0
    %p88 = por %p86, %p87
    %p89 = scmp.le.s32.totalorder 1, %s8
    %p90 = scmp.lt.s32.totalorder %s8, 3
    %p91 = pnand %p89, %p90
    %p92 = pneg %p91
    // Predicated region
    $region9: #{down_block.2} parent=5 // pred_check
      _
    $region10: #{down_block.2} parent=5 // pred_check_branch
      %94 = sbr.rel (%p91) target = $region12
    $region11: #{down_block.2} parent=5 // pred_region
      %s95 = ssub.s32 %s8, 1
      // Predicated region
      $region13: #{down_block.2} parent=11 // pred_check
        %p96 = pneg %p55
      $region14: #{down_block.2} parent=11 // pred_check_branch
        %98 = sbr.rel (%p96) target = $region16
      $region15: #{down_block.2} parent=11 // pred_region
        _
      $region16: #{down_block.2} parent=11 // pred_fallthru
        _
    $region12: #{down_block.2} parent=5 // pred_fallthru
      _
    %p99 = scmp.lt.s32.totalorder %s8, 2
    // Predicated region
    $region17: #{down_block.2} parent=5 // pred_check
      %p100 = pneg %p99
    $region18: #{down_block.2} parent=5 // pred_check_branch
      %102 = sbr.rel (%p100) target = $region20
    $region19: #{down_block.2} parent=5 // pred_region
      // Predicated region
      $region21: #{down_block.2} parent=19 // pred_check
        %p103 = pneg %p28
      $region22: #{down_block.2} parent=19 // pred_check_branch
        %105 = sbr.rel (%p103) target = $region24
      $region23: #{down_block.2} parent=19 // pred_region
        %p106 = scmp.lt.s32.totalorder %s8, 1
        %s107 = scalar_select %p106, %s8, 1
        %s108 = smul.addr %s107, 18
        %s109 = smul.addr %s108, 4
        %s110 = scalar_lea.vmem %s0, %s109
      $region24: #{down_block.2} parent=19 // pred_fallthru
        _
    $region20: #{down_block.2} parent=5 // pred_fallthru
      _
    %p111 = scmp.le.s32.totalorder 1, %s8
    %p112 = scmp.lt.s32.totalorder %s8, 3
    %p113 = pnand %p111, %p112
    %p114 = pneg %p113
    // Predicated region
    $region25: #{down_block.2} parent=5 // pred_check
      _
    $region26: #{down_block.2} parent=5 // pred_check_branch
      %116 = sbr.rel (%p113) target = $region28
    $region27: #{down_block.2} parent=5 // pred_region
      %s117 = ssub.s32 %s8, 1
      %p118 = scmp.lt.s32.totalorder %s13, 1
      %s119 = scalar_select %p118, %s13, 1
      %s120 = smul.addr %s119, 18
      %s121 = smul.addr %s120, 4
      %s122 = scalar_lea.vmem %s0, %s121
      %p123 = pneg %p34
      %p124 = pneg %p31
      %p125 = pneg %p55
      %p126 = pneg %p52
      %p127 = pneg %p81
      %p128 = pneg %p78
      %p129 = scmp.lt.s32.totalorder %s13, 1
      %s130 = scalar_select %p129, %s13, 1
      %s131 = smul.addr %s130, 8
      %s132 = scalar_lea.vmem %s2, %s131
      %p133 = scmp.lt.s32.totalorder %s13, 1
      %s134 = scalar_select %p133, %s13, 1
      %s135 = smul.addr %s134, 18
      %s136 = smul.addr %s135, 4
      %s137 = scalar_lea.vmem %s0, %s136
      %p138 = scmp.lt.s32.totalorder %s13, 1
      %s139 = scalar_select %p138, %s13, 1
      %s140 = smul.addr %s139, 8
      %s141 = scalar_lea.vmem %s2, %s140
      %v143 = vld [vmem:[%s1] sm:$0xf]
      %v144 = vld [vmem:[%s1 + $0x4] sm:$0xf]
      %s145 = scalar_lea.vmem %s1, 8
      %v146 = vld [vmem:[%s145] sm:$0xf]
      %v147 = vld [vmem:[%s145 + $0x4] sm:$0xf]
      %s148 = scalar_lea.vmem %s1, 16
      %v149 = vld [vmem:[%s148] sm:$0xf]
      %v150 = vld [vmem:[%s148 + $0x4] sm:$0xf]
      %s151 = scalar_lea.vmem %s1, 24
      %v152 = vld [vmem:[%s151] sm:$0xf]
      %v153 = vld [vmem:[%s151 + $0x4] sm:$0xf]
      %v154 = vld [vmem:[%s137] sm:$0xf]
      %v155 = vld [vmem:[%s137 + $0x4] sm:$0x1]
      %v158 = vunpack.c.l.b16 %v154
      %v159 = vunpack.c.l.b16 %v155
      %v160 = vpack.c.b16 %v159, %v158
      %v162 = vshrl.u32 %v160, 16
      %v164 = vshll.u32 %v160, 16
      %v166 = vrot.slane %v164, 1
      %v167 = vor.u32 %v162, %v166
      %v170 = vunpack.c.l.b16 %v146
      %v171 = vunpack.c.l.b16 %v147
      %v172 = vpack.c.b16 %v171, %v170
      %vm174 = vcmask 130048
      %v176 = vsel %vm174, %v167, 0
      %178 = vmatprep.subr.bf16.mxu0 0
      %179 = vmatpush1.bf16.msra.mxu0 0
      %180 = vmatprep.subr.bf16.mxu0 0
      %181 = vmatpush1.bf16.msra.mxu0 0
      %182 = vmatprep.subr.bf16.mxu0 0
      %183 = vmatpush1.bf16.msra.mxu0 0
      %184 = vmatprep.subr.bf16.mxu0 0
      %185 = vmatpush1.bf16.msra.mxu0 0
      %186 = vmatprep.subr.bf16.mxu0 0
      %187 = vmatpush1.bf16.msra.mxu0 0
      %188 = vmatprep.subr.bf16.mxu0 0
      %189 = vmatpush1.bf16.msra.mxu0 0
      %190 = vmatprep.subr.bf16.mxu0 0
      %191 = vmatpush1.bf16.msra.mxu0 0
      %192 = vmatprep.subr.bf16.mxu0 0
      %193 = vmatpush1.bf16.msra.mxu0 %v172
      %194 = vmatprep.subr.bf16.mxu0 0
      %195 = vmatpush2.bf16.msra.mxu0 0
      %196 = vmatprep.subr.bf16.mxu0 0
      %197 = vmatpush2.bf16.msra.mxu0 0
      %198 = vmatprep.subr.bf16.mxu0 0
      %199 = vmatpush2.bf16.msra.mxu0 0
      %200 = vmatprep.subr.bf16.mxu0 0
      %201 = vmatpush2.bf16.msra.mxu0 0
      %202 = vmatprep.subr.bf16.mxu0 0
      %203 = vmatpush2.bf16.msra.mxu0 0
      %204 = vmatprep.subr.bf16.mxu0 0
      %205 = vmatpush2.bf16.msra.mxu0 0
      %206 = vmatprep.subr.bf16.mxu0 0
      %207 = vmatpush2.bf16.msra.mxu0 0
      %208 = vmatprep.subr.bf16.mxu0 0
      %209 = vmatpush2.bf16.msra.mxu0 0
      %210 = vmatprep.mubr.bf16.mxu0 0
      %211 = vmatmul.mubr.bf16.gmra.mxu0 %v176
      %v212 = vpop.f32.mrf.mxu0
      %v213 = vadd.f32 0.0, %v212
      %v214 = vpop.f32.mrf.mxu0
      %v215 = vpop.f32.mrf.mxu0
      %v216 = vpop.f32.mrf.mxu0
      %217 = vdwg.mxu0
      %v220 = vunpack.c.l.b16 %v143
      %v221 = vunpack.c.l.b16 %v144
      %v222 = vpack.c.b16 %v221, %v220
      %v225 = vsel %vm174, %v154, 0
      %227 = vmatprep.subr.bf16.mxu0 0
      %228 = vmatpush1.bf16.msra.mxu0 0
      %229 = vmatprep.subr.bf16.mxu0 0
      %230 = vmatpush1.bf16.msra.mxu0 0
      %231 = vmatprep.subr.bf16.mxu0 0
      %232 = vmatpush1.bf16.msra.mxu0 0
      %233 = vmatprep.subr.bf16.mxu0 0
      %234 = vmatpush1.bf16.msra.mxu0 0
      %235 = vmatprep.subr.bf16.mxu0 0
      %236 = vmatpush1.bf16.msra.mxu0 0
      %237 = vmatprep.subr.bf16.mxu0 0
      %238 = vmatpush1.bf16.msra.mxu0 0
      %239 = vmatprep.subr.bf16.mxu0 0
      %240 = vmatpush1.bf16.msra.mxu0 0
      %241 = vmatprep.subr.bf16.mxu0 0
      %242 = vmatpush1.bf16.msra.mxu0 %v222
      %243 = vmatprep.subr.bf16.mxu0 0
      %244 = vmatpush2.bf16.msra.mxu0 0
      %245 = vmatprep.subr.bf16.mxu0 0
      %246 = vmatpush2.bf16.msra.mxu0 0
      %247 = vmatprep.subr.bf16.mxu0 0
      %248 = vmatpush2.bf16.msra.mxu0 0
      %249 = vmatprep.subr.bf16.mxu0 0
      %250 = vmatpush2.bf16.msra.mxu0 0
      %251 = vmatprep.subr.bf16.mxu0 0
      %252 = vmatpush2.bf16.msra.mxu0 0
      %253 = vmatprep.subr.bf16.mxu0 0
      %254 = vmatpush2.bf16.msra.mxu0 0
      %255 = vmatprep.subr.bf16.mxu0 0
      %256 = vmatpush2.bf16.msra.mxu0 0
      %257 = vmatprep.subr.bf16.mxu0 0
      %258 = vmatpush2.bf16.msra.mxu0 0
      %259 = vmatprep.mubr.bf16.mxu0 0
      %260 = vmatmul.mubr.bf16.gmra.mxu0 %v225
      %v261 = vpop.f32.mrf.mxu0
      %v262 = vadd.f32 %v213, %v261
      %v263 = vpop.f32.mrf.mxu0
      %v264 = vpop.f32.mrf.mxu0
      %v265 = vpop.f32.mrf.mxu0
      %266 = vdwg.mxu0
      %s267 = scalar_lea.vmem %s137, 8
      %v268 = vld [vmem:[%s267] sm:$0xf]
      %v271 = vunpack.c.l.b16 %v149
      %v272 = vunpack.c.l.b16 %v150
      %v273 = vpack.c.b16 %v272, %v271
      %v276 = vsel %vm174, %v268, 0
      %278 = vmatprep.subr.bf16.mxu0 0
      %279 = vmatpush1.bf16.msra.mxu0 0
      %280 = vmatprep.subr.bf16.mxu0 0
      %281 = vmatpush1.bf16.msra.mxu0 0
      %282 = vmatprep.subr.bf16.mxu0 0
      %283 = vmatpush1.bf16.msra.mxu0 0
      %284 = vmatprep.subr.bf16.mxu0 0
      %285 = vmatpush1.bf16.msra.mxu0 0
      %286 = vmatprep.subr.bf16.mxu0 0
      %287 = vmatpush1.bf16.msra.mxu0 0
      %288 = vmatprep.subr.bf16.mxu0 0
      %289 = vmatpush1.bf16.msra.mxu0 0
      %290 = vmatprep.subr.bf16.mxu0 0
      %291 = vmatpush1.bf16.msra.mxu0 0
      %292 = vmatprep.subr.bf16.mxu0 0
      %293 = vmatpush1.bf16.msra.mxu0 %v273
      %294 = vmatprep.subr.bf16.mxu0 0
      %295 = vmatpush2.bf16.msra.mxu0 0
      %296 = vmatprep.subr.bf16.mxu0 0
      %297 = vmatpush2.bf16.msra.mxu0 0
      %298 = vmatprep.subr.bf16.mxu0 0
      %299 = vmatpush2.bf16.msra.mxu0 0
      %300 = vmatprep.subr.bf16.mxu0 0
      %301 = vmatpush2.bf16.msra.mxu0 0
      %302 = vmatprep.subr.bf16.mxu0 0
      %303 = vmatpush2.bf16.msra.mxu0 0
      %304 = vmatprep.subr.bf16.mxu0 0
      %305 = vmatpush2.bf16.msra.mxu0 0
      %306 = vmatprep.subr.bf16.mxu0 0
      %307 = vmatpush2.bf16.msra.mxu0 0
      %308 = vmatprep.subr.bf16.mxu0 0
      %309 = vmatpush2.bf16.msra.mxu0 0
      %310 = vmatprep.mubr.bf16.mxu0 0
      %311 = vmatmul.mubr.bf16.gmra.mxu0 %v276
      %v312 = vpop.f32.mrf.mxu0
      %v313 = vadd.f32 0.0, %v312
      %v314 = vpop.f32.mrf.mxu0
      %v315 = vpop.f32.mrf.mxu0
      %v316 = vpop.f32.mrf.mxu0
      %317 = vdwg.mxu0
      %v318 = vadd.f32 %v262, %v313
      %v319 = vld [vmem:[%s267] sm:$0xf]
      %v320 = vld [vmem:[%s267 + $0x4] sm:$0x1]
      %v323 = vunpack.c.l.b16 %v319
      %v324 = vunpack.c.l.b16 %v320
      %v325 = vpack.c.b16 %v324, %v323
      %v327 = vshrl.u32 %v325, 16
      %v329 = vshll.u32 %v325, 16
      %v331 = vrot.slane %v329, 1
      %v332 = vor.u32 %v327, %v331
      %v335 = vunpack.c.l.b16 %v152
      %v336 = vunpack.c.l.b16 %v153
      %v337 = vpack.c.b16 %v336, %v335
      %v340 = vsel %vm174, %v332, 0
      %342 = vmatprep.subr.bf16.mxu0 0
      %343 = vmatpush1.bf16.msra.mxu0 0
      %344 = vmatprep.subr.bf16.mxu0 0
      %345 = vmatpush1.bf16.msra.mxu0 0
      %346 = vmatprep.subr.bf16.mxu0 0
      %347 = vmatpush1.bf16.msra.mxu0 0
      %348 = vmatprep.subr.bf16.mxu0 0
      %349 = vmatpush1.bf16.msra.mxu0 0
      %350 = vmatprep.subr.bf16.mxu0 0
      %351 = vmatpush1.bf16.msra.mxu0 0
      %352 = vmatprep.subr.bf16.mxu0 0
      %353 = vmatpush1.bf16.msra.mxu0 0
      %354 = vmatprep.subr.bf16.mxu0 0
      %355 = vmatpush1.bf16.msra.mxu0 0
      %356 = vmatprep.subr.bf16.mxu0 0
      %357 = vmatpush1.bf16.msra.mxu0 %v337
      %358 = vmatprep.subr.bf16.mxu0 0
      %359 = vmatpush2.bf16.msra.mxu0 0
      %360 = vmatprep.subr.bf16.mxu0 0
      %361 = vmatpush2.bf16.msra.mxu0 0
      %362 = vmatprep.subr.bf16.mxu0 0
      %363 = vmatpush2.bf16.msra.mxu0 0
      %364 = vmatprep.subr.bf16.mxu0 0
      %365 = vmatpush2.bf16.msra.mxu0 0
      %366 = vmatprep.subr.bf16.mxu0 0
      %367 = vmatpush2.bf16.msra.mxu0 0
      %368 = vmatprep.subr.bf16.mxu0 0
      %369 = vmatpush2.bf16.msra.mxu0 0
      %370 = vmatprep.subr.bf16.mxu0 0
      %371 = vmatpush2.bf16.msra.mxu0 0
      %372 = vmatprep.subr.bf16.mxu0 0
      %373 = vmatpush2.bf16.msra.mxu0 0
      %374 = vmatprep.mubr.bf16.mxu0 0
      %375 = vmatmul.mubr.bf16.gmra.mxu0 %v340
      %v376 = vpop.f32.mrf.mxu0
      %v377 = vadd.f32 0.0, %v376
      %v378 = vpop.f32.mrf.mxu0
      %v379 = vpop.f32.mrf.mxu0
      %v380 = vpop.f32.mrf.mxu0
      %381 = vdwg.mxu0
      %v382 = vadd.f32 %v318, %v377
      %v383 = vrot.slane %v382, 4
      %v384 = vadd.f32 %v382, %v383
      %v385 = vrot.slane %v384, 2
      %v386 = vadd.f32 %v384, %v385
      %v387 = vrot.slane %v386, 1
      %v388 = vadd.f32 %v386, %v387
      %v389 = vadd.f32 %v388, 0.0
      %v390 = vmul.f32 %v382, %v382
      %v391 = vrot.slane %v390, 4
      %v392 = vadd.f32 %v390, %v391
      %v393 = vrot.slane %v392, 2
      %v394 = vadd.f32 %v392, %v393
      %v395 = vrot.slane %v394, 1
      %v396 = vadd.f32 %v394, %v395
      %v397 = vadd.f32 %v396, 0.0
      %398 = vmatprep.subr.bf16.mxu0 0
      %399 = vmatpush1.bf16.msra.mxu0 0
      %400 = vmatprep.subr.bf16.mxu0 0
      %401 = vmatpush1.bf16.msra.mxu0 0
      %402 = vmatprep.subr.bf16.mxu0 0
      %403 = vmatpush1.bf16.msra.mxu0 0
      %404 = vmatprep.subr.bf16.mxu0 0
      %405 = vmatpush1.bf16.msra.mxu0 0
      %406 = vmatprep.subr.bf16.mxu0 0
      %407 = vmatpush1.bf16.msra.mxu0 0
      %408 = vmatprep.subr.bf16.mxu0 0
      %409 = vmatpush1.bf16.msra.mxu0 0
      %410 = vmatprep.subr.bf16.mxu0 0
      %411 = vmatpush1.bf16.msra.mxu0 0
      %412 = vmatprep.subr.bf16.mxu0 0
      %413 = vmatpush1.bf16.msra.mxu0 %v172
      %414 = vmatprep.subr.bf16.mxu0 0
      %415 = vmatpush2.bf16.msra.mxu0 0
      %416 = vmatprep.subr.bf16.mxu0 0
      %417 = vmatpush2.bf16.msra.mxu0 0
      %418 = vmatprep.subr.bf16.mxu0 0
      %419 = vmatpush2.bf16.msra.mxu0 0
      %420 = vmatprep.subr.bf16.mxu0 0
      %421 = vmatpush2.bf16.msra.mxu0 0
      %422 = vmatprep.subr.bf16.mxu0 0
      %423 = vmatpush2.bf16.msra.mxu0 0
      %424 = vmatprep.subr.bf16.mxu0 0
      %425 = vmatpush2.bf16.msra.mxu0 0
      %426 = vmatprep.subr.bf16.mxu0 0
      %427 = vmatpush2.bf16.msra.mxu0 0
      %428 = vmatprep.subr.bf16.mxu0 0
      %429 = vmatpush2.bf16.msra.mxu0 0
      %430 = vmatprep.mubr.bf16.mxu0 0
      %431 = vmatmul.mubr.bf16.gmra.mxu0 %v340
      %v432 = vpop.f32.mrf.mxu0
      %v433 = vadd.f32 0.0, %v432
      %v434 = vpop.f32.mrf.mxu0
      %v435 = vpop.f32.mrf.mxu0
      %v436 = vpop.f32.mrf.mxu0
      %437 = vdwg.mxu0
      %438 = vmatprep.subr.bf16.mxu0 0
      %439 = vmatpush1.bf16.msra.mxu0 0
      %440 = vmatprep.subr.bf16.mxu0 0
      %441 = vmatpush1.bf16.msra.mxu0 0
      %442 = vmatprep.subr.bf16.mxu0 0
      %443 = vmatpush1.bf16.msra.mxu0 0
      %444 = vmatprep.subr.bf16.mxu0 0
      %445 = vmatpush1.bf16.msra.mxu0 0
      %446 = vmatprep.subr.bf16.mxu0 0
      %447 = vmatpush1.bf16.msra.mxu0 0
      %448 = vmatprep.subr.bf16.mxu0 0
      %449 = vmatpush1.bf16.msra.mxu0 0
      %450 = vmatprep.subr.bf16.mxu0 0
      %451 = vmatpush1.bf16.msra.mxu0 0
      %452 = vmatprep.subr.bf16.mxu0 0
      %453 = vmatpush1.bf16.msra.mxu0 %v222
      %454 = vmatprep.subr.bf16.mxu0 0
      %455 = vmatpush2.bf16.msra.mxu0 0
      %456 = vmatprep.subr.bf16.mxu0 0
      %457 = vmatpush2.bf16.msra.mxu0 0
      %458 = vmatprep.subr.bf16.mxu0 0
      %459 = vmatpush2.bf16.msra.mxu0 0
      %460 = vmatprep.subr.bf16.mxu0 0
      %461 = vmatpush2.bf16.msra.mxu0 0
      %462 = vmatprep.subr.bf16.mxu0 0
      %463 = vmatpush2.bf16.msra.mxu0 0
      %464 = vmatprep.subr.bf16.mxu0 0
      %465 = vmatpush2.bf16.msra.mxu0 0
      %466 = vmatprep.subr.bf16.mxu0 0
      %467 = vmatpush2.bf16.msra.mxu0 0
      %468 = vmatprep.subr.bf16.mxu0 0
      %469 = vmatpush2.bf16.msra.mxu0 0
      %470 = vmatprep.mubr.bf16.mxu0 0
      %471 = vmatmul.mubr.bf16.gmra.mxu0 %v276
      %v472 = vpop.f32.mrf.mxu0
      %v473 = vadd.f32 %v433, %v472
      %v474 = vpop.f32.mrf.mxu0
      %v475 = vpop.f32.mrf.mxu0
      %v476 = vpop.f32.mrf.mxu0
      %477 = vdwg.mxu0
      %s478 = scalar_lea.vmem %s137, 16
      %v479 = vld [vmem:[%s478] sm:$0xf]
      %v481 = vsel %vm174, %v479, 0
      %483 = vmatprep.subr.bf16.mxu0 0
      %484 = vmatpush1.bf16.msra.mxu0 0
      %485 = vmatprep.subr.bf16.mxu0 0
      %486 = vmatpush1.bf16.msra.mxu0 0
      %487 = vmatprep.subr.bf16.mxu0 0
      %488 = vmatpush1.bf16.msra.mxu0 0
      %489 = vmatprep.subr.bf16.mxu0 0
      %490 = vmatpush1.bf16.msra.mxu0 0
      %491 = vmatprep.subr.bf16.mxu0 0
      %492 = vmatpush1.bf16.msra.mxu0 0
      %493 = vmatprep.subr.bf16.mxu0 0
      %494 = vmatpush1.bf16.msra.mxu0 0
      %495 = vmatprep.subr.bf16.mxu0 0
      %496 = vmatpush1.bf16.msra.mxu0 0
      %497 = vmatprep.subr.bf16.mxu0 0
      %498 = vmatpush1.bf16.msra.mxu0 %v273
      %499 = vmatprep.subr.bf16.mxu0 0
      %500 = vmatpush2.bf16.msra.mxu0 0
      %501 = vmatprep.subr.bf16.mxu0 0
      %502 = vmatpush2.bf16.msra.mxu0 0
      %503 = vmatprep.subr.bf16.mxu0 0
      %504 = vmatpush2.bf16.msra.mxu0 0
      %505 = vmatprep.subr.bf16.mxu0 0
      %506 = vmatpush2.bf16.msra.mxu0 0
      %507 = vmatprep.subr.bf16.mxu0 0
      %508 = vmatpush2.bf16.msra.mxu0 0
      %509 = vmatprep.subr.bf16.mxu0 0
      %510 = vmatpush2.bf16.msra.mxu0 0
      %511 = vmatprep.subr.bf16.mxu0 0
      %512 = vmatpush2.bf16.msra.mxu0 0
      %513 = vmatprep.subr.bf16.mxu0 0
      %514 = vmatpush2.bf16.msra.mxu0 0
      %515 = vmatprep.mubr.bf16.mxu0 0
      %516 = vmatmul.mubr.bf16.gmra.mxu0 %v481
      %v517 = vpop.f32.mrf.mxu0
      %v518 = vadd.f32 0.0, %v517
      %v519 = vpop.f32.mrf.mxu0
      %v520 = vpop.f32.mrf.mxu0
      %v521 = vpop.f32.mrf.mxu0
      %522 = vdwg.mxu0
      %v523 = vadd.f32 %v473, %v518
      %v524 = vld [vmem:[%s478] sm:$0xf]
      %v525 = vld [vmem:[%s478 + $0x4] sm:$0x1]
      %v528 = vunpack.c.l.b16 %v524
      %v529 = vunpack.c.l.b16 %v525
      %v530 = vpack.c.b16 %v529, %v528
      %v532 = vshrl.u32 %v530, 16
      %v534 = vshll.u32 %v530, 16
      %v536 = vrot.slane %v534, 1
      %v537 = vor.u32 %v532, %v536
      %v539 = vsel %vm174, %v537, 0
      %541 = vmatprep.subr.bf16.mxu0 0
      %542 = vmatpush1.bf16.msra.mxu0 0
      %543 = vmatprep.subr.bf16.mxu0 0
      %544 = vmatpush1.bf16.msra.mxu0 0
      %545 = vmatprep.subr.bf16.mxu0 0
      %546 = vmatpush1.bf16.msra.mxu0 0
      %547 = vmatprep.subr.bf16.mxu0 0
      %548 = vmatpush1.bf16.msra.mxu0 0
      %549 = vmatprep.subr.bf16.mxu0 0
      %550 = vmatpush1.bf16.msra.mxu0 0
      %551 = vmatprep.subr.bf16.mxu0 0
      %552 = vmatpush1.bf16.msra.mxu0 0
      %553 = vmatprep.subr.bf16.mxu0 0
      %554 = vmatpush1.bf16.msra.mxu0 0
      %555 = vmatprep.subr.bf16.mxu0 0
      %556 = vmatpush1.bf16.msra.mxu0 %v337
      %557 = vmatprep.subr.bf16.mxu0 0
      %558 = vmatpush2.bf16.msra.mxu0 0
      %559 = vmatprep.subr.bf16.mxu0 0
      %560 = vmatpush2.bf16.msra.mxu0 0
      %561 = vmatprep.subr.bf16.mxu0 0
      %562 = vmatpush2.bf16.msra.mxu0 0
      %563 = vmatprep.subr.bf16.mxu0 0
      %564 = vmatpush2.bf16.msra.mxu0 0
      %565 = vmatprep.subr.bf16.mxu0 0
      %566 = vmatpush2.bf16.msra.mxu0 0
      %567 = vmatprep.subr.bf16.mxu0 0
      %568 = vmatpush2.bf16.msra.mxu0 0
      %569 = vmatprep.subr.bf16.mxu0 0
      %570 = vmatpush2.bf16.msra.mxu0 0
      %571 = vmatprep.subr.bf16.mxu0 0
      %572 = vmatpush2.bf16.msra.mxu0 0
      %573 = vmatprep.mubr.bf16.mxu0 0
      %574 = vmatmul.mubr.bf16.gmra.mxu0 %v539
      %v575 = vpop.f32.mrf.mxu0
      %v576 = vadd.f32 0.0, %v575
      %v577 = vpop.f32.mrf.mxu0
      %v578 = vpop.f32.mrf.mxu0
      %v579 = vpop.f32.mrf.mxu0
      %580 = vdwg.mxu0
      %v581 = vadd.f32 %v523, %v576
      %v582 = vrot.slane %v581, 4
      %v583 = vadd.f32 %v581, %v582
      %v584 = vrot.slane %v583, 2
      %v585 = vadd.f32 %v583, %v584
      %v586 = vrot.slane %v585, 1
      %v587 = vadd.f32 %v585, %v586
      %v588 = vadd.f32 %v389, %v587
      %v589 = vmul.f32 %v581, %v581
      %v590 = vrot.slane %v589, 4
      %v591 = vadd.f32 %v589, %v590
      %v592 = vrot.slane %v591, 2
      %v593 = vadd.f32 %v591, %v592
      %v594 = vrot.slane %v593, 1
      %v595 = vadd.f32 %v593, %v594
      %v596 = vadd.f32 %v397, %v595
      %597 = vmatprep.subr.bf16.mxu0 0
      %598 = vmatpush1.bf16.msra.mxu0 0
      %599 = vmatprep.subr.bf16.mxu0 0
      %600 = vmatpush1.bf16.msra.mxu0 0
      %601 = vmatprep.subr.bf16.mxu0 0
      %602 = vmatpush1.bf16.msra.mxu0 0
      %603 = vmatprep.subr.bf16.mxu0 0
      %604 = vmatpush1.bf16.msra.mxu0 0
      %605 = vmatprep.subr.bf16.mxu0 0
      %606 = vmatpush1.bf16.msra.mxu0 0
      %607 = vmatprep.subr.bf16.mxu0 0
      %608 = vmatpush1.bf16.msra.mxu0 0
      %609 = vmatprep.subr.bf16.mxu0 0
      %610 = vmatpush1.bf16.msra.mxu0 0
      %611 = vmatprep.subr.bf16.mxu0 0
      %612 = vmatpush1.bf16.msra.mxu0 %v172
      %613 = vmatprep.subr.bf16.mxu0 0
      %614 = vmatpush2.bf16.msra.mxu0 0
      %615 = vmatprep.subr.bf16.mxu0 0
      %616 = vmatpush2.bf16.msra.mxu0 0
      %617 = vmatprep.subr.bf16.mxu0 0
      %618 = vmatpush2.bf16.msra.mxu0 0
      %619 = vmatprep.subr.bf16.mxu0 0
      %620 = vmatpush2.bf16.msra.mxu0 0
      %621 = vmatprep.subr.bf16.mxu0 0
      %622 = vmatpush2.bf16.msra.mxu0 0
      %623 = vmatprep.subr.bf16.mxu0 0
      %624 = vmatpush2.bf16.msra.mxu0 0
      %625 = vmatprep.subr.bf16.mxu0 0
      %626 = vmatpush2.bf16.msra.mxu0 0
      %627 = vmatprep.subr.bf16.mxu0 0
      %628 = vmatpush2.bf16.msra.mxu0 0
      %629 = vmatprep.mubr.bf16.mxu0 0
      %630 = vmatmul.mubr.bf16.gmra.mxu0 %v539
      %v631 = vpop.f32.mrf.mxu0
      %v632 = vadd.f32 0.0, %v631
      %v633 = vpop.f32.mrf.mxu0
      %v634 = vpop.f32.mrf.mxu0
      %v635 = vpop.f32.mrf.mxu0
      %636 = vdwg.mxu0
      %637 = vmatprep.subr.bf16.mxu0 0
      %638 = vmatpush1.bf16.msra.mxu0 0
      %639 = vmatprep.subr.bf16.mxu0 0
      %640 = vmatpush1.bf16.msra.mxu0 0
      %641 = vmatprep.subr.bf16.mxu0 0
      %642 = vmatpush1.bf16.msra.mxu0 0
      %643 = vmatprep.subr.bf16.mxu0 0
      %644 = vmatpush1.bf16.msra.mxu0 0
      %645 = vmatprep.subr.bf16.mxu0 0
      %646 = vmatpush1.bf16.msra.mxu0 0
      %647 = vmatprep.subr.bf16.mxu0 0
      %648 = vmatpush1.bf16.msra.mxu0 0
      %649 = vmatprep.subr.bf16.mxu0 0
      %650 = vmatpush1.bf16.msra.mxu0 0
      %651 = vmatprep.subr.bf16.mxu0 0
      %652 = vmatpush1.bf16.msra.mxu0 %v222
      %653 = vmatprep.subr.bf16.mxu0 0
      %654 = vmatpush2.bf16.msra.mxu0 0
      %655 = vmatprep.subr.bf16.mxu0 0
      %656 = vmatpush2.bf16.msra.mxu0 0
      %657 = vmatprep.subr.bf16.mxu0 0
      %658 = vmatpush2.bf16.msra.mxu0 0
      %659 = vmatprep.subr.bf16.mxu0 0
      %660 = vmatpush2.bf16.msra.mxu0 0
      %661 = vmatprep.subr.bf16.mxu0 0
      %662 = vmatpush2.bf16.msra.mxu0 0
      %663 = vmatprep.subr.bf16.mxu0 0
      %664 = vmatpush2.bf16.msra.mxu0 0
      %665 = vmatprep.subr.bf16.mxu0 0
      %666 = vmatpush2.bf16.msra.mxu0 0
      %667 = vmatprep.subr.bf16.mxu0 0
      %668 = vmatpush2.bf16.msra.mxu0 0
      %669 = vmatprep.mubr.bf16.mxu0 0
      %670 = vmatmul.mubr.bf16.gmra.mxu0 %v481
      %v671 = vpop.f32.mrf.mxu0
      %v672 = vadd.f32 %v632, %v671
      %v673 = vpop.f32.mrf.mxu0
      %v674 = vpop.f32.mrf.mxu0
      %v675 = vpop.f32.mrf.mxu0
      %676 = vdwg.mxu0
      %s677 = scalar_lea.vmem %s137, 24
      %v678 = vld [vmem:[%s677] sm:$0xf]
      %v680 = vsel %vm174, %v678, 0
      %682 = vmatprep.subr.bf16.mxu0 0
      %683 = vmatpush1.bf16.msra.mxu0 0
      %684 = vmatprep.subr.bf16.mxu0 0
      %685 = vmatpush1.bf16.msra.mxu0 0
      %686 = vmatprep.subr.bf16.mxu0 0
      %687 = vmatpush1.bf16.msra.mxu0 0
      %688 = vmatprep.subr.bf16.mxu0 0
      %689 = vmatpush1.bf16.msra.mxu0 0
      %690 = vmatprep.subr.bf16.mxu0 0
      %691 = vmatpush1.bf16.msra.mxu0 0
      %692 = vmatprep.subr.bf16.mxu0 0
      %693 = vmatpush1.bf16.msra.mxu0 0
      %694 = vmatprep.subr.bf16.mxu0 0
      %695 = vmatpush1.bf16.msra.mxu0 0
      %696 = vmatprep.subr.bf16.mxu0 0
      %697 = vmatpush1.bf16.msra.mxu0 %v273
      %698 = vmatprep.subr.bf16.mxu0 0
      %699 = vmatpush2.bf16.msra.mxu0 0
      %700 = vmatprep.subr.bf16.mxu0 0
      %701 = vmatpush2.bf16.msra.mxu0 0
      %702 = vmatprep.subr.bf16.mxu0 0
      %703 = vmatpush2.bf16.msra.mxu0 0
      %704 = vmatprep.subr.bf16.mxu0 0
      %705 = vmatpush2.bf16.msra.mxu0 0
      %706 = vmatprep.subr.bf16.mxu0 0
      %707 = vmatpush2.bf16.msra.mxu0 0
      %708 = vmatprep.subr.bf16.mxu0 0
      %709 = vmatpush2.bf16.msra.mxu0 0
      %710 = vmatprep.subr.bf16.mxu0 0
      %711 = vmatpush2.bf16.msra.mxu0 0
      %712 = vmatprep.subr.bf16.mxu0 0
      %713 = vmatpush2.bf16.msra.mxu0 0
      %714 = vmatprep.mubr.bf16.mxu0 0
      %715 = vmatmul.mubr.bf16.gmra.mxu0 %v680
      %v716 = vpop.f32.mrf.mxu0
      %v717 = vadd.f32 0.0, %v716
      %v718 = vpop.f32.mrf.mxu0
      %v719 = vpop.f32.mrf.mxu0
      %v720 = vpop.f32.mrf.mxu0
      %721 = vdwg.mxu0
      %v722 = vadd.f32 %v672, %v717
      %v723 = vld [vmem:[%s677] sm:$0xf]
      %v724 = vld [vmem:[%s677 + $0x4] sm:$0x1]
      %v727 = vunpack.c.l.b16 %v723
      %v728 = vunpack.c.l.b16 %v724
      %v729 = vpack.c.b16 %v728, %v727
      %v731 = vshrl.u32 %v729, 16
      %v733 = vshll.u32 %v729, 16
      %v735 = vrot.slane %v733, 1
      %v736 = vor.u32 %v731, %v735
      %v738 = vsel %vm174, %v736, 0
      %740 = vmatprep.subr.bf16.mxu0 0
      %741 = vmatpush1.bf16.msra.mxu0 0
      %742 = vmatprep.subr.bf16.mxu0 0
      %743 = vmatpush1.bf16.msra.mxu0 0
      %744 = vmatprep.subr.bf16.mxu0 0
      %745 = vmatpush1.bf16.msra.mxu0 0
      %746 = vmatprep.subr.bf16.mxu0 0
      %747 = vmatpush1.bf16.msra.mxu0 0
      %748 = vmatprep.subr.bf16.mxu0 0
      %749 = vmatpush1.bf16.msra.mxu0 0
      %750 = vmatprep.subr.bf16.mxu0 0
      %751 = vmatpush1.bf16.msra.mxu0 0
      %752 = vmatprep.subr.bf16.mxu0 0
      %753 = vmatpush1.bf16.msra.mxu0 0
      %754 = vmatprep.subr.bf16.mxu0 0
      %755 = vmatpush1.bf16.msra.mxu0 %v337
      %756 = vmatprep.subr.bf16.mxu0 0
      %757 = vmatpush2.bf16.msra.mxu0 0
      %758 = vmatprep.subr.bf16.mxu0 0
      %759 = vmatpush2.bf16.msra.mxu0 0
      %760 = vmatprep.subr.bf16.mxu0 0
      %761 = vmatpush2.bf16.msra.mxu0 0
      %762 = vmatprep.subr.bf16.mxu0 0
      %763 = vmatpush2.bf16.msra.mxu0 0
      %764 = vmatprep.subr.bf16.mxu0 0
      %765 = vmatpush2.bf16.msra.mxu0 0
      %766 = vmatprep.subr.bf16.mxu0 0
      %767 = vmatpush2.bf16.msra.mxu0 0
      %768 = vmatprep.subr.bf16.mxu0 0
      %769 = vmatpush2.bf16.msra.mxu0 0
      %770 = vmatprep.subr.bf16.mxu0 0
      %771 = vmatpush2.bf16.msra.mxu0 0
      %772 = vmatprep.mubr.bf16.mxu0 0
      %773 = vmatmul.mubr.bf16.gmra.mxu0 %v738
      %v774 = vpop.f32.mrf.mxu0
      %v775 = vadd.f32 0.0, %v774
      %v776 = vpop.f32.mrf.mxu0
      %v777 = vpop.f32.mrf.mxu0
      %v778 = vpop.f32.mrf.mxu0
      %779 = vdwg.mxu0
      %v780 = vadd.f32 %v722, %v775
      %v781 = vrot.slane %v780, 4
      %v782 = vadd.f32 %v780, %v781
      %v783 = vrot.slane %v782, 2
      %v784 = vadd.f32 %v782, %v783
      %v785 = vrot.slane %v784, 1
      %v786 = vadd.f32 %v784, %v785
      %v787 = vadd.f32 %v588, %v786
      %v788 = vmul.f32 %v780, %v780
      %v789 = vrot.slane %v788, 4
      %v790 = vadd.f32 %v788, %v789
      %v791 = vrot.slane %v790, 2
      %v792 = vadd.f32 %v790, %v791
      %v793 = vrot.slane %v792, 1
      %v794 = vadd.f32 %v792, %v793
      %v795 = vadd.f32 %v596, %v794
      %796 = vmatprep.subr.bf16.mxu0 0
      %797 = vmatpush1.bf16.msra.mxu0 0
      %798 = vmatprep.subr.bf16.mxu0 0
      %799 = vmatpush1.bf16.msra.mxu0 0
      %800 = vmatprep.subr.bf16.mxu0 0
      %801 = vmatpush1.bf16.msra.mxu0 0
      %802 = vmatprep.subr.bf16.mxu0 0
      %803 = vmatpush1.bf16.msra.mxu0 0
      %804 = vmatprep.subr.bf16.mxu0 0
      %805 = vmatpush1.bf16.msra.mxu0 0
      %806 = vmatprep.subr.bf16.mxu0 0
      %807 = vmatpush1.bf16.msra.mxu0 0
      %808 = vmatprep.subr.bf16.mxu0 0
      %809 = vmatpush1.bf16.msra.mxu0 0
      %810 = vmatprep.subr.bf16.mxu0 0
      %811 = vmatpush1.bf16.msra.mxu0 %v172
      %812 = vmatprep.subr.bf16.mxu0 0
      %813 = vmatpush2.bf16.msra.mxu0 0
      %814 = vmatprep.subr.bf16.mxu0 0
      %815 = vmatpush2.bf16.msra.mxu0 0
      %816 = vmatprep.subr.bf16.mxu0 0
      %817 = vmatpush2.bf16.msra.mxu0 0
      %818 = vmatprep.subr.bf16.mxu0 0
      %819 = vmatpush2.bf16.msra.mxu0 0
      %820 = vmatprep.subr.bf16.mxu0 0
      %821 = vmatpush2.bf16.msra.mxu0 0
      %822 = vmatprep.subr.bf16.mxu0 0
      %823 = vmatpush2.bf16.msra.mxu0 0
      %824 = vmatprep.subr.bf16.mxu0 0
      %825 = vmatpush2.bf16.msra.mxu0 0
      %826 = vmatprep.subr.bf16.mxu0 0
      %827 = vmatpush2.bf16.msra.mxu0 0
      %828 = vmatprep.mubr.bf16.mxu0 0
      %829 = vmatmul.mubr.bf16.gmra.mxu0 %v738
      %v830 = vpop.f32.mrf.mxu0
      %v831 = vadd.f32 0.0, %v830
      %v832 = vpop.f32.mrf.mxu0
      %v833 = vpop.f32.mrf.mxu0
      %v834 = vpop.f32.mrf.mxu0
      %835 = vdwg.mxu0
      %836 = vmatprep.subr.bf16.mxu0 0
      %837 = vmatpush1.bf16.msra.mxu0 0
      %838 = vmatprep.subr.bf16.mxu0 0
      %839 = vmatpush1.bf16.msra.mxu0 0
      %840 = vmatprep.subr.bf16.mxu0 0
      %841 = vmatpush1.bf16.msra.mxu0 0
      %842 = vmatprep.subr.bf16.mxu0 0
      %843 = vmatpush1.bf16.msra.mxu0 0
      %844 = vmatprep.subr.bf16.mxu0 0
      %845 = vmatpush1.bf16.msra.mxu0 0
      %846 = vmatprep.subr.bf16.mxu0 0
      %847 = vmatpush1.bf16.msra.mxu0 0
      %848 = vmatprep.subr.bf16.mxu0 0
      %849 = vmatpush1.bf16.msra.mxu0 0
      %850 = vmatprep.subr.bf16.mxu0 0
      %851 = vmatpush1.bf16.msra.mxu0 %v222
      %852 = vmatprep.subr.bf16.mxu0 0
      %853 = vmatpush2.bf16.msra.mxu0 0
      %854 = vmatprep.subr.bf16.mxu0 0
      %855 = vmatpush2.bf16.msra.mxu0 0
      %856 = vmatprep.subr.bf16.mxu0 0
      %857 = vmatpush2.bf16.msra.mxu0 0
      %858 = vmatprep.subr.bf16.mxu0 0
      %859 = vmatpush2.bf16.msra.mxu0 0
      %860 = vmatprep.subr.bf16.mxu0 0
      %861 = vmatpush2.bf16.msra.mxu0 0
      %862 = vmatprep.subr.bf16.mxu0 0
      %863 = vmatpush2.bf16.msra.mxu0 0
      %864 = vmatprep.subr.bf16.mxu0 0
      %865 = vmatpush2.bf16.msra.mxu0 0
      %866 = vmatprep.subr.bf16.mxu0 0
      %867 = vmatpush2.bf16.msra.mxu0 0
      %868 = vmatprep.mubr.bf16.mxu0 0
      %869 = vmatmul.mubr.bf16.gmra.mxu0 %v680
      %v870 = vpop.f32.mrf.mxu0
      %v871 = vadd.f32 %v831, %v870
      %v872 = vpop.f32.mrf.mxu0
      %v873 = vpop.f32.mrf.mxu0
      %v874 = vpop.f32.mrf.mxu0
      %875 = vdwg.mxu0
      %s876 = scalar_lea.vmem %s137, 32
      %v877 = vld [vmem:[%s876] sm:$0xf]
      %v879 = vsel %vm174, %v877, 0
      %881 = vmatprep.subr.bf16.mxu0 0
      %882 = vmatpush1.bf16.msra.mxu0 0
      %883 = vmatprep.subr.bf16.mxu0 0
      %884 = vmatpush1.bf16.msra.mxu0 0
      %885 = vmatprep.subr.bf16.mxu0 0
      %886 = vmatpush1.bf16.msra.mxu0 0
      %887 = vmatprep.subr.bf16.mxu0 0
      %888 = vmatpush1.bf16.msra.mxu0 0
      %889 = vmatprep.subr.bf16.mxu0 0
      %890 = vmatpush1.bf16.msra.mxu0 0
      %891 = vmatprep.subr.bf16.mxu0 0
      %892 = vmatpush1.bf16.msra.mxu0 0
      %893 = vmatprep.subr.bf16.mxu0 0
      %894 = vmatpush1.bf16.msra.mxu0 0
      %895 = vmatprep.subr.bf16.mxu0 0
      %896 = vmatpush1.bf16.msra.mxu0 %v273
      %897 = vmatprep.subr.bf16.mxu0 0
      %898 = vmatpush2.bf16.msra.mxu0 0
      %899 = vmatprep.subr.bf16.mxu0 0
      %900 = vmatpush2.bf16.msra.mxu0 0
      %901 = vmatprep.subr.bf16.mxu0 0
      %902 = vmatpush2.bf16.msra.mxu0 0
      %903 = vmatprep.subr.bf16.mxu0 0
      %904 = vmatpush2.bf16.msra.mxu0 0
      %905 = vmatprep.subr.bf16.mxu0 0
      %906 = vmatpush2.bf16.msra.mxu0 0
      %907 = vmatprep.subr.bf16.mxu0 0
      %908 = vmatpush2.bf16.msra.mxu0 0
      %909 = vmatprep.subr.bf16.mxu0 0
      %910 = vmatpush2.bf16.msra.mxu0 0
      %911 = vmatprep.subr.bf16.mxu0 0
      %912 = vmatpush2.bf16.msra.mxu0 0
      %913 = vmatprep.mubr.bf16.mxu0 0
      %914 = vmatmul.mubr.bf16.gmra.mxu0 %v879
      %v915 = vpop.f32.mrf.mxu0
      %v916 = vadd.f32 0.0, %v915
      %v917 = vpop.f32.mrf.mxu0
      %v918 = vpop.f32.mrf.mxu0
      %v919 = vpop.f32.mrf.mxu0
      %920 = vdwg.mxu0
      %v921 = vadd.f32 %v871, %v916
      %v922 = vld [vmem:[%s876] sm:$0xf]
      %v923 = vld [vmem:[%s876 + $0x4] sm:$0x1]
      %v926 = vunpack.c.l.b16 %v922
      %v927 = vunpack.c.l.b16 %v923
      %v928 = vpack.c.b16 %v927, %v926
      %v930 = vshrl.u32 %v928, 16
      %v932 = vshll.u32 %v928, 16
      %v934 = vrot.slane %v932, 1
      %v935 = vor.u32 %v930, %v934
      %v937 = vsel %vm174, %v935, 0
      %939 = vmatprep.subr.bf16.mxu0 0
      %940 = vmatpush1.bf16.msra.mxu0 0
      %941 = vmatprep.subr.bf16.mxu0 0
      %942 = vmatpush1.bf16.msra.mxu0 0
      %943 = vmatprep.subr.bf16.mxu0 0
      %944 = vmatpush1.bf16.msra.mxu0 0
      %945 = vmatprep.subr.bf16.mxu0 0
      %946 = vmatpush1.bf16.msra.mxu0 0
      %947 = vmatprep.subr.bf16.mxu0 0
      %948 = vmatpush1.bf16.msra.mxu0 0
      %949 = vmatprep.subr.bf16.mxu0 0
      %950 = vmatpush1.bf16.msra.mxu0 0
      %951 = vmatprep.subr.bf16.mxu0 0
      %952 = vmatpush1.bf16.msra.mxu0 0
      %953 = vmatprep.subr.bf16.mxu0 0
      %954 = vmatpush1.bf16.msra.mxu0 %v337
      %955 = vmatprep.subr.bf16.mxu0 0
      %956 = vmatpush2.bf16.msra.mxu0 0
      %957 = vmatprep.subr.bf16.mxu0 0
      %958 = vmatpush2.bf16.msra.mxu0 0
      %959 = vmatprep.subr.bf16.mxu0 0
      %960 = vmatpush2.bf16.msra.mxu0 0
      %961 = vmatprep.subr.bf16.mxu0 0
      %962 = vmatpush2.bf16.msra.mxu0 0
      %963 = vmatprep.subr.bf16.mxu0 0
      %964 = vmatpush2.bf16.msra.mxu0 0
      %965 = vmatprep.subr.bf16.mxu0 0
      %966 = vmatpush2.bf16.msra.mxu0 0
      %967 = vmatprep.subr.bf16.mxu0 0
      %968 = vmatpush2.bf16.msra.mxu0 0
      %969 = vmatprep.subr.bf16.mxu0 0
      %970 = vmatpush2.bf16.msra.mxu0 0
      %971 = vmatprep.mubr.bf16.mxu0 0
      %972 = vmatmul.mubr.bf16.gmra.mxu0 %v937
      %v973 = vpop.f32.mrf.mxu0
      %v974 = vadd.f32 0.0, %v973
      %v975 = vpop.f32.mrf.mxu0
      %v976 = vpop.f32.mrf.mxu0
      %v977 = vpop.f32.mrf.mxu0
      %978 = vdwg.mxu0
      %v979 = vadd.f32 %v921, %v974
      %v980 = vrot.slane %v979, 4
      %v981 = vadd.f32 %v979, %v980
      %v982 = vrot.slane %v981, 2
      %v983 = vadd.f32 %v981, %v982
      %v984 = vrot.slane %v983, 1
      %v985 = vadd.f32 %v983, %v984
      %v986 = vadd.f32 %v787, %v985
      %v987 = vmul.f32 %v979, %v979
      %v988 = vrot.slane %v987, 4
      %v989 = vadd.f32 %v987, %v988
      %v990 = vrot.slane %v989, 2
      %v991 = vadd.f32 %v989, %v990
      %v992 = vrot.slane %v991, 1
      %v993 = vadd.f32 %v991, %v992
      %v994 = vadd.f32 %v795, %v993
      %995 = vmatprep.subr.bf16.mxu0 0
      %996 = vmatpush1.bf16.msra.mxu0 0
      %997 = vmatprep.subr.bf16.mxu0 0
      %998 = vmatpush1.bf16.msra.mxu0 0
      %999 = vmatprep.subr.bf16.mxu0 0
      %1000 = vmatpush1.bf16.msra.mxu0 0
      %1001 = vmatprep.subr.bf16.mxu0 0
      %1002 = vmatpush1.bf16.msra.mxu0 0
      %1003 = vmatprep.subr.bf16.mxu0 0
      %1004 = vmatpush1.bf16.msra.mxu0 0
      %1005 = vmatprep.subr.bf16.mxu0 0
      %1006 = vmatpush1.bf16.msra.mxu0 0
      %1007 = vmatprep.subr.bf16.mxu0 0
      %1008 = vmatpush1.bf16.msra.mxu0 0
      %1009 = vmatprep.subr.bf16.mxu0 0
      %1010 = vmatpush1.bf16.msra.mxu0 %v172
      %1011 = vmatprep.subr.bf16.mxu0 0
      %1012 = vmatpush2.bf16.msra.mxu0 0
      %1013 = vmatprep.subr.bf16.mxu0 0
      %1014 = vmatpush2.bf16.msra.mxu0 0
      %1015 = vmatprep.subr.bf16.mxu0 0
      %1016 = vmatpush2.bf16.msra.mxu0 0
      %1017 = vmatprep.subr.bf16.mxu0 0
      %1018 = vmatpush2.bf16.msra.mxu0 0
      %1019 = vmatprep.subr.bf16.mxu0 0
      %1020 = vmatpush2.bf16.msra.mxu0 0
      %1021 = vmatprep.subr.bf16.mxu0 0
      %1022 = vmatpush2.bf16.msra.mxu0 0
      %1023 = vmatprep.subr.bf16.mxu0 0
      %1024 = vmatpush2.bf16.msra.mxu0 0
      %1025 = vmatprep.subr.bf16.mxu0 0
      %1026 = vmatpush2.bf16.msra.mxu0 0
      %1027 = vmatprep.mubr.bf16.mxu0 0
      %1028 = vmatmul.mubr.bf16.gmra.mxu0 %v937
      %v1029 = vpop.f32.mrf.mxu0
      %v1030 = vadd.f32 0.0, %v1029
      %v1031 = vpop.f32.mrf.mxu0
      %v1032 = vpop.f32.mrf.mxu0
      %v1033 = vpop.f32.mrf.mxu0
      %1034 = vdwg.mxu0
      %1035 = vmatprep.subr.bf16.mxu0 0
      %1036 = vmatpush1.bf16.msra.mxu0 0
      %1037 = vmatprep.subr.bf16.mxu0 0
      %1038 = vmatpush1.bf16.msra.mxu0 0
      %1039 = vmatprep.subr.bf16.mxu0 0
      %1040 = vmatpush1.bf16.msra.mxu0 0
      %1041 = vmatprep.subr.bf16.mxu0 0
      %1042 = vmatpush1.bf16.msra.mxu0 0
      %1043 = vmatprep.subr.bf16.mxu0 0
      %1044 = vmatpush1.bf16.msra.mxu0 0
      %1045 = vmatprep.subr.bf16.mxu0 0
      %1046 = vmatpush1.bf16.msra.mxu0 0
      %1047 = vmatprep.subr.bf16.mxu0 0
      %1048 = vmatpush1.bf16.msra.mxu0 0
      %1049 = vmatprep.subr.bf16.mxu0 0
      %1050 = vmatpush1.bf16.msra.mxu0 %v222
      %1051 = vmatprep.subr.bf16.mxu0 0
      %1052 = vmatpush2.bf16.msra.mxu0 0
      %1053 = vmatprep.subr.bf16.mxu0 0
      %1054 = vmatpush2.bf16.msra.mxu0 0
      %1055 = vmatprep.subr.bf16.mxu0 0
      %1056 = vmatpush2.bf16.msra.mxu0 0
      %1057 = vmatprep.subr.bf16.mxu0 0
      %1058 = vmatpush2.bf16.msra.mxu0 0
      %1059 = vmatprep.subr.bf16.mxu0 0
      %1060 = vmatpush2.bf16.msra.mxu0 0
      %1061 = vmatprep.subr.bf16.mxu0 0
      %1062 = vmatpush2.bf16.msra.mxu0 0
      %1063 = vmatprep.subr.bf16.mxu0 0
      %1064 = vmatpush2.bf16.msra.mxu0 0
      %1065 = vmatprep.subr.bf16.mxu0 0
      %1066 = vmatpush2.bf16.msra.mxu0 0
      %1067 = vmatprep.mubr.bf16.mxu0 0
      %1068 = vmatmul.mubr.bf16.gmra.mxu0 %v879
      %v1069 = vpop.f32.mrf.mxu0
      %v1070 = vadd.f32 %v1030, %v1069
      %v1071 = vpop.f32.mrf.mxu0
      %v1072 = vpop.f32.mrf.mxu0
      %v1073 = vpop.f32.mrf.mxu0
      %1074 = vdwg.mxu0
      %s1075 = scalar_lea.vmem %s137, 40
      %v1076 = vld [vmem:[%s1075] sm:$0xf]
      %v1078 = vsel %vm174, %v1076, 0
      %1080 = vmatprep.subr.bf16.mxu0 0
      %1081 = vmatpush1.bf16.msra.mxu0 0
      %1082 = vmatprep.subr.bf16.mxu0 0
      %1083 = vmatpush1.bf16.msra.mxu0 0
      %1084 = vmatprep.subr.bf16.mxu0 0
      %1085 = vmatpush1.bf16.msra.mxu0 0
      %1086 = vmatprep.subr.bf16.mxu0 0
      %1087 = vmatpush1.bf16.msra.mxu0 0
      %1088 = vmatprep.subr.bf16.mxu0 0
      %1089 = vmatpush1.bf16.msra.mxu0 0
      %1090 = vmatprep.subr.bf16.mxu0 0
      %1091 = vmatpush1.bf16.msra.mxu0 0
      %1092 = vmatprep.subr.bf16.mxu0 0
      %1093 = vmatpush1.bf16.msra.mxu0 0
      %1094 = vmatprep.subr.bf16.mxu0 0
      %1095 = vmatpush1.bf16.msra.mxu0 %v273
      %1096 = vmatprep.subr.bf16.mxu0 0
      %1097 = vmatpush2.bf16.msra.mxu0 0
      %1098 = vmatprep.subr.bf16.mxu0 0
      %1099 = vmatpush2.bf16.msra.mxu0 0
      %1100 = vmatprep.subr.bf16.mxu0 0
      %1101 = vmatpush2.bf16.msra.mxu0 0
      %1102 = vmatprep.subr.bf16.mxu0 0
      %1103 = vmatpush2.bf16.msra.mxu0 0
      %1104 = vmatprep.subr.bf16.mxu0 0
      %1105 = vmatpush2.bf16.msra.mxu0 0
      %1106 = vmatprep.subr.bf16.mxu0 0
      %1107 = vmatpush2.bf16.msra.mxu0 0
      %1108 = vmatprep.subr.bf16.mxu0 0
      %1109 = vmatpush2.bf16.msra.mxu0 0
      %1110 = vmatprep.subr.bf16.mxu0 0
      %1111 = vmatpush2.bf16.msra.mxu0 0
      %1112 = vmatprep.mubr.bf16.mxu0 0
      %1113 = vmatmul.mubr.bf16.gmra.mxu0 %v1078
      %v1114 = vpop.f32.mrf.mxu0
      %v1115 = vadd.f32 0.0, %v1114
      %v1116 = vpop.f32.mrf.mxu0
      %v1117 = vpop.f32.mrf.mxu0
      %v1118 = vpop.f32.mrf.mxu0
      %1119 = vdwg.mxu0
      %v1120 = vadd.f32 %v1070, %v1115
      %v1121 = vld [vmem:[%s1075] sm:$0xf]
      %v1122 = vld [vmem:[%s1075 + $0x4] sm:$0x1]
      %v1125 = vunpack.c.l.b16 %v1121
      %v1126 = vunpack.c.l.b16 %v1122
      %v1127 = vpack.c.b16 %v1126, %v1125
      %v1129 = vshrl.u32 %v1127, 16
      %v1131 = vshll.u32 %v1127, 16
      %v1133 = vrot.slane %v1131, 1
      %v1134 = vor.u32 %v1129, %v1133
      %v1136 = vsel %vm174, %v1134, 0
      %1138 = vmatprep.subr.bf16.mxu0 0
      %1139 = vmatpush1.bf16.msra.mxu0 0
      %1140 = vmatprep.subr.bf16.mxu0 0
      %1141 = vmatpush1.bf16.msra.mxu0 0
      %1142 = vmatprep.subr.bf16.mxu0 0
      %1143 = vmatpush1.bf16.msra.mxu0 0
      %1144 = vmatprep.subr.bf16.mxu0 0
      %1145 = vmatpush1.bf16.msra.mxu0 0
      %1146 = vmatprep.subr.bf16.mxu0 0
      %1147 = vmatpush1.bf16.msra.mxu0 0
      %1148 = vmatprep.subr.bf16.mxu0 0
      %1149 = vmatpush1.bf16.msra.mxu0 0
      %1150 = vmatprep.subr.bf16.mxu0 0
      %1151 = vmatpush1.bf16.msra.mxu0 0
      %1152 = vmatprep.subr.bf16.mxu0 0
      %1153 = vmatpush1.bf16.msra.mxu0 %v337
      %1154 = vmatprep.subr.bf16.mxu0 0
      %1155 = vmatpush2.bf16.msra.mxu0 0
      %1156 = vmatprep.subr.bf16.mxu0 0
      %1157 = vmatpush2.bf16.msra.mxu0 0
      %1158 = vmatprep.subr.bf16.mxu0 0
      %1159 = vmatpush2.bf16.msra.mxu0 0
      %1160 = vmatprep.subr.bf16.mxu0 0
      %1161 = vmatpush2.bf16.msra.mxu0 0
      %1162 = vmatprep.subr.bf16.mxu0 0
      %1163 = vmatpush2.bf16.msra.mxu0 0
      %1164 = vmatprep.subr.bf16.mxu0 0
      %1165 = vmatpush2.bf16.msra.mxu0 0
      %1166 = vmatprep.subr.bf16.mxu0 0
      %1167 = vmatpush2.bf16.msra.mxu0 0
      %1168 = vmatprep.subr.bf16.mxu0 0
      %1169 = vmatpush2.bf16.msra.mxu0 0
      %1170 = vmatprep.mubr.bf16.mxu0 0
      %1171 = vmatmul.mubr.bf16.gmra.mxu0 %v1136
      %v1172 = vpop.f32.mrf.mxu0
      %v1173 = vadd.f32 0.0, %v1172
      %v1174 = vpop.f32.mrf.mxu0
      %v1175 = vpop.f32.mrf.mxu0
      %v1176 = vpop.f32.mrf.mxu0
      %1177 = vdwg.mxu0
      %v1178 = vadd.f32 %v1120, %v1173
      %v1179 = vrot.slane %v1178, 4
      %v1180 = vadd.f32 %v1178, %v1179
      %v1181 = vrot.slane %v1180, 2
      %v1182 = vadd.f32 %v1180, %v1181
      %v1183 = vrot.slane %v1182, 1
      %v1184 = vadd.f32 %v1182, %v1183
      %v1185 = vadd.f32 %v986, %v1184
      %v1186 = vmul.f32 %v1178, %v1178
      %v1187 = vrot.slane %v1186, 4
      %v1188 = vadd.f32 %v1186, %v1187
      %v1189 = vrot.slane %v1188, 2
      %v1190 = vadd.f32 %v1188, %v1189
      %v1191 = vrot.slane %v1190, 1
      %v1192 = vadd.f32 %v1190, %v1191
      %v1193 = vadd.f32 %v994, %v1192
      %1194 = vmatprep.subr.bf16.mxu0 0
      %1195 = vmatpush1.bf16.msra.mxu0 0
      %1196 = vmatprep.subr.bf16.mxu0 0
      %1197 = vmatpush1.bf16.msra.mxu0 0
      %1198 = vmatprep.subr.bf16.mxu0 0
      %1199 = vmatpush1.bf16.msra.mxu0 0
      %1200 = vmatprep.subr.bf16.mxu0 0
      %1201 = vmatpush1.bf16.msra.mxu0 0
      %1202 = vmatprep.subr.bf16.mxu0 0
      %1203 = vmatpush1.bf16.msra.mxu0 0
      %1204 = vmatprep.subr.bf16.mxu0 0
      %1205 = vmatpush1.bf16.msra.mxu0 0
      %1206 = vmatprep.subr.bf16.mxu0 0
      %1207 = vmatpush1.bf16.msra.mxu0 0
      %1208 = vmatprep.subr.bf16.mxu0 0
      %1209 = vmatpush1.bf16.msra.mxu0 %v172
      %1210 = vmatprep.subr.bf16.mxu0 0
      %1211 = vmatpush2.bf16.msra.mxu0 0
      %1212 = vmatprep.subr.bf16.mxu0 0
      %1213 = vmatpush2.bf16.msra.mxu0 0
      %1214 = vmatprep.subr.bf16.mxu0 0
      %1215 = vmatpush2.bf16.msra.mxu0 0
      %1216 = vmatprep.subr.bf16.mxu0 0
      %1217 = vmatpush2.bf16.msra.mxu0 0
      %1218 = vmatprep.subr.bf16.mxu0 0
      %1219 = vmatpush2.bf16.msra.mxu0 0
      %1220 = vmatprep.subr.bf16.mxu0 0
      %1221 = vmatpush2.bf16.msra.mxu0 0
      %1222 = vmatprep.subr.bf16.mxu0 0
      %1223 = vmatpush2.bf16.msra.mxu0 0
      %1224 = vmatprep.subr.bf16.mxu0 0
      %1225 = vmatpush2.bf16.msra.mxu0 0
      %1226 = vmatprep.mubr.bf16.mxu0 0
      %1227 = vmatmul.mubr.bf16.gmra.mxu0 %v1136
      %v1228 = vpop.f32.mrf.mxu0
      %v1229 = vadd.f32 0.0, %v1228
      %v1230 = vpop.f32.mrf.mxu0
      %v1231 = vpop.f32.mrf.mxu0
      %v1232 = vpop.f32.mrf.mxu0
      %1233 = vdwg.mxu0
      %1234 = vmatprep.subr.bf16.mxu0 0
      %1235 = vmatpush1.bf16.msra.mxu0 0
      %1236 = vmatprep.subr.bf16.mxu0 0
      %1237 = vmatpush1.bf16.msra.mxu0 0
      %1238 = vmatprep.subr.bf16.mxu0 0
      %1239 = vmatpush1.bf16.msra.mxu0 0
      %1240 = vmatprep.subr.bf16.mxu0 0
      %1241 = vmatpush1.bf16.msra.mxu0 0
      %1242 = vmatprep.subr.bf16.mxu0 0
      %1243 = vmatpush1.bf16.msra.mxu0 0
      %1244 = vmatprep.subr.bf16.mxu0 0
      %1245 = vmatpush1.bf16.msra.mxu0 0
      %1246 = vmatprep.subr.bf16.mxu0 0
      %1247 = vmatpush1.bf16.msra.mxu0 0
      %1248 = vmatprep.subr.bf16.mxu0 0
      %1249 = vmatpush1.bf16.msra.mxu0 %v222
      %1250 = vmatprep.subr.bf16.mxu0 0
      %1251 = vmatpush2.bf16.msra.mxu0 0
      %1252 = vmatprep.subr.bf16.mxu0 0
      %1253 = vmatpush2.bf16.msra.mxu0 0
      %1254 = vmatprep.subr.bf16.mxu0 0
      %1255 = vmatpush2.bf16.msra.mxu0 0
      %1256 = vmatprep.subr.bf16.mxu0 0
      %1257 = vmatpush2.bf16.msra.mxu0 0
      %1258 = vmatprep.subr.bf16.mxu0 0
      %1259 = vmatpush2.bf16.msra.mxu0 0
      %1260 = vmatprep.subr.bf16.mxu0 0
      %1261 = vmatpush2.bf16.msra.mxu0 0
      %1262 = vmatprep.subr.bf16.mxu0 0
      %1263 = vmatpush2.bf16.msra.mxu0 0
      %1264 = vmatprep.subr.bf16.mxu0 0
      %1265 = vmatpush2.bf16.msra.mxu0 0
      %1266 = vmatprep.mubr.bf16.mxu0 0
      %1267 = vmatmul.mubr.bf16.gmra.mxu0 %v1078
      %v1268 = vpop.f32.mrf.mxu0
      %v1269 = vadd.f32 %v1229, %v1268
      %v1270 = vpop.f32.mrf.mxu0
      %v1271 = vpop.f32.mrf.mxu0
      %v1272 = vpop.f32.mrf.mxu0
      %1273 = vdwg.mxu0
      %s1274 = scalar_lea.vmem %s137, 48
      %v1275 = vld [vmem:[%s1274] sm:$0xf]
      %v1277 = vsel %vm174, %v1275, 0
      %1279 = vmatprep.subr.bf16.mxu0 0
      %1280 = vmatpush1.bf16.msra.mxu0 0
      %1281 = vmatprep.subr.bf16.mxu0 0
      %1282 = vmatpush1.bf16.msra.mxu0 0
      %1283 = vmatprep.subr.bf16.mxu0 0
      %1284 = vmatpush1.bf16.msra.mxu0 0
      %1285 = vmatprep.subr.bf16.mxu0 0
      %1286 = vmatpush1.bf16.msra.mxu0 0
      %1287 = vmatprep.subr.bf16.mxu0 0
      %1288 = vmatpush1.bf16.msra.mxu0 0
      %1289 = vmatprep.subr.bf16.mxu0 0
      %1290 = vmatpush1.bf16.msra.mxu0 0
      %1291 = vmatprep.subr.bf16.mxu0 0
      %1292 = vmatpush1.bf16.msra.mxu0 0
      %1293 = vmatprep.subr.bf16.mxu0 0
      %1294 = vmatpush1.bf16.msra.mxu0 %v273
      %1295 = vmatprep.subr.bf16.mxu0 0
      %1296 = vmatpush2.bf16.msra.mxu0 0
      %1297 = vmatprep.subr.bf16.mxu0 0
      %1298 = vmatpush2.bf16.msra.mxu0 0
      %1299 = vmatprep.subr.bf16.mxu0 0
      %1300 = vmatpush2.bf16.msra.mxu0 0
      %1301 = vmatprep.subr.bf16.mxu0 0
      %1302 = vmatpush2.bf16.msra.mxu0 0
      %1303 = vmatprep.subr.bf16.mxu0 0
      %1304 = vmatpush2.bf16.msra.mxu0 0
      %1305 = vmatprep.subr.bf16.mxu0 0
      %1306 = vmatpush2.bf16.msra.mxu0 0
      %1307 = vmatprep.subr.bf16.mxu0 0
      %1308 = vmatpush2.bf16.msra.mxu0 0
      %1309 = vmatprep.subr.bf16.mxu0 0
      %1310 = vmatpush2.bf16.msra.mxu0 0
      %1311 = vmatprep.mubr.bf16.mxu0 0
      %1312 = vmatmul.mubr.bf16.gmra.mxu0 %v1277
      %v1313 = vpop.f32.mrf.mxu0
      %v1314 = vadd.f32 0.0, %v1313
      %v1315 = vpop.f32.mrf.mxu0
      %v1316 = vpop.f32.mrf.mxu0
      %v1317 = vpop.f32.mrf.mxu0
      %1318 = vdwg.mxu0
      %v1319 = vadd.f32 %v1269, %v1314
      %v1320 = vld [vmem:[%s1274] sm:$0xf]
      %v1321 = vld [vmem:[%s1274 + $0x4] sm:$0x1]
      %v1324 = vunpack.c.l.b16 %v1320
      %v1325 = vunpack.c.l.b16 %v1321
      %v1326 = vpack.c.b16 %v1325, %v1324
      %v1328 = vshrl.u32 %v1326, 16
      %v1330 = vshll.u32 %v1326, 16
      %v1332 = vrot.slane %v1330, 1
      %v1333 = vor.u32 %v1328, %v1332
      %v1335 = vsel %vm174, %v1333, 0
      %1337 = vmatprep.subr.bf16.mxu0 0
      %1338 = vmatpush1.bf16.msra.mxu0 0
      %1339 = vmatprep.subr.bf16.mxu0 0
      %1340 = vmatpush1.bf16.msra.mxu0 0
      %1341 = vmatprep.subr.bf16.mxu0 0
      %1342 = vmatpush1.bf16.msra.mxu0 0
      %1343 = vmatprep.subr.bf16.mxu0 0
      %1344 = vmatpush1.bf16.msra.mxu0 0
      %1345 = vmatprep.subr.bf16.mxu0 0
      %1346 = vmatpush1.bf16.msra.mxu0 0
      %1347 = vmatprep.subr.bf16.mxu0 0
      %1348 = vmatpush1.bf16.msra.mxu0 0
      %1349 = vmatprep.subr.bf16.mxu0 0
      %1350 = vmatpush1.bf16.msra.mxu0 0
      %1351 = vmatprep.subr.bf16.mxu0 0
      %1352 = vmatpush1.bf16.msra.mxu0 %v337
      %1353 = vmatprep.subr.bf16.mxu0 0
      %1354 = vmatpush2.bf16.msra.mxu0 0
      %1355 = vmatprep.subr.bf16.mxu0 0
      %1356 = vmatpush2.bf16.msra.mxu0 0
      %1357 = vmatprep.subr.bf16.mxu0 0
      %1358 = vmatpush2.bf16.msra.mxu0 0
      %1359 = vmatprep.subr.bf16.mxu0 0
      %1360 = vmatpush2.bf16.msra.mxu0 0
      %1361 = vmatprep.subr.bf16.mxu0 0
      %1362 = vmatpush2.bf16.msra.mxu0 0
      %1363 = vmatprep.subr.bf16.mxu0 0
      %1364 = vmatpush2.bf16.msra.mxu0 0
      %1365 = vmatprep.subr.bf16.mxu0 0
      %1366 = vmatpush2.bf16.msra.mxu0 0
      %1367 = vmatprep.subr.bf16.mxu0 0
      %1368 = vmatpush2.bf16.msra.mxu0 0
      %1369 = vmatprep.mubr.bf16.mxu0 0
      %1370 = vmatmul.mubr.bf16.gmra.mxu0 %v1335
      %v1371 = vpop.f32.mrf.mxu0
      %v1372 = vadd.f32 0.0, %v1371
      %v1373 = vpop.f32.mrf.mxu0
      %v1374 = vpop.f32.mrf.mxu0
      %v1375 = vpop.f32.mrf.mxu0
      %1376 = vdwg.mxu0
      %v1377 = vadd.f32 %v1319, %v1372
      %v1378 = vrot.slane %v1377, 4
      %v1379 = vadd.f32 %v1377, %v1378
      %v1380 = vrot.slane %v1379, 2
      %v1381 = vadd.f32 %v1379, %v1380
      %v1382 = vrot.slane %v1381, 1
      %v1383 = vadd.f32 %v1381, %v1382
      %v1384 = vadd.f32 %v1185, %v1383
      %v1385 = vmul.f32 %v1377, %v1377
      %v1386 = vrot.slane %v1385, 4
      %v1387 = vadd.f32 %v1385, %v1386
      %v1388 = vrot.slane %v1387, 2
      %v1389 = vadd.f32 %v1387, %v1388
      %v1390 = vrot.slane %v1389, 1
      %v1391 = vadd.f32 %v1389, %v1390
      %v1392 = vadd.f32 %v1193, %v1391
      %1393 = vmatprep.subr.bf16.mxu0 0
      %1394 = vmatpush1.bf16.msra.mxu0 0
      %1395 = vmatprep.subr.bf16.mxu0 0
      %1396 = vmatpush1.bf16.msra.mxu0 0
      %1397 = vmatprep.subr.bf16.mxu0 0
      %1398 = vmatpush1.bf16.msra.mxu0 0
      %1399 = vmatprep.subr.bf16.mxu0 0
      %1400 = vmatpush1.bf16.msra.mxu0 0
      %1401 = vmatprep.subr.bf16.mxu0 0
      %1402 = vmatpush1.bf16.msra.mxu0 0
      %1403 = vmatprep.subr.bf16.mxu0 0
      %1404 = vmatpush1.bf16.msra.mxu0 0
      %1405 = vmatprep.subr.bf16.mxu0 0
      %1406 = vmatpush1.bf16.msra.mxu0 0
      %1407 = vmatprep.subr.bf16.mxu0 0
      %1408 = vmatpush1.bf16.msra.mxu0 %v172
      %1409 = vmatprep.subr.bf16.mxu0 0
      %1410 = vmatpush2.bf16.msra.mxu0 0
      %1411 = vmatprep.subr.bf16.mxu0 0
      %1412 = vmatpush2.bf16.msra.mxu0 0
      %1413 = vmatprep.subr.bf16.mxu0 0
      %1414 = vmatpush2.bf16.msra.mxu0 0
      %1415 = vmatprep.subr.bf16.mxu0 0
      %1416 = vmatpush2.bf16.msra.mxu0 0
      %1417 = vmatprep.subr.bf16.mxu0 0
      %1418 = vmatpush2.bf16.msra.mxu0 0
      %1419 = vmatprep.subr.bf16.mxu0 0
      %1420 = vmatpush2.bf16.msra.mxu0 0
      %1421 = vmatprep.subr.bf16.mxu0 0
      %1422 = vmatpush2.bf16.msra.mxu0 0
      %1423 = vmatprep.subr.bf16.mxu0 0
      %1424 = vmatpush2.bf16.msra.mxu0 0
      %1425 = vmatprep.mubr.bf16.mxu0 0
      %1426 = vmatmul.mubr.bf16.gmra.mxu0 %v1335
      %v1427 = vpop.f32.mrf.mxu0
      %v1428 = vadd.f32 0.0, %v1427
      %v1429 = vpop.f32.mrf.mxu0
      %v1430 = vpop.f32.mrf.mxu0
      %v1431 = vpop.f32.mrf.mxu0
      %1432 = vdwg.mxu0
      %1433 = vmatprep.subr.bf16.mxu0 0
      %1434 = vmatpush1.bf16.msra.mxu0 0
      %1435 = vmatprep.subr.bf16.mxu0 0
      %1436 = vmatpush1.bf16.msra.mxu0 0
      %1437 = vmatprep.subr.bf16.mxu0 0
      %1438 = vmatpush1.bf16.msra.mxu0 0
      %1439 = vmatprep.subr.bf16.mxu0 0
      %1440 = vmatpush1.bf16.msra.mxu0 0
      %1441 = vmatprep.subr.bf16.mxu0 0
      %1442 = vmatpush1.bf16.msra.mxu0 0
      %1443 = vmatprep.subr.bf16.mxu0 0
      %1444 = vmatpush1.bf16.msra.mxu0 0
      %1445 = vmatprep.subr.bf16.mxu0 0
      %1446 = vmatpush1.bf16.msra.mxu0 0
      %1447 = vmatprep.subr.bf16.mxu0 0
      %1448 = vmatpush1.bf16.msra.mxu0 %v222
      %1449 = vmatprep.subr.bf16.mxu0 0
      %1450 = vmatpush2.bf16.msra.mxu0 0
      %1451 = vmatprep.subr.bf16.mxu0 0
      %1452 = vmatpush2.bf16.msra.mxu0 0
      %1453 = vmatprep.subr.bf16.mxu0 0
      %1454 = vmatpush2.bf16.msra.mxu0 0
      %1455 = vmatprep.subr.bf16.mxu0 0
      %1456 = vmatpush2.bf16.msra.mxu0 0
      %1457 = vmatprep.subr.bf16.mxu0 0
      %1458 = vmatpush2.bf16.msra.mxu0 0
      %1459 = vmatprep.subr.bf16.mxu0 0
      %1460 = vmatpush2.bf16.msra.mxu0 0
      %1461 = vmatprep.subr.bf16.mxu0 0
      %1462 = vmatpush2.bf16.msra.mxu0 0
      %1463 = vmatprep.subr.bf16.mxu0 0
      %1464 = vmatpush2.bf16.msra.mxu0 0
      %1465 = vmatprep.mubr.bf16.mxu0 0
      %1466 = vmatmul.mubr.bf16.gmra.mxu0 %v1277
      %v1467 = vpop.f32.mrf.mxu0
      %v1468 = vadd.f32 %v1428, %v1467
      %v1469 = vpop.f32.mrf.mxu0
      %v1470 = vpop.f32.mrf.mxu0
      %v1471 = vpop.f32.mrf.mxu0
      %1472 = vdwg.mxu0
      %s1473 = scalar_lea.vmem %s137, 56
      %v1474 = vld [vmem:[%s1473] sm:$0xf]
      %v1476 = vsel %vm174, %v1474, 0
      %1478 = vmatprep.subr.bf16.mxu0 0
      %1479 = vmatpush1.bf16.msra.mxu0 0
      %1480 = vmatprep.subr.bf16.mxu0 0
      %1481 = vmatpush1.bf16.msra.mxu0 0
      %1482 = vmatprep.subr.bf16.mxu0 0
      %1483 = vmatpush1.bf16.msra.mxu0 0
      %1484 = vmatprep.subr.bf16.mxu0 0
      %1485 = vmatpush1.bf16.msra.mxu0 0
      %1486 = vmatprep.subr.bf16.mxu0 0
      %1487 = vmatpush1.bf16.msra.mxu0 0
      %1488 = vmatprep.subr.bf16.mxu0 0
      %1489 = vmatpush1.bf16.msra.mxu0 0
      %1490 = vmatprep.subr.bf16.mxu0 0
      %1491 = vmatpush1.bf16.msra.mxu0 0
      %1492 = vmatprep.subr.bf16.mxu0 0
      %1493 = vmatpush1.bf16.msra.mxu0 %v273
      %1494 = vmatprep.subr.bf16.mxu0 0
      %1495 = vmatpush2.bf16.msra.mxu0 0
      %1496 = vmatprep.subr.bf16.mxu0 0
      %1497 = vmatpush2.bf16.msra.mxu0 0
      %1498 = vmatprep.subr.bf16.mxu0 0
      %1499 = vmatpush2.bf16.msra.mxu0 0
      %1500 = vmatprep.subr.bf16.mxu0 0
      %1501 = vmatpush2.bf16.msra.mxu0 0
      %1502 = vmatprep.subr.bf16.mxu0 0
      %1503 = vmatpush2.bf16.msra.mxu0 0
      %1504 = vmatprep.subr.bf16.mxu0 0
      %1505 = vmatpush2.bf16.msra.mxu0 0
      %1506 = vmatprep.subr.bf16.mxu0 0
      %1507 = vmatpush2.bf16.msra.mxu0 0
      %1508 = vmatprep.subr.bf16.mxu0 0
      %1509 = vmatpush2.bf16.msra.mxu0 0
      %1510 = vmatprep.mubr.bf16.mxu0 0
      %1511 = vmatmul.mubr.bf16.gmra.mxu0 %v1476
      %v1512 = vpop.f32.mrf.mxu0
      %v1513 = vadd.f32 0.0, %v1512
      %v1514 = vpop.f32.mrf.mxu0
      %v1515 = vpop.f32.mrf.mxu0
      %v1516 = vpop.f32.mrf.mxu0
      %1517 = vdwg.mxu0
      %v1518 = vadd.f32 %v1468, %v1513
      %v1519 = vld [vmem:[%s1473] sm:$0xf]
      %v1520 = vld [vmem:[%s1473 + $0x4] sm:$0x1]
      %v1523 = vunpack.c.l.b16 %v1519
      %v1524 = vunpack.c.l.b16 %v1520
      %v1525 = vpack.c.b16 %v1524, %v1523
      %v1527 = vshrl.u32 %v1525, 16
      %v1529 = vshll.u32 %v1525, 16
      %v1531 = vrot.slane %v1529, 1
      %v1532 = vor.u32 %v1527, %v1531
      %v1534 = vsel %vm174, %v1532, 0
      %1536 = vmatprep.subr.bf16.mxu0 0
      %1537 = vmatpush1.bf16.msra.mxu0 0
      %1538 = vmatprep.subr.bf16.mxu0 0
      %1539 = vmatpush1.bf16.msra.mxu0 0
      %1540 = vmatprep.subr.bf16.mxu0 0
      %1541 = vmatpush1.bf16.msra.mxu0 0
      %1542 = vmatprep.subr.bf16.mxu0 0
      %1543 = vmatpush1.bf16.msra.mxu0 0
      %1544 = vmatprep.subr.bf16.mxu0 0
      %1545 = vmatpush1.bf16.msra.mxu0 0
      %1546 = vmatprep.subr.bf16.mxu0 0
      %1547 = vmatpush1.bf16.msra.mxu0 0
      %1548 = vmatprep.subr.bf16.mxu0 0
      %1549 = vmatpush1.bf16.msra.mxu0 0
      %1550 = vmatprep.subr.bf16.mxu0 0
      %1551 = vmatpush1.bf16.msra.mxu0 %v337
      %1552 = vmatprep.subr.bf16.mxu0 0
      %1553 = vmatpush2.bf16.msra.mxu0 0
      %1554 = vmatprep.subr.bf16.mxu0 0
      %1555 = vmatpush2.bf16.msra.mxu0 0
      %1556 = vmatprep.subr.bf16.mxu0 0
      %1557 = vmatpush2.bf16.msra.mxu0 0
      %1558 = vmatprep.subr.bf16.mxu0 0
      %1559 = vmatpush2.bf16.msra.mxu0 0
      %1560 = vmatprep.subr.bf16.mxu0 0
      %1561 = vmatpush2.bf16.msra.mxu0 0
      %1562 = vmatprep.subr.bf16.mxu0 0
      %1563 = vmatpush2.bf16.msra.mxu0 0
      %1564 = vmatprep.subr.bf16.mxu0 0
      %1565 = vmatpush2.bf16.msra.mxu0 0
      %1566 = vmatprep.subr.bf16.mxu0 0
      %1567 = vmatpush2.bf16.msra.mxu0 0
      %1568 = vmatprep.mubr.bf16.mxu0 0
      %1569 = vmatmul.mubr.bf16.gmra.mxu0 %v1534
      %v1570 = vpop.f32.mrf.mxu0
      %v1571 = vadd.f32 0.0, %v1570
      %v1572 = vpop.f32.mrf.mxu0
      %v1573 = vpop.f32.mrf.mxu0
      %v1574 = vpop.f32.mrf.mxu0
      %1575 = vdwg.mxu0
      %v1576 = vadd.f32 %v1518, %v1571
      %v1577 = vrot.slane %v1576, 4
      %v1578 = vadd.f32 %v1576, %v1577
      %v1579 = vrot.slane %v1578, 2
      %v1580 = vadd.f32 %v1578, %v1579
      %v1581 = vrot.slane %v1580, 1
      %v1582 = vadd.f32 %v1580, %v1581
      %v1583 = vadd.f32 %v1384, %v1582
      %v1584 = vmul.f32 %v1576, %v1576
      %v1585 = vrot.slane %v1584, 4
      %v1586 = vadd.f32 %v1584, %v1585
      %v1587 = vrot.slane %v1586, 2
      %v1588 = vadd.f32 %v1586, %v1587
      %v1589 = vrot.slane %v1588, 1
      %v1590 = vadd.f32 %v1588, %v1589
      %v1591 = vadd.f32 %v1392, %v1590
      %1592 = vmatprep.subr.bf16.mxu0 0
      %1593 = vmatpush1.bf16.msra.mxu0 0
      %1594 = vmatprep.subr.bf16.mxu0 0
      %1595 = vmatpush1.bf16.msra.mxu0 0
      %1596 = vmatprep.subr.bf16.mxu0 0
      %1597 = vmatpush1.bf16.msra.mxu0 0
      %1598 = vmatprep.subr.bf16.mxu0 0
      %1599 = vmatpush1.bf16.msra.mxu0 0
      %1600 = vmatprep.subr.bf16.mxu0 0
      %1601 = vmatpush1.bf16.msra.mxu0 0
      %1602 = vmatprep.subr.bf16.mxu0 0
      %1603 = vmatpush1.bf16.msra.mxu0 0
      %1604 = vmatprep.subr.bf16.mxu0 0
      %1605 = vmatpush1.bf16.msra.mxu0 0
      %1606 = vmatprep.subr.bf16.mxu0 0
      %1607 = vmatpush1.bf16.msra.mxu0 %v172
      %1608 = vmatprep.subr.bf16.mxu0 0
      %1609 = vmatpush2.bf16.msra.mxu0 0
      %1610 = vmatprep.subr.bf16.mxu0 0
      %1611 = vmatpush2.bf16.msra.mxu0 0
      %1612 = vmatprep.subr.bf16.mxu0 0
      %1613 = vmatpush2.bf16.msra.mxu0 0
      %1614 = vmatprep.subr.bf16.mxu0 0
      %1615 = vmatpush2.bf16.msra.mxu0 0
      %1616 = vmatprep.subr.bf16.mxu0 0
      %1617 = vmatpush2.bf16.msra.mxu0 0
      %1618 = vmatprep.subr.bf16.mxu0 0
      %1619 = vmatpush2.bf16.msra.mxu0 0
      %1620 = vmatprep.subr.bf16.mxu0 0
      %1621 = vmatpush2.bf16.msra.mxu0 0
      %1622 = vmatprep.subr.bf16.mxu0 0
      %1623 = vmatpush2.bf16.msra.mxu0 0
      %1624 = vmatprep.mubr.bf16.mxu0 0
      %1625 = vmatmul.mubr.bf16.gmra.mxu0 %v1534
      %v1626 = vpop.f32.mrf.mxu0
      %v1627 = vadd.f32 0.0, %v1626
      %v1628 = vpop.f32.mrf.mxu0
      %v1629 = vpop.f32.mrf.mxu0
      %v1630 = vpop.f32.mrf.mxu0
      %1631 = vdwg.mxu0
      %1632 = vmatprep.subr.bf16.mxu0 0
      %1633 = vmatpush1.bf16.msra.mxu0 0
      %1634 = vmatprep.subr.bf16.mxu0 0
      %1635 = vmatpush1.bf16.msra.mxu0 0
      %1636 = vmatprep.subr.bf16.mxu0 0
      %1637 = vmatpush1.bf16.msra.mxu0 0
      %1638 = vmatprep.subr.bf16.mxu0 0
      %1639 = vmatpush1.bf16.msra.mxu0 0
      %1640 = vmatprep.subr.bf16.mxu0 0
      %1641 = vmatpush1.bf16.msra.mxu0 0
      %1642 = vmatprep.subr.bf16.mxu0 0
      %1643 = vmatpush1.bf16.msra.mxu0 0
      %1644 = vmatprep.subr.bf16.mxu0 0
      %1645 = vmatpush1.bf16.msra.mxu0 0
      %1646 = vmatprep.subr.bf16.mxu0 0
      %1647 = vmatpush1.bf16.msra.mxu0 %v222
      %1648 = vmatprep.subr.bf16.mxu0 0
      %1649 = vmatpush2.bf16.msra.mxu0 0
      %1650 = vmatprep.subr.bf16.mxu0 0
      %1651 = vmatpush2.bf16.msra.mxu0 0
      %1652 = vmatprep.subr.bf16.mxu0 0
      %1653 = vmatpush2.bf16.msra.mxu0 0
      %1654 = vmatprep.subr.bf16.mxu0 0
      %1655 = vmatpush2.bf16.msra.mxu0 0
      %1656 = vmatprep.subr.bf16.mxu0 0
      %1657 = vmatpush2.bf16.msra.mxu0 0
      %1658 = vmatprep.subr.bf16.mxu0 0
      %1659 = vmatpush2.bf16.msra.mxu0 0
      %1660 = vmatprep.subr.bf16.mxu0 0
      %1661 = vmatpush2.bf16.msra.mxu0 0
      %1662 = vmatprep.subr.bf16.mxu0 0
      %1663 = vmatpush2.bf16.msra.mxu0 0
      %1664 = vmatprep.mubr.bf16.mxu0 0
      %1665 = vmatmul.mubr.bf16.gmra.mxu0 %v1476
      %v1666 = vpop.f32.mrf.mxu0
      %v1667 = vadd.f32 %v1627, %v1666
      %v1668 = vpop.f32.mrf.mxu0
      %v1669 = vpop.f32.mrf.mxu0
      %v1670 = vpop.f32.mrf.mxu0
      %1671 = vdwg.mxu0
      %s1672 = scalar_lea.vmem %s137, 64
      %v1673 = vld [vmem:[%s1672] sm:$0xf]
      %v1675 = vsel %vm174, %v1673, 0
      %1677 = vmatprep.subr.bf16.mxu0 0
      %1678 = vmatpush1.bf16.msra.mxu0 0
      %1679 = vmatprep.subr.bf16.mxu0 0
      %1680 = vmatpush1.bf16.msra.mxu0 0
      %1681 = vmatprep.subr.bf16.mxu0 0
      %1682 = vmatpush1.bf16.msra.mxu0 0
      %1683 = vmatprep.subr.bf16.mxu0 0
      %1684 = vmatpush1.bf16.msra.mxu0 0
      %1685 = vmatprep.subr.bf16.mxu0 0
      %1686 = vmatpush1.bf16.msra.mxu0 0
      %1687 = vmatprep.subr.bf16.mxu0 0
      %1688 = vmatpush1.bf16.msra.mxu0 0
      %1689 = vmatprep.subr.bf16.mxu0 0
      %1690 = vmatpush1.bf16.msra.mxu0 0
      %1691 = vmatprep.subr.bf16.mxu0 0
      %1692 = vmatpush1.bf16.msra.mxu0 %v273
      %1693 = vmatprep.subr.bf16.mxu0 0
      %1694 = vmatpush2.bf16.msra.mxu0 0
      %1695 = vmatprep.subr.bf16.mxu0 0
      %1696 = vmatpush2.bf16.msra.mxu0 0
      %1697 = vmatprep.subr.bf16.mxu0 0
      %1698 = vmatpush2.bf16.msra.mxu0 0
      %1699 = vmatprep.subr.bf16.mxu0 0
      %1700 = vmatpush2.bf16.msra.mxu0 0
      %1701 = vmatprep.subr.bf16.mxu0 0
      %1702 = vmatpush2.bf16.msra.mxu0 0
      %1703 = vmatprep.subr.bf16.mxu0 0
      %1704 = vmatpush2.bf16.msra.mxu0 0
      %1705 = vmatprep.subr.bf16.mxu0 0
      %1706 = vmatpush2.bf16.msra.mxu0 0
      %1707 = vmatprep.subr.bf16.mxu0 0
      %1708 = vmatpush2.bf16.msra.mxu0 0
      %1709 = vmatprep.mubr.bf16.mxu0 0
      %1710 = vmatmul.mubr.bf16.gmra.mxu0 %v1675
      %v1711 = vpop.f32.mrf.mxu0
      %v1712 = vadd.f32 0.0, %v1711
      %v1713 = vpop.f32.mrf.mxu0
      %v1714 = vpop.f32.mrf.mxu0
      %v1715 = vpop.f32.mrf.mxu0
      %1716 = vdwg.mxu0
      %v1717 = vadd.f32 %v1667, %v1712
      %v1718 = vld [vmem:[%s1672] sm:$0xf]
      %v1719 = vld [vmem:[%s1672 + $0x4] sm:$0x1]
      %v1722 = vunpack.c.l.b16 %v1718
      %v1723 = vunpack.c.l.b16 %v1719
      %v1724 = vpack.c.b16 %v1723, %v1722
      %v1726 = vshrl.u32 %v1724, 16
      %v1728 = vshll.u32 %v1724, 16
      %v1730 = vrot.slane %v1728, 1
      %v1731 = vor.u32 %v1726, %v1730
      %v1733 = vsel %vm174, %v1731, 0
      %1735 = vmatprep.subr.bf16.mxu0 0
      %1736 = vmatpush1.bf16.msra.mxu0 0
      %1737 = vmatprep.subr.bf16.mxu0 0
      %1738 = vmatpush1.bf16.msra.mxu0 0
      %1739 = vmatprep.subr.bf16.mxu0 0
      %1740 = vmatpush1.bf16.msra.mxu0 0
      %1741 = vmatprep.subr.bf16.mxu0 0
      %1742 = vmatpush1.bf16.msra.mxu0 0
      %1743 = vmatprep.subr.bf16.mxu0 0
      %1744 = vmatpush1.bf16.msra.mxu0 0
      %1745 = vmatprep.subr.bf16.mxu0 0
      %1746 = vmatpush1.bf16.msra.mxu0 0
      %1747 = vmatprep.subr.bf16.mxu0 0
      %1748 = vmatpush1.bf16.msra.mxu0 0
      %1749 = vmatprep.subr.bf16.mxu0 0
      %1750 = vmatpush1.bf16.msra.mxu0 %v337
      %1751 = vmatprep.subr.bf16.mxu0 0
      %1752 = vmatpush2.bf16.msra.mxu0 0
      %1753 = vmatprep.subr.bf16.mxu0 0
      %1754 = vmatpush2.bf16.msra.mxu0 0
      %1755 = vmatprep.subr.bf16.mxu0 0
      %1756 = vmatpush2.bf16.msra.mxu0 0
      %1757 = vmatprep.subr.bf16.mxu0 0
      %1758 = vmatpush2.bf16.msra.mxu0 0
      %1759 = vmatprep.subr.bf16.mxu0 0
      %1760 = vmatpush2.bf16.msra.mxu0 0
      %1761 = vmatprep.subr.bf16.mxu0 0
      %1762 = vmatpush2.bf16.msra.mxu0 0
      %1763 = vmatprep.subr.bf16.mxu0 0
      %1764 = vmatpush2.bf16.msra.mxu0 0
      %1765 = vmatprep.subr.bf16.mxu0 0
      %1766 = vmatpush2.bf16.msra.mxu0 0
      %1767 = vmatprep.mubr.bf16.mxu0 0
      %1768 = vmatmul.mubr.bf16.gmra.mxu0 %v1733
      %v1769 = vpop.f32.mrf.mxu0
      %v1770 = vadd.f32 0.0, %v1769
      %v1771 = vpop.f32.mrf.mxu0
      %v1772 = vpop.f32.mrf.mxu0
      %v1773 = vpop.f32.mrf.mxu0
      %1774 = vdwg.mxu0
      %v1775 = vadd.f32 %v1717, %v1770
      %v1776 = vrot.slane %v1775, 4
      %v1777 = vadd.f32 %v1775, %v1776
      %v1778 = vrot.slane %v1777, 2
      %v1779 = vadd.f32 %v1777, %v1778
      %v1780 = vrot.slane %v1779, 1
      %v1781 = vadd.f32 %v1779, %v1780
      %v1782 = vadd.f32 %v1583, %v1781
      %v1783 = vmul.f32 %v1775, %v1775
      %v1784 = vrot.slane %v1783, 4
      %v1785 = vadd.f32 %v1783, %v1784
      %v1786 = vrot.slane %v1785, 2
      %v1787 = vadd.f32 %v1785, %v1786
      %v1788 = vrot.slane %v1787, 1
      %v1789 = vadd.f32 %v1787, %v1788
      %v1790 = vadd.f32 %v1591, %v1789
      %1791 = vst [vmem:[%s141] sm:$0x1] %v1782
      %1792 = vst [vmem:[%s141 + $0x1] sm:$0x1] %v1790
      %p1793 = scmp.lt.s32.totalorder %s13, 1
      %s1794 = scalar_select %p1793, %s13, 1
      %s1795 = smul.addr %s1794, 8
      %s1796 = scalar_lea.vmem %s2, %s1795
      // Predicated region
      $region29: #{down_block.2} parent=27 // pred_check
        %p1797 = pneg %p78
      $region30: #{down_block.2} parent=27 // pred_check_branch
        %1799 = sbr.rel (%p1797) target = $region32
      $region31: #{down_block.2} parent=27 // pred_region
        _
      $region32: #{down_block.2} parent=27 // pred_fallthru
        _
    $region28: #{down_block.2} parent=5 // pred_fallthru
      _
    %p1800 = scmp.le.s32.totalorder 2, %s8
    // Predicated region
    $region33: #{down_block.2} parent=5 // pred_check
      %p1801 = pneg %p1800
    $region34: #{down_block.2} parent=5 // pred_check_branch
      %1803 = sbr.rel (%p1801) target = $region36
    $region35: #{down_block.2} parent=5 // pred_region
      %s1804 = ssub.s32 %s8, 2
      // Predicated region
      $region37: #{down_block.2} parent=35 // pred_check
        %p1805 = pneg %p84
      $region38: #{down_block.2} parent=35 // pred_check_branch
        %1807 = sbr.rel (%p1805) target = $region40
      $region39: #{down_block.2} parent=35 // pred_region
        %p1808 = scmp.lt.s32.totalorder %s14, 1
        %s1809 = scalar_select %p1808, %s14, 1
        %s1810 = smul.addr %s1809, 8
        %s1811 = scalar_lea.vmem %s2, %s1810
      $region40: #{down_block.2} parent=35 // pred_fallthru
        _
    $region36: #{down_block.2} parent=5 // pred_fallthru
      _
  $region6: #{down_block.2} parent=0 // loop_footer
    %s12 = sadd.s32 1, %s8
  $region7: #{down_block.2} parent=0 // loop_footer_branch
    %7 = sbr.rel target = $region3
  $region8: #{down_block.2} parent=0 // loop_exit
    _

// kernel: down_block.3
$region0: #{down_block.3}
  #allocation0 [shape = 'u32[]', space=smem, size = 0x4, offset = 0x4, fixed_abs, tag = 'smem constant byte address 0x4 - core index']
  #allocation1 [shape = 'u32[144,128]{1,0:T(1,128)}', space=vmem, size = 0x12000, scoped, tag = 'internal scratch']
  %s0 = inlined_call_operand.vmem [shape: bf16[2,9,9,16], index: 0, kind: input, shape index: {}]
  %s1 = inlined_call_operand.vmem [shape: bf16[2,2,16,128], index: 1, kind: input, shape index: {}]
  %s2 = inlined_call_operand.vmem [shape: f32[8,128], index: 2, kind: input, shape index: {}]
  %s3 = inlined_call_operand.vmem [shape: f32[2,8,8,128], index: 3, kind: output, shape index: {}]
  %s4 = sld [smem:[#allocation0]]
  $region45: #{down_block.3} parent=0
    _
  %s6 = ssub.s32 1, %s4
  %s7 = scalar_select 0, %s6, %s4
  loop: start=0, step=1, limit=4
  $region2: #{down_block.3} parent=0 // loop_pre_header
    _
  $region3: #{down_block.3} parent=0 // loop_header
    %s9 = sphi 0, %s13
    %p10 = scmp.ge.s32.totalorder %s9, 4
    %s19 = sphi 0, %s21
    %s22 = sphi 0, %s19
    %s23 = sphi 0, %s22
    %s39 = sphi 0, %s23
    %s43 = sphi 0, %s43
    %s45 = sphi 0, %s43
    %s46 = sphi 0, %s45
    %s60 = sphi 0, %s46
    %s64 = sphi 0, %s64
    %s66 = sphi 0, %s64
    %s67 = sphi 0, %s66
    %s81 = sphi 0, %s67
    %s87 = sphi 0, %s89
    %s90 = sphi 0, %s87
    %s91 = sphi 0, %s90
    %s107 = sphi 0, %s91
  $region4: #{down_block.3} parent=0 // loop_header_branch
    %12 = sbr.rel (%p10) target = $region8
  $region5: #{down_block.3} parent=0 // loop_body
    %s14 = ssub.s32 %s9, 1
    %s15 = ssub.s32 %s9, 2
    %s16 = sadd.s32 %s9, 1
    %s17 = ssub.s32 %s9, %s16
    %p18 = scmp.eq.s32.totalorder %s17, 0
    %s20 = sadd.s32 %s19, 1
    %s21 = scalar_select %p18, %s19, %s20
    %p24 = pneg %p18
    %p25 = scmp.eq.s32.totalorder %s9, 1
    %p26 = por %p24, %p25
    %p27 = scmp.ne.s32.totalorder %s19, %s22
    %p28 = scmp.eq.s32.totalorder %s9, 0
    %p29 = por %p27, %p28
    %p30 = scmp.ne.s32.totalorder %s19, %s22
    %p31 = scmp.eq.s32.totalorder %s14, 1
    %p32 = por %p30, %p31
    %p33 = scmp.ne.s32.totalorder %s22, %s23
    %p34 = scmp.eq.s32.totalorder %s14, 0
    %p35 = por %p33, %p34
    %p36 = scmp.ne.s32.totalorder %s22, %s23
    %p37 = scmp.eq.s32.totalorder %s15, 1
    %p38 = por %p36, %p37
    %p40 = scmp.ne.s32.totalorder %s23, %s39
    %p41 = scmp.eq.s32.totalorder %s15, 0
    %p42 = por %p40, %p41
    %s44 = sadd.s32 %s43, 1
    %p47 = scmp.eq.s32.totalorder %s9, 1
    %p48 = scmp.ne.s32.totalorder %s43, %s45
    %p49 = scmp.eq.s32.totalorder %s9, 0
    %p50 = por %p48, %p49
    %p51 = scmp.ne.s32.totalorder %s43, %s45
    %p52 = scmp.eq.s32.totalorder %s14, 1
    %p53 = por %p51, %p52
    %p54 = scmp.ne.s32.totalorder %s45, %s46
    %p55 = scmp.eq.s32.totalorder %s14, 0
    %p56 = por %p54, %p55
    %p57 = scmp.ne.s32.totalorder %s45, %s46
    %p58 = scmp.eq.s32.totalorder %s15, 1
    %p59 = por %p57, %p58
    %p61 = scmp.ne.s32.totalorder %s46, %s60
    %p62 = scmp.eq.s32.totalorder %s15, 0
    %p63 = por %p61, %p62
    %s65 = sadd.s32 %s64, 1
    %p68 = scmp.eq.s32.totalorder %s9, 1
    %p69 = scmp.ne.s32.totalorder %s64, %s66
    %p70 = scmp.eq.s32.totalorder %s9, 0
    %p71 = por %p69, %p70
    %p72 = scmp.ne.s32.totalorder %s64, %s66
    %p73 = scmp.eq.s32.totalorder %s14, 1
    %p74 = por %p72, %p73
    %p75 = scmp.ne.s32.totalorder %s66, %s67
    %p76 = scmp.eq.s32.totalorder %s14, 0
    %p77 = por %p75, %p76
    %p78 = scmp.ne.s32.totalorder %s66, %s67
    %p79 = scmp.eq.s32.totalorder %s15, 1
    %p80 = por %p78, %p79
    %p82 = scmp.ne.s32.totalorder %s67, %s81
    %p83 = scmp.eq.s32.totalorder %s15, 0
    %p84 = por %p82, %p83
    %s85 = ssub.s32 %s9, %s16
    %p86 = scmp.eq.s32.totalorder %s85, 0
    %s88 = sadd.s32 %s87, 1
    %s89 = scalar_select %p86, %s87, %s88
    %p92 = pneg %p86
    %p93 = scmp.eq.s32.totalorder %s9, 1
    %p94 = por %p92, %p93
    %p95 = scmp.ne.s32.totalorder %s87, %s90
    %p96 = scmp.eq.s32.totalorder %s9, 0
    %p97 = por %p95, %p96
    %p98 = scmp.ne.s32.totalorder %s87, %s90
    %p99 = scmp.eq.s32.totalorder %s14, 1
    %p100 = por %p98, %p99
    %p101 = scmp.ne.s32.totalorder %s90, %s91
    %p102 = scmp.eq.s32.totalorder %s14, 0
    %p103 = por %p101, %p102
    %p104 = scmp.ne.s32.totalorder %s90, %s91
    %p105 = scmp.eq.s32.totalorder %s15, 1
    %p106 = por %p104, %p105
    %p108 = scmp.ne.s32.totalorder %s91, %s107
    %p109 = scmp.eq.s32.totalorder %s15, 0
    %p110 = por %p108, %p109
    %p111 = scmp.le.s32.totalorder 1, %s9
    %p112 = scmp.lt.s32.totalorder %s9, 3
    %p113 = pnand %p111, %p112
    %p114 = pneg %p113
    // Predicated region
    $region9: #{down_block.3} parent=5 // pred_check
      _
    $region10: #{down_block.3} parent=5 // pred_check_branch
      %116 = sbr.rel (%p113) target = $region12
    $region11: #{down_block.3} parent=5 // pred_region
      %s117 = ssub.s32 %s9, 1
      // Predicated region
      $region13: #{down_block.3} parent=11 // pred_check
        %p118 = pneg %p56
      $region14: #{down_block.3} parent=11 // pred_check_branch
        %120 = sbr.rel (%p118) target = $region16
      $region15: #{down_block.3} parent=11 // pred_region
        _
      $region16: #{down_block.3} parent=11 // pred_fallthru
        _
      // Predicated region
      $region17: #{down_block.3} parent=11 // pred_check
        %p121 = pneg %p77
      $region18: #{down_block.3} parent=11 // pred_check_branch
        %123 = sbr.rel (%p121) target = $region20
      $region19: #{down_block.3} parent=11 // pred_region
        _
      $region20: #{down_block.3} parent=11 // pred_fallthru
        _
    $region12: #{down_block.3} parent=5 // pred_fallthru
      _
    %p124 = scmp.lt.s32.totalorder %s9, 2
    // Predicated region
    $region21: #{down_block.3} parent=5 // pred_check
      %p125 = pneg %p124
    $region22: #{down_block.3} parent=5 // pred_check_branch
      %127 = sbr.rel (%p125) target = $region24
    $region23: #{down_block.3} parent=5 // pred_region
      // Predicated region
      $region25: #{down_block.3} parent=23 // pred_check
        %p128 = pneg %p29
      $region26: #{down_block.3} parent=23 // pred_check_branch
        %130 = sbr.rel (%p128) target = $region28
      $region27: #{down_block.3} parent=23 // pred_region
        %p131 = scmp.lt.s32.totalorder %s9, 1
        %s132 = scalar_select %p131, %s9, 1
        %s133 = smul.addr %s132, 18
        %s134 = smul.addr %s133, 4
        %s135 = scalar_lea.vmem %s0, %s134
      $region28: #{down_block.3} parent=23 // pred_fallthru
        _
    $region24: #{down_block.3} parent=5 // pred_fallthru
      _
    %p136 = scmp.le.s32.totalorder 1, %s9
    %p137 = scmp.lt.s32.totalorder %s9, 3
    %p138 = pnand %p136, %p137
    %p139 = pneg %p138
    // Predicated region
    $region29: #{down_block.3} parent=5 // pred_check
      _
    $region30: #{down_block.3} parent=5 // pred_check_branch
      %141 = sbr.rel (%p138) target = $region32
    $region31: #{down_block.3} parent=5 // pred_region
      %s142 = ssub.s32 %s9, 1
      %p143 = scmp.lt.s32.totalorder %s14, 1
      %s144 = scalar_select %p143, %s14, 1
      %s145 = smul.addr %s144, 18
      %s146 = smul.addr %s145, 4
      %s147 = scalar_lea.vmem %s0, %s146
      %p148 = pneg %p35
      %p149 = pneg %p32
      %p150 = pneg %p56
      %p151 = pneg %p53
      %p152 = pneg %p77
      %p153 = pneg %p74
      %p154 = pneg %p103
      %p155 = pneg %p100
      %p156 = scmp.lt.s32.totalorder %s14, 1
      %s157 = scalar_select %p156, %s14, 1
      %s158 = smul.addr %s157, 8
      %s159 = smul.addr %s158, 8
      %s160 = scalar_lea.vmem %s3, %s159
      %p161 = scmp.lt.s32.totalorder %s14, 1
      %s162 = scalar_select %p161, %s14, 1
      %s163 = smul.addr %s162, 18
      %s164 = smul.addr %s163, 4
      %s165 = scalar_lea.vmem %s0, %s164
      %p166 = scmp.lt.s32.totalorder %s14, 1
      %s167 = scalar_select %p166, %s14, 1
      %s168 = smul.addr %s167, 8
      %s169 = smul.addr %s168, 8
      %s170 = scalar_lea.vmem %s3, %s169
      %v172 = vld [vmem:[%s1] sm:$0xf]
      %v173 = vld [vmem:[%s1 + $0x4] sm:$0xf]
      %s174 = scalar_lea.vmem %s1, 8
      %v175 = vld [vmem:[%s174] sm:$0xf]
      %v176 = vld [vmem:[%s174 + $0x4] sm:$0xf]
      %s177 = scalar_lea.vmem %s1, 16
      %v178 = vld [vmem:[%s177] sm:$0xf]
      %v179 = vld [vmem:[%s177 + $0x4] sm:$0xf]
      %s180 = scalar_lea.vmem %s1, 24
      %v181 = vld [vmem:[%s180] sm:$0xf]
      %v182 = vld [vmem:[%s180 + $0x4] sm:$0xf]
      %v183 = vld [vmem:[%s2] sm:$0x1]
      %v184 = vld [vmem:[%s2 + $0x1] sm:$0x1]
      %v185 = vld [vmem:[%s165] sm:$0xf]
      %v186 = vld [vmem:[%s165 + $0x4] sm:$0x1]
      %v189 = vunpack.c.l.b16 %v185
      %v190 = vunpack.c.l.b16 %v186
      %v191 = vpack.c.b16 %v190, %v189
      %v193 = vshrl.u32 %v191, 16
      %v195 = vshll.u32 %v191, 16
      %v197 = vrot.slane %v195, 1
      %v198 = vor.u32 %v193, %v197
      %v201 = vunpack.c.l.b16 %v175
      %v202 = vunpack.c.l.b16 %v176
      %v203 = vpack.c.b16 %v202, %v201
      %vm205 = vcmask 130048
      %v207 = vsel %vm205, %v198, 0
      %209 = vmatprep.subr.bf16.mxu0 0
      %210 = vmatpush1.bf16.msra.mxu0 0
      %211 = vmatprep.subr.bf16.mxu0 0
      %212 = vmatpush1.bf16.msra.mxu0 0
      %213 = vmatprep.subr.bf16.mxu0 0
      %214 = vmatpush1.bf16.msra.mxu0 0
      %215 = vmatprep.subr.bf16.mxu0 0
      %216 = vmatpush1.bf16.msra.mxu0 0
      %217 = vmatprep.subr.bf16.mxu0 0
      %218 = vmatpush1.bf16.msra.mxu0 0
      %219 = vmatprep.subr.bf16.mxu0 0
      %220 = vmatpush1.bf16.msra.mxu0 0
      %221 = vmatprep.subr.bf16.mxu0 0
      %222 = vmatpush1.bf16.msra.mxu0 0
      %223 = vmatprep.subr.bf16.mxu0 0
      %224 = vmatpush1.bf16.msra.mxu0 %v203
      %225 = vmatprep.subr.bf16.mxu0 0
      %226 = vmatpush2.bf16.msra.mxu0 0
      %227 = vmatprep.subr.bf16.mxu0 0
      %228 = vmatpush2.bf16.msra.mxu0 0
      %229 = vmatprep.subr.bf16.mxu0 0
      %230 = vmatpush2.bf16.msra.mxu0 0
      %231 = vmatprep.subr.bf16.mxu0 0
      %232 = vmatpush2.bf16.msra.mxu0 0
      %233 = vmatprep.subr.bf16.mxu0 0
      %234 = vmatpush2.bf16.msra.mxu0 0
      %235 = vmatprep.subr.bf16.mxu0 0
      %236 = vmatpush2.bf16.msra.mxu0 0
      %237 = vmatprep.subr.bf16.mxu0 0
      %238 = vmatpush2.bf16.msra.mxu0 0
      %239 = vmatprep.subr.bf16.mxu0 0
      %240 = vmatpush2.bf16.msra.mxu0 0
      %241 = vmatprep.mubr.bf16.mxu0 0
      %242 = vmatmul.mubr.bf16.gmra.mxu0 %v207
      %v243 = vpop.f32.mrf.mxu0
      %v244 = vadd.f32 0.0, %v243
      %v245 = vpop.f32.mrf.mxu0
      %v246 = vpop.f32.mrf.mxu0
      %v247 = vpop.f32.mrf.mxu0
      %248 = vdwg.mxu0
      %v251 = vunpack.c.l.b16 %v172
      %v252 = vunpack.c.l.b16 %v173
      %v253 = vpack.c.b16 %v252, %v251
      %v256 = vsel %vm205, %v185, 0
      %258 = vmatprep.subr.bf16.mxu0 0
      %259 = vmatpush1.bf16.msra.mxu0 0
      %260 = vmatprep.subr.bf16.mxu0 0
      %261 = vmatpush1.bf16.msra.mxu0 0
      %262 = vmatprep.subr.bf16.mxu0 0
      %263 = vmatpush1.bf16.msra.mxu0 0
      %264 = vmatprep.subr.bf16.mxu0 0
      %265 = vmatpush1.bf16.msra.mxu0 0
      %266 = vmatprep.subr.bf16.mxu0 0
      %267 = vmatpush1.bf16.msra.mxu0 0
      %268 = vmatprep.subr.bf16.mxu0 0
      %269 = vmatpush1.bf16.msra.mxu0 0
      %270 = vmatprep.subr.bf16.mxu0 0
      %271 = vmatpush1.bf16.msra.mxu0 0
      %272 = vmatprep.subr.bf16.mxu0 0
      %273 = vmatpush1.bf16.msra.mxu0 %v253
      %274 = vmatprep.subr.bf16.mxu0 0
      %275 = vmatpush2.bf16.msra.mxu0 0
      %276 = vmatprep.subr.bf16.mxu0 0
      %277 = vmatpush2.bf16.msra.mxu0 0
      %278 = vmatprep.subr.bf16.mxu0 0
      %279 = vmatpush2.bf16.msra.mxu0 0
      %280 = vmatprep.subr.bf16.mxu0 0
      %281 = vmatpush2.bf16.msra.mxu0 0
      %282 = vmatprep.subr.bf16.mxu0 0
      %283 = vmatpush2.bf16.msra.mxu0 0
      %284 = vmatprep.subr.bf16.mxu0 0
      %285 = vmatpush2.bf16.msra.mxu0 0
      %286 = vmatprep.subr.bf16.mxu0 0
      %287 = vmatpush2.bf16.msra.mxu0 0
      %288 = vmatprep.subr.bf16.mxu0 0
      %289 = vmatpush2.bf16.msra.mxu0 0
      %290 = vmatprep.mubr.bf16.mxu0 0
      %291 = vmatmul.mubr.bf16.gmra.mxu0 %v256
      %v292 = vpop.f32.mrf.mxu0
      %v293 = vadd.f32 %v244, %v292
      %v294 = vpop.f32.mrf.mxu0
      %v295 = vpop.f32.mrf.mxu0
      %v296 = vpop.f32.mrf.mxu0
      %297 = vdwg.mxu0
      %s298 = scalar_lea.vmem %s165, 8
      %v299 = vld [vmem:[%s298] sm:$0xf]
      %v302 = vunpack.c.l.b16 %v178
      %v303 = vunpack.c.l.b16 %v179
      %v304 = vpack.c.b16 %v303, %v302
      %v307 = vsel %vm205, %v299, 0
      %309 = vmatprep.subr.bf16.mxu0 0
      %310 = vmatpush1.bf16.msra.mxu0 0
      %311 = vmatprep.subr.bf16.mxu0 0
      %312 = vmatpush1.bf16.msra.mxu0 0
      %313 = vmatprep.subr.bf16.mxu0 0
      %314 = vmatpush1.bf16.msra.mxu0 0
      %315 = vmatprep.subr.bf16.mxu0 0
      %316 = vmatpush1.bf16.msra.mxu0 0
      %317 = vmatprep.subr.bf16.mxu0 0
      %318 = vmatpush1.bf16.msra.mxu0 0
      %319 = vmatprep.subr.bf16.mxu0 0
      %320 = vmatpush1.bf16.msra.mxu0 0
      %321 = vmatprep.subr.bf16.mxu0 0
      %322 = vmatpush1.bf16.msra.mxu0 0
      %323 = vmatprep.subr.bf16.mxu0 0
      %324 = vmatpush1.bf16.msra.mxu0 %v304
      %325 = vmatprep.subr.bf16.mxu0 0
      %326 = vmatpush2.bf16.msra.mxu0 0
      %327 = vmatprep.subr.bf16.mxu0 0
      %328 = vmatpush2.bf16.msra.mxu0 0
      %329 = vmatprep.subr.bf16.mxu0 0
      %330 = vmatpush2.bf16.msra.mxu0 0
      %331 = vmatprep.subr.bf16.mxu0 0
      %332 = vmatpush2.bf16.msra.mxu0 0
      %333 = vmatprep.subr.bf16.mxu0 0
      %334 = vmatpush2.bf16.msra.mxu0 0
      %335 = vmatprep.subr.bf16.mxu0 0
      %336 = vmatpush2.bf16.msra.mxu0 0
      %337 = vmatprep.subr.bf16.mxu0 0
      %338 = vmatpush2.bf16.msra.mxu0 0
      %339 = vmatprep.subr.bf16.mxu0 0
      %340 = vmatpush2.bf16.msra.mxu0 0
      %341 = vmatprep.mubr.bf16.mxu0 0
      %342 = vmatmul.mubr.bf16.gmra.mxu0 %v307
      %v343 = vpop.f32.mrf.mxu0
      %v344 = vadd.f32 0.0, %v343
      %v345 = vpop.f32.mrf.mxu0
      %v346 = vpop.f32.mrf.mxu0
      %v347 = vpop.f32.mrf.mxu0
      %348 = vdwg.mxu0
      %v349 = vadd.f32 %v293, %v344
      %v350 = vld [vmem:[%s298] sm:$0xf]
      %v351 = vld [vmem:[%s298 + $0x4] sm:$0x1]
      %v354 = vunpack.c.l.b16 %v350
      %v355 = vunpack.c.l.b16 %v351
      %v356 = vpack.c.b16 %v355, %v354
      %v358 = vshrl.u32 %v356, 16
      %v360 = vshll.u32 %v356, 16
      %v362 = vrot.slane %v360, 1
      %v363 = vor.u32 %v358, %v362
      %v366 = vunpack.c.l.b16 %v181
      %v367 = vunpack.c.l.b16 %v182
      %v368 = vpack.c.b16 %v367, %v366
      %v371 = vsel %vm205, %v363, 0
      %373 = vmatprep.subr.bf16.mxu0 0
      %374 = vmatpush1.bf16.msra.mxu0 0
      %375 = vmatprep.subr.bf16.mxu0 0
      %376 = vmatpush1.bf16.msra.mxu0 0
      %377 = vmatprep.subr.bf16.mxu0 0
      %378 = vmatpush1.bf16.msra.mxu0 0
      %379 = vmatprep.subr.bf16.mxu0 0
      %380 = vmatpush1.bf16.msra.mxu0 0
      %381 = vmatprep.subr.bf16.mxu0 0
      %382 = vmatpush1.bf16.msra.mxu0 0
      %383 = vmatprep.subr.bf16.mxu0 0
      %384 = vmatpush1.bf16.msra.mxu0 0
      %385 = vmatprep.subr.bf16.mxu0 0
      %386 = vmatpush1.bf16.msra.mxu0 0
      %387 = vmatprep.subr.bf16.mxu0 0
      %388 = vmatpush1.bf16.msra.mxu0 %v368
      %389 = vmatprep.subr.bf16.mxu0 0
      %390 = vmatpush2.bf16.msra.mxu0 0
      %391 = vmatprep.subr.bf16.mxu0 0
      %392 = vmatpush2.bf16.msra.mxu0 0
      %393 = vmatprep.subr.bf16.mxu0 0
      %394 = vmatpush2.bf16.msra.mxu0 0
      %395 = vmatprep.subr.bf16.mxu0 0
      %396 = vmatpush2.bf16.msra.mxu0 0
      %397 = vmatprep.subr.bf16.mxu0 0
      %398 = vmatpush2.bf16.msra.mxu0 0
      %399 = vmatprep.subr.bf16.mxu0 0
      %400 = vmatpush2.bf16.msra.mxu0 0
      %401 = vmatprep.subr.bf16.mxu0 0
      %402 = vmatpush2.bf16.msra.mxu0 0
      %403 = vmatprep.subr.bf16.mxu0 0
      %404 = vmatpush2.bf16.msra.mxu0 0
      %405 = vmatprep.mubr.bf16.mxu0 0
      %406 = vmatmul.mubr.bf16.gmra.mxu0 %v371
      %v407 = vpop.f32.mrf.mxu0
      %v408 = vadd.f32 0.0, %v407
      %v409 = vpop.f32.mrf.mxu0
      %v410 = vpop.f32.mrf.mxu0
      %v411 = vpop.f32.mrf.mxu0
      %412 = vdwg.mxu0
      %v413 = vadd.f32 %v349, %v408
      %v414 = vlaneseq
      %v415 = vshrl.u32 %v414, 7
      %v416 = vsub.s32 0, %v415
      %v417 = vrot.slane %v183, %v416
      %v418 = vmul.f32 %v413, %v417
      %v419 = vlaneseq
      %v420 = vshrl.u32 %v419, 7
      %v421 = vsub.s32 0, %v420
      %v422 = vrot.slane %v184, %v421
      %v423 = vadd.f32 %v418, %v422
      %vm424 = vcmp.ge.f32.partialorder %v423, 0.0
      %v425 = vmul.f32 %v423, 0.2
      %v426 = vsel %vm424, %v423, %v425
      %427 = vst [vmem:[%s170] sm:$0xff] %v426
      %v428 = vld [vmem:[%s298] sm:$0xf]
      %v429 = vld [vmem:[%s298 + $0x4] sm:$0x1]
      %v432 = vunpack.c.l.b16 %v428
      %v433 = vunpack.c.l.b16 %v429
      %v434 = vpack.c.b16 %v433, %v432
      %v436 = vshrl.u32 %v434, 16
      %v438 = vshll.u32 %v434, 16
      %v440 = vrot.slane %v438, 1
      %v441 = vor.u32 %v436, %v440
      %v443 = vsel %vm205, %v441, 0
      %445 = vmatprep.subr.bf16.mxu0 0
      %446 = vmatpush1.bf16.msra.mxu0 0
      %447 = vmatprep.subr.bf16.mxu0 0
      %448 = vmatpush1.bf16.msra.mxu0 0
      %449 = vmatprep.subr.bf16.mxu0 0
      %450 = vmatpush1.bf16.msra.mxu0 0
      %451 = vmatprep.subr.bf16.mxu0 0
      %452 = vmatpush1.bf16.msra.mxu0 0
      %453 = vmatprep.subr.bf16.mxu0 0
      %454 = vmatpush1.bf16.msra.mxu0 0
      %455 = vmatprep.subr.bf16.mxu0 0
      %456 = vmatpush1.bf16.msra.mxu0 0
      %457 = vmatprep.subr.bf16.mxu0 0
      %458 = vmatpush1.bf16.msra.mxu0 0
      %459 = vmatprep.subr.bf16.mxu0 0
      %460 = vmatpush1.bf16.msra.mxu0 %v203
      %461 = vmatprep.subr.bf16.mxu0 0
      %462 = vmatpush2.bf16.msra.mxu0 0
      %463 = vmatprep.subr.bf16.mxu0 0
      %464 = vmatpush2.bf16.msra.mxu0 0
      %465 = vmatprep.subr.bf16.mxu0 0
      %466 = vmatpush2.bf16.msra.mxu0 0
      %467 = vmatprep.subr.bf16.mxu0 0
      %468 = vmatpush2.bf16.msra.mxu0 0
      %469 = vmatprep.subr.bf16.mxu0 0
      %470 = vmatpush2.bf16.msra.mxu0 0
      %471 = vmatprep.subr.bf16.mxu0 0
      %472 = vmatpush2.bf16.msra.mxu0 0
      %473 = vmatprep.subr.bf16.mxu0 0
      %474 = vmatpush2.bf16.msra.mxu0 0
      %475 = vmatprep.subr.bf16.mxu0 0
      %476 = vmatpush2.bf16.msra.mxu0 0
      %477 = vmatprep.mubr.bf16.mxu0 0
      %478 = vmatmul.mubr.bf16.gmra.mxu0 %v443
      %v479 = vpop.f32.mrf.mxu0
      %v480 = vadd.f32 0.0, %v479
      %v481 = vpop.f32.mrf.mxu0
      %v482 = vpop.f32.mrf.mxu0
      %v483 = vpop.f32.mrf.mxu0
      %484 = vdwg.mxu0
      %v486 = vsel %vm205, %v428, 0
      %488 = vmatprep.subr.bf16.mxu0 0
      %489 = vmatpush1.bf16.msra.mxu0 0
      %490 = vmatprep.subr.bf16.mxu0 0
      %491 = vmatpush1.bf16.msra.mxu0 0
      %492 = vmatprep.subr.bf16.mxu0 0
      %493 = vmatpush1.bf16.msra.mxu0 0
      %494 = vmatprep.subr.bf16.mxu0 0
      %495 = vmatpush1.bf16.msra.mxu0 0
      %496 = vmatprep.subr.bf16.mxu0 0
      %497 = vmatpush1.bf16.msra.mxu0 0
      %498 = vmatprep.subr.bf16.mxu0 0
      %499 = vmatpush1.bf16.msra.mxu0 0
      %500 = vmatprep.subr.bf16.mxu0 0
      %501 = vmatpush1.bf16.msra.mxu0 0
      %502 = vmatprep.subr.bf16.mxu0 0
      %503 = vmatpush1.bf16.msra.mxu0 %v253
      %504 = vmatprep.subr.bf16.mxu0 0
      %505 = vmatpush2.bf16.msra.mxu0 0
      %506 = vmatprep.subr.bf16.mxu0 0
      %507 = vmatpush2.bf16.msra.mxu0 0
      %508 = vmatprep.subr.bf16.mxu0 0
      %509 = vmatpush2.bf16.msra.mxu0 0
      %510 = vmatprep.subr.bf16.mxu0 0
      %511 = vmatpush2.bf16.msra.mxu0 0
      %512 = vmatprep.subr.bf16.mxu0 0
      %513 = vmatpush2.bf16.msra.mxu0 0
      %514 = vmatprep.subr.bf16.mxu0 0
      %515 = vmatpush2.bf16.msra.mxu0 0
      %516 = vmatprep.subr.bf16.mxu0 0
      %517 = vmatpush2.bf16.msra.mxu0 0
      %518 = vmatprep.subr.bf16.mxu0 0
      %519 = vmatpush2.bf16.msra.mxu0 0
      %520 = vmatprep.mubr.bf16.mxu0 0
      %521 = vmatmul.mubr.bf16.gmra.mxu0 %v486
      %v522 = vpop.f32.mrf.mxu0
      %v523 = vadd.f32 %v480, %v522
      %v524 = vpop.f32.mrf.mxu0
      %v525 = vpop.f32.mrf.mxu0
      %v526 = vpop.f32.mrf.mxu0
      %527 = vdwg.mxu0
      %s528 = scalar_lea.vmem %s165, 16
      %v529 = vld [vmem:[%s528] sm:$0xf]
      %v531 = vsel %vm205, %v529, 0
      %533 = vmatprep.subr.bf16.mxu0 0
      %534 = vmatpush1.bf16.msra.mxu0 0
      %535 = vmatprep.subr.bf16.mxu0 0
      %536 = vmatpush1.bf16.msra.mxu0 0
      %537 = vmatprep.subr.bf16.mxu0 0
      %538 = vmatpush1.bf16.msra.mxu0 0
      %539 = vmatprep.subr.bf16.mxu0 0
      %540 = vmatpush1.bf16.msra.mxu0 0
      %541 = vmatprep.subr.bf16.mxu0 0
      %542 = vmatpush1.bf16.msra.mxu0 0
      %543 = vmatprep.subr.bf16.mxu0 0
      %544 = vmatpush1.bf16.msra.mxu0 0
      %545 = vmatprep.subr.bf16.mxu0 0
      %546 = vmatpush1.bf16.msra.mxu0 0
      %547 = vmatprep.subr.bf16.mxu0 0
      %548 = vmatpush1.bf16.msra.mxu0 %v304
      %549 = vmatprep.subr.bf16.mxu0 0
      %550 = vmatpush2.bf16.msra.mxu0 0
      %551 = vmatprep.subr.bf16.mxu0 0
      %552 = vmatpush2.bf16.msra.mxu0 0
      %553 = vmatprep.subr.bf16.mxu0 0
      %554 = vmatpush2.bf16.msra.mxu0 0
      %555 = vmatprep.subr.bf16.mxu0 0
      %556 = vmatpush2.bf16.msra.mxu0 0
      %557 = vmatprep.subr.bf16.mxu0 0
      %558 = vmatpush2.bf16.msra.mxu0 0
      %559 = vmatprep.subr.bf16.mxu0 0
      %560 = vmatpush2.bf16.msra.mxu0 0
      %561 = vmatprep.subr.bf16.mxu0 0
      %562 = vmatpush2.bf16.msra.mxu0 0
      %563 = vmatprep.subr.bf16.mxu0 0
      %564 = vmatpush2.bf16.msra.mxu0 0
      %565 = vmatprep.mubr.bf16.mxu0 0
      %566 = vmatmul.mubr.bf16.gmra.mxu0 %v531
      %v567 = vpop.f32.mrf.mxu0
      %v568 = vadd.f32 0.0, %v567
      %v569 = vpop.f32.mrf.mxu0
      %v570 = vpop.f32.mrf.mxu0
      %v571 = vpop.f32.mrf.mxu0
      %572 = vdwg.mxu0
      %v573 = vadd.f32 %v523, %v568
      %v574 = vld [vmem:[%s528] sm:$0xf]
      %v575 = vld [vmem:[%s528 + $0x4] sm:$0x1]
      %v578 = vunpack.c.l.b16 %v574
      %v579 = vunpack.c.l.b16 %v575
      %v580 = vpack.c.b16 %v579, %v578
      %v582 = vshrl.u32 %v580, 16
      %v584 = vshll.u32 %v580, 16
      %v586 = vrot.slane %v584, 1
      %v587 = vor.u32 %v582, %v586
      %v589 = vsel %vm205, %v587, 0
      %591 = vmatprep.subr.bf16.mxu0 0
      %592 = vmatpush1.bf16.msra.mxu0 0
      %593 = vmatprep.subr.bf16.mxu0 0
      %594 = vmatpush1.bf16.msra.mxu0 0
      %595 = vmatprep.subr.bf16.mxu0 0
      %596 = vmatpush1.bf16.msra.mxu0 0
      %597 = vmatprep.subr.bf16.mxu0 0
      %598 = vmatpush1.bf16.msra.mxu0 0
      %599 = vmatprep.subr.bf16.mxu0 0
      %600 = vmatpush1.bf16.msra.mxu0 0
      %601 = vmatprep.subr.bf16.mxu0 0
      %602 = vmatpush1.bf16.msra.mxu0 0
      %603 = vmatprep.subr.bf16.mxu0 0
      %604 = vmatpush1.bf16.msra.mxu0 0
      %605 = vmatprep.subr.bf16.mxu0 0
      %606 = vmatpush1.bf16.msra.mxu0 %v368
      %607 = vmatprep.subr.bf16.mxu0 0
      %608 = vmatpush2.bf16.msra.mxu0 0
      %609 = vmatprep.subr.bf16.mxu0 0
      %610 = vmatpush2.bf16.msra.mxu0 0
      %611 = vmatprep.subr.bf16.mxu0 0
      %612 = vmatpush2.bf16.msra.mxu0 0
      %613 = vmatprep.subr.bf16.mxu0 0
      %614 = vmatpush2.bf16.msra.mxu0 0
      %615 = vmatprep.subr.bf16.mxu0 0
      %616 = vmatpush2.bf16.msra.mxu0 0
      %617 = vmatprep.subr.bf16.mxu0 0
      %618 = vmatpush2.bf16.msra.mxu0 0
      %619 = vmatprep.subr.bf16.mxu0 0
      %620 = vmatpush2.bf16.msra.mxu0 0
      %621 = vmatprep.subr.bf16.mxu0 0
      %622 = vmatpush2.bf16.msra.mxu0 0
      %623 = vmatprep.mubr.bf16.mxu0 0
      %624 = vmatmul.mubr.bf16.gmra.mxu0 %v589
      %v625 = vpop.f32.mrf.mxu0
      %v626 = vadd.f32 0.0, %v625
      %v627 = vpop.f32.mrf.mxu0
      %v628 = vpop.f32.mrf.mxu0
      %v629 = vpop.f32.mrf.mxu0
      %630 = vdwg.mxu0
      %v631 = vadd.f32 %v573, %v626
      %v632 = vmul.f32 %v631, %v417
      %v633 = vadd.f32 %v632, %v422
      %vm634 = vcmp.ge.f32.partialorder %v633, 0.0
      %v635 = vmul.f32 %v633, 0.2
      %v636 = vsel %vm634, %v633, %v635
      %s637 = scalar_lea.vmem %s170, 8
      %638 = vst [vmem:[%s637] sm:$0xff] %v636
      %v639 = vld [vmem:[%s528] sm:$0xf]
      %v640 = vld [vmem:[%s528 + $0x4] sm:$0x1]
      %v643 = vunpack.c.l.b16 %v639
      %v644 = vunpack.c.l.b16 %v640
      %v645 = vpack.c.b16 %v644, %v643
      %v647 = vshrl.u32 %v645, 16
      %v649 = vshll.u32 %v645, 16
      %v651 = vrot.slane %v649, 1
      %v652 = vor.u32 %v647, %v651
      %v654 = vsel %vm205, %v652, 0
      %656 = vmatprep.subr.bf16.mxu0 0
      %657 = vmatpush1.bf16.msra.mxu0 0
      %658 = vmatprep.subr.bf16.mxu0 0
      %659 = vmatpush1.bf16.msra.mxu0 0
      %660 = vmatprep.subr.bf16.mxu0 0
      %661 = vmatpush1.bf16.msra.mxu0 0
      %662 = vmatprep.subr.bf16.mxu0 0
      %663 = vmatpush1.bf16.msra.mxu0 0
      %664 = vmatprep.subr.bf16.mxu0 0
      %665 = vmatpush1.bf16.msra.mxu0 0
      %666 = vmatprep.subr.bf16.mxu0 0
      %667 = vmatpush1.bf16.msra.mxu0 0
      %668 = vmatprep.subr.bf16.mxu0 0
      %669 = vmatpush1.bf16.msra.mxu0 0
      %670 = vmatprep.subr.bf16.mxu0 0
      %671 = vmatpush1.bf16.msra.mxu0 %v203
      %672 = vmatprep.subr.bf16.mxu0 0
      %673 = vmatpush2.bf16.msra.mxu0 0
      %674 = vmatprep.subr.bf16.mxu0 0
      %675 = vmatpush2.bf16.msra.mxu0 0
      %676 = vmatprep.subr.bf16.mxu0 0
      %677 = vmatpush2.bf16.msra.mxu0 0
      %678 = vmatprep.subr.bf16.mxu0 0
      %679 = vmatpush2.bf16.msra.mxu0 0
      %680 = vmatprep.subr.bf16.mxu0 0
      %681 = vmatpush2.bf16.msra.mxu0 0
      %682 = vmatprep.subr.bf16.mxu0 0
      %683 = vmatpush2.bf16.msra.mxu0 0
      %684 = vmatprep.subr.bf16.mxu0 0
      %685 = vmatpush2.bf16.msra.mxu0 0
      %686 = vmatprep.subr.bf16.mxu0 0
      %687 = vmatpush2.bf16.msra.mxu0 0
      %688 = vmatprep.mubr.bf16.mxu0 0
      %689 = vmatmul.mubr.bf16.gmra.mxu0 %v654
      %v690 = vpop.f32.mrf.mxu0
      %v691 = vadd.f32 0.0, %v690
      %v692 = vpop.f32.mrf.mxu0
      %v693 = vpop.f32.mrf.mxu0
      %v694 = vpop.f32.mrf.mxu0
      %695 = vdwg.mxu0
      %v697 = vsel %vm205, %v639, 0
      %699 = vmatprep.subr.bf16.mxu0 0
      %700 = vmatpush1.bf16.msra.mxu0 0
      %701 = vmatprep.subr.bf16.mxu0 0
      %702 = vmatpush1.bf16.msra.mxu0 0
      %703 = vmatprep.subr.bf16.mxu0 0
      %704 = vmatpush1.bf16.msra.mxu0 0
      %705 = vmatprep.subr.bf16.mxu0 0
      %706 = vmatpush1.bf16.msra.mxu0 0
      %707 = vmatprep.subr.bf16.mxu0 0
      %708 = vmatpush1.bf16.msra.mxu0 0
      %709 = vmatprep.subr.bf16.mxu0 0
      %710 = vmatpush1.bf16.msra.mxu0 0
      %711 = vmatprep.subr.bf16.mxu0 0
      %712 = vmatpush1.bf16.msra.mxu0 0
      %713 = vmatprep.subr.bf16.mxu0 0
      %714 = vmatpush1.bf16.msra.mxu0 %v253
      %715 = vmatprep.subr.bf16.mxu0 0
      %716 = vmatpush2.bf16.msra.mxu0 0
      %717 = vmatprep.subr.bf16.mxu0 0
      %718 = vmatpush2.bf16.msra.mxu0 0
      %719 = vmatprep.subr.bf16.mxu0 0
      %720 = vmatpush2.bf16.msra.mxu0 0
      %721 = vmatprep.subr.bf16.mxu0 0
      %722 = vmatpush2.bf16.msra.mxu0 0
      %723 = vmatprep.subr.bf16.mxu0 0
      %724 = vmatpush2.bf16.msra.mxu0 0
      %725 = vmatprep.subr.bf16.mxu0 0
      %726 = vmatpush2.bf16.msra.mxu0 0
      %727 = vmatprep.subr.bf16.mxu0 0
      %728 = vmatpush2.bf16.msra.mxu0 0
      %729 = vmatprep.subr.bf16.mxu0 0
      %730 = vmatpush2.bf16.msra.mxu0 0
      %731 = vmatprep.mubr.bf16.mxu0 0
      %732 = vmatmul.mubr.bf16.gmra.mxu0 %v697
      %v733 = vpop.f32.mrf.mxu0
      %v734 = vadd.f32 %v691, %v733
      %v735 = vpop.f32.mrf.mxu0
      %v736 = vpop.f32.mrf.mxu0
      %v737 = vpop.f32.mrf.mxu0
      %738 = vdwg.mxu0
      %s739 = scalar_lea.vmem %s165, 24
      %v740 = vld [vmem:[%s739] sm:$0xf]
      %v742 = vsel %vm205, %v740, 0
      %744 = vmatprep.subr.bf16.mxu0 0
      %745 = vmatpush1.bf16.msra.mxu0 0
      %746 = vmatprep.subr.bf16.mxu0 0
      %747 = vmatpush1.bf16.msra.mxu0 0
      %748 = vmatprep.subr.bf16.mxu0 0
      %749 = vmatpush1.bf16.msra.mxu0 0
      %750 = vmatprep.subr.bf16.mxu0 0
      %751 = vmatpush1.bf16.msra.mxu0 0
      %752 = vmatprep.subr.bf16.mxu0 0
      %753 = vmatpush1.bf16.msra.mxu0 0
      %754 = vmatprep.subr.bf16.mxu0 0
      %755 = vmatpush1.bf16.msra.mxu0 0
      %756 = vmatprep.subr.bf16.mxu0 0
      %757 = vmatpush1.bf16.msra.mxu0 0
      %758 = vmatprep.subr.bf16.mxu0 0
      %759 = vmatpush1.bf16.msra.mxu0 %v304
      %760 = vmatprep.subr.bf16.mxu0 0
      %761 = vmatpush2.bf16.msra.mxu0 0
      %762 = vmatprep.subr.bf16.mxu0 0
      %763 = vmatpush2.bf16.msra.mxu0 0
      %764 = vmatprep.subr.bf16.mxu0 0
      %765 = vmatpush2.bf16.msra.mxu0 0
      %766 = vmatprep.subr.bf16.mxu0 0
      %767 = vmatpush2.bf16.msra.mxu0 0
      %768 = vmatprep.subr.bf16.mxu0 0
      %769 = vmatpush2.bf16.msra.mxu0 0
      %770 = vmatprep.subr.bf16.mxu0 0
      %771 = vmatpush2.bf16.msra.mxu0 0
      %772 = vmatprep.subr.bf16.mxu0 0
      %773 = vmatpush2.bf16.msra.mxu0 0
      %774 = vmatprep.subr.bf16.mxu0 0
      %775 = vmatpush2.bf16.msra.mxu0 0
      %776 = vmatprep.mubr.bf16.mxu0 0
      %777 = vmatmul.mubr.bf16.gmra.mxu0 %v742
      %v778 = vpop.f32.mrf.mxu0
      %v779 = vadd.f32 0.0, %v778
      %v780 = vpop.f32.mrf.mxu0
      %v781 = vpop.f32.mrf.mxu0
      %v782 = vpop.f32.mrf.mxu0
      %783 = vdwg.mxu0
      %v784 = vadd.f32 %v734, %v779
      %v785 = vld [vmem:[%s739] sm:$0xf]
      %v786 = vld [vmem:[%s739 + $0x4] sm:$0x1]
      %v789 = vunpack.c.l.b16 %v785
      %v790 = vunpack.c.l.b16 %v786
      %v791 = vpack.c.b16 %v790, %v789
      %v793 = vshrl.u32 %v791, 16
      %v795 = vshll.u32 %v791, 16
      %v797 = vrot.slane %v795, 1
      %v798 = vor.u32 %v793, %v797
      %v800 = vsel %vm205, %v798, 0
      %802 = vmatprep.subr.bf16.mxu0 0
      %803 = vmatpush1.bf16.msra.mxu0 0
      %804 = vmatprep.subr.bf16.mxu0 0
      %805 = vmatpush1.bf16.msra.mxu0 0
      %806 = vmatprep.subr.bf16.mxu0 0
      %807 = vmatpush1.bf16.msra.mxu0 0
      %808 = vmatprep.subr.bf16.mxu0 0
      %809 = vmatpush1.bf16.msra.mxu0 0
      %810 = vmatprep.subr.bf16.mxu0 0
      %811 = vmatpush1.bf16.msra.mxu0 0
      %812 = vmatprep.subr.bf16.mxu0 0
      %813 = vmatpush1.bf16.msra.mxu0 0
      %814 = vmatprep.subr.bf16.mxu0 0
      %815 = vmatpush1.bf16.msra.mxu0 0
      %816 = vmatprep.subr.bf16.mxu0 0
      %817 = vmatpush1.bf16.msra.mxu0 %v368
      %818 = vmatprep.subr.bf16.mxu0 0
      %819 = vmatpush2.bf16.msra.mxu0 0
      %820 = vmatprep.subr.bf16.mxu0 0
      %821 = vmatpush2.bf16.msra.mxu0 0
      %822 = vmatprep.subr.bf16.mxu0 0
      %823 = vmatpush2.bf16.msra.mxu0 0
      %824 = vmatprep.subr.bf16.mxu0 0
      %825 = vmatpush2.bf16.msra.mxu0 0
      %826 = vmatprep.subr.bf16.mxu0 0
      %827 = vmatpush2.bf16.msra.mxu0 0
      %828 = vmatprep.subr.bf16.mxu0 0
      %829 = vmatpush2.bf16.msra.mxu0 0
      %830 = vmatprep.subr.bf16.mxu0 0
      %831 = vmatpush2.bf16.msra.mxu0 0
      %832 = vmatprep.subr.bf16.mxu0 0
      %833 = vmatpush2.bf16.msra.mxu0 0
      %834 = vmatprep.mubr.bf16.mxu0 0
      %835 = vmatmul.mubr.bf16.gmra.mxu0 %v800
      %v836 = vpop.f32.mrf.mxu0
      %v837 = vadd.f32 0.0, %v836
      %v838 = vpop.f32.mrf.mxu0
      %v839 = vpop.f32.mrf.mxu0
      %v840 = vpop.f32.mrf.mxu0
      %841 = vdwg.mxu0
      %v842 = vadd.f32 %v784, %v837
      %v843 = vmul.f32 %v842, %v417
      %v844 = vadd.f32 %v843, %v422
      %vm845 = vcmp.ge.f32.partialorder %v844, 0.0
      %v846 = vmul.f32 %v844, 0.2
      %v847 = vsel %vm845, %v844, %v846
      %s848 = scalar_lea.vmem %s170, 16
      %849 = vst [vmem:[%s848] sm:$0xff] %v847
      %v850 = vld [vmem:[%s739] sm:$0xf]
      %v851 = vld [vmem:[%s739 + $0x4] sm:$0x1]
      %v854 = vunpack.c.l.b16 %v850
      %v855 = vunpack.c.l.b16 %v851
      %v856 = vpack.c.b16 %v855, %v854
      %v858 = vshrl.u32 %v856, 16
      %v860 = vshll.u32 %v856, 16
      %v862 = vrot.slane %v860, 1
      %v863 = vor.u32 %v858, %v862
      %v865 = vsel %vm205, %v863, 0
      %867 = vmatprep.subr.bf16.mxu0 0
      %868 = vmatpush1.bf16.msra.mxu0 0
      %869 = vmatprep.subr.bf16.mxu0 0
      %870 = vmatpush1.bf16.msra.mxu0 0
      %871 = vmatprep.subr.bf16.mxu0 0
      %872 = vmatpush1.bf16.msra.mxu0 0
      %873 = vmatprep.subr.bf16.mxu0 0
      %874 = vmatpush1.bf16.msra.mxu0 0
      %875 = vmatprep.subr.bf16.mxu0 0
      %876 = vmatpush1.bf16.msra.mxu0 0
      %877 = vmatprep.subr.bf16.mxu0 0
      %878 = vmatpush1.bf16.msra.mxu0 0
      %879 = vmatprep.subr.bf16.mxu0 0
      %880 = vmatpush1.bf16.msra.mxu0 0
      %881 = vmatprep.subr.bf16.mxu0 0
      %882 = vmatpush1.bf16.msra.mxu0 %v203
      %883 = vmatprep.subr.bf16.mxu0 0
      %884 = vmatpush2.bf16.msra.mxu0 0
      %885 = vmatprep.subr.bf16.mxu0 0
      %886 = vmatpush2.bf16.msra.mxu0 0
      %887 = vmatprep.subr.bf16.mxu0 0
      %888 = vmatpush2.bf16.msra.mxu0 0
      %889 = vmatprep.subr.bf16.mxu0 0
      %890 = vmatpush2.bf16.msra.mxu0 0
      %891 = vmatprep.subr.bf16.mxu0 0
      %892 = vmatpush2.bf16.msra.mxu0 0
      %893 = vmatprep.subr.bf16.mxu0 0
      %894 = vmatpush2.bf16.msra.mxu0 0
      %895 = vmatprep.subr.bf16.mxu0 0
      %896 = vmatpush2.bf16.msra.mxu0 0
      %897 = vmatprep.subr.bf16.mxu0 0
      %898 = vmatpush2.bf16.msra.mxu0 0
      %899 = vmatprep.mubr.bf16.mxu0 0
      %900 = vmatmul.mubr.bf16.gmra.mxu0 %v865
      %v901 = vpop.f32.mrf.mxu0
      %v902 = vadd.f32 0.0, %v901
      %v903 = vpop.f32.mrf.mxu0
      %v904 = vpop.f32.mrf.mxu0
      %v905 = vpop.f32.mrf.mxu0
      %906 = vdwg.mxu0
      %v908 = vsel %vm205, %v850, 0
      %910 = vmatprep.subr.bf16.mxu0 0
      %911 = vmatpush1.bf16.msra.mxu0 0
      %912 = vmatprep.subr.bf16.mxu0 0
      %913 = vmatpush1.bf16.msra.mxu0 0
      %914 = vmatprep.subr.bf16.mxu0 0
      %915 = vmatpush1.bf16.msra.mxu0 0
      %916 = vmatprep.subr.bf16.mxu0 0
      %917 = vmatpush1.bf16.msra.mxu0 0
      %918 = vmatprep.subr.bf16.mxu0 0
      %919 = vmatpush1.bf16.msra.mxu0 0
      %920 = vmatprep.subr.bf16.mxu0 0
      %921 = vmatpush1.bf16.msra.mxu0 0
      %922 = vmatprep.subr.bf16.mxu0 0
      %923 = vmatpush1.bf16.msra.mxu0 0
      %924 = vmatprep.subr.bf16.mxu0 0
      %925 = vmatpush1.bf16.msra.mxu0 %v253
      %926 = vmatprep.subr.bf16.mxu0 0
      %927 = vmatpush2.bf16.msra.mxu0 0
      %928 = vmatprep.subr.bf16.mxu0 0
      %929 = vmatpush2.bf16.msra.mxu0 0
      %930 = vmatprep.subr.bf16.mxu0 0
      %931 = vmatpush2.bf16.msra.mxu0 0
      %932 = vmatprep.subr.bf16.mxu0 0
      %933 = vmatpush2.bf16.msra.mxu0 0
      %934 = vmatprep.subr.bf16.mxu0 0
      %935 = vmatpush2.bf16.msra.mxu0 0
      %936 = vmatprep.subr.bf16.mxu0 0
      %937 = vmatpush2.bf16.msra.mxu0 0
      %938 = vmatprep.subr.bf16.mxu0 0
      %939 = vmatpush2.bf16.msra.mxu0 0
      %940 = vmatprep.subr.bf16.mxu0 0
      %941 = vmatpush2.bf16.msra.mxu0 0
      %942 = vmatprep.mubr.bf16.mxu0 0
      %943 = vmatmul.mubr.bf16.gmra.mxu0 %v908
      %v944 = vpop.f32.mrf.mxu0
      %v945 = vadd.f32 %v902, %v944
      %v946 = vpop.f32.mrf.mxu0
      %v947 = vpop.f32.mrf.mxu0
      %v948 = vpop.f32.mrf.mxu0
      %949 = vdwg.mxu0
      %s950 = scalar_lea.vmem %s165, 32
      %v951 = vld [vmem:[%s950] sm:$0xf]
      %v953 = vsel %vm205, %v951, 0
      %955 = vmatprep.subr.bf16.mxu0 0
      %956 = vmatpush1.bf16.msra.mxu0 0
      %957 = vmatprep.subr.bf16.mxu0 0
      %958 = vmatpush1.bf16.msra.mxu0 0
      %959 = vmatprep.subr.bf16.mxu0 0
      %960 = vmatpush1.bf16.msra.mxu0 0
      %961 = vmatprep.subr.bf16.mxu0 0
      %962 = vmatpush1.bf16.msra.mxu0 0
      %963 = vmatprep.subr.bf16.mxu0 0
      %964 = vmatpush1.bf16.msra.mxu0 0
      %965 = vmatprep.subr.bf16.mxu0 0
      %966 = vmatpush1.bf16.msra.mxu0 0
      %967 = vmatprep.subr.bf16.mxu0 0
      %968 = vmatpush1.bf16.msra.mxu0 0
      %969 = vmatprep.subr.bf16.mxu0 0
      %970 = vmatpush1.bf16.msra.mxu0 %v304
      %971 = vmatprep.subr.bf16.mxu0 0
      %972 = vmatpush2.bf16.msra.mxu0 0
      %973 = vmatprep.subr.bf16.mxu0 0
      %974 = vmatpush2.bf16.msra.mxu0 0
      %975 = vmatprep.subr.bf16.mxu0 0
      %976 = vmatpush2.bf16.msra.mxu0 0
      %977 = vmatprep.subr.bf16.mxu0 0
      %978 = vmatpush2.bf16.msra.mxu0 0
      %979 = vmatprep.subr.bf16.mxu0 0
      %980 = vmatpush2.bf16.msra.mxu0 0
      %981 = vmatprep.subr.bf16.mxu0 0
      %982 = vmatpush2.bf16.msra.mxu0 0
      %983 = vmatprep.subr.bf16.mxu0 0
      %984 = vmatpush2.bf16.msra.mxu0 0
      %985 = vmatprep.subr.bf16.mxu0 0
      %986 = vmatpush2.bf16.msra.mxu0 0
      %987 = vmatprep.mubr.bf16.mxu0 0
      %988 = vmatmul.mubr.bf16.gmra.mxu0 %v953
      %v989 = vpop.f32.mrf.mxu0
      %v990 = vadd.f32 0.0, %v989
      %v991 = vpop.f32.mrf.mxu0
      %v992 = vpop.f32.mrf.mxu0
      %v993 = vpop.f32.mrf.mxu0
      %994 = vdwg.mxu0
      %v995 = vadd.f32 %v945, %v990
      %v996 = vld [vmem:[%s950] sm:$0xf]
      %v997 = vld [vmem:[%s950 + $0x4] sm:$0x1]
      %v1000 = vunpack.c.l.b16 %v996
      %v1001 = vunpack.c.l.b16 %v997
      %v1002 = vpack.c.b16 %v1001, %v1000
      %v1004 = vshrl.u32 %v1002, 16
      %v1006 = vshll.u32 %v1002, 16
      %v1008 = vrot.slane %v1006, 1
      %v1009 = vor.u32 %v1004, %v1008
      %v1011 = vsel %vm205, %v1009, 0
      %1013 = vmatprep.subr.bf16.mxu0 0
      %1014 = vmatpush1.bf16.msra.mxu0 0
      %1015 = vmatprep.subr.bf16.mxu0 0
      %1016 = vmatpush1.bf16.msra.mxu0 0
      %1017 = vmatprep.subr.bf16.mxu0 0
      %1018 = vmatpush1.bf16.msra.mxu0 0
      %1019 = vmatprep.subr.bf16.mxu0 0
      %1020 = vmatpush1.bf16.msra.mxu0 0
      %1021 = vmatprep.subr.bf16.mxu0 0
      %1022 = vmatpush1.bf16.msra.mxu0 0
      %1023 = vmatprep.subr.bf16.mxu0 0
      %1024 = vmatpush1.bf16.msra.mxu0 0
      %1025 = vmatprep.subr.bf16.mxu0 0
      %1026 = vmatpush1.bf16.msra.mxu0 0
      %1027 = vmatprep.subr.bf16.mxu0 0
      %1028 = vmatpush1.bf16.msra.mxu0 %v368
      %1029 = vmatprep.subr.bf16.mxu0 0
      %1030 = vmatpush2.bf16.msra.mxu0 0
      %1031 = vmatprep.subr.bf16.mxu0 0
      %1032 = vmatpush2.bf16.msra.mxu0 0
      %1033 = vmatprep.subr.bf16.mxu0 0
      %1034 = vmatpush2.bf16.msra.mxu0 0
      %1035 = vmatprep.subr.bf16.mxu0 0
      %1036 = vmatpush2.bf16.msra.mxu0 0
      %1037 = vmatprep.subr.bf16.mxu0 0
      %1038 = vmatpush2.bf16.msra.mxu0 0
      %1039 = vmatprep.subr.bf16.mxu0 0
      %1040 = vmatpush2.bf16.msra.mxu0 0
      %1041 = vmatprep.subr.bf16.mxu0 0
      %1042 = vmatpush2.bf16.msra.mxu0 0
      %1043 = vmatprep.subr.bf16.mxu0 0
      %1044 = vmatpush2.bf16.msra.mxu0 0
      %1045 = vmatprep.mubr.bf16.mxu0 0
      %1046 = vmatmul.mubr.bf16.gmra.mxu0 %v1011
      %v1047 = vpop.f32.mrf.mxu0
      %v1048 = vadd.f32 0.0, %v1047
      %v1049 = vpop.f32.mrf.mxu0
      %v1050 = vpop.f32.mrf.mxu0
      %v1051 = vpop.f32.mrf.mxu0
      %1052 = vdwg.mxu0
      %v1053 = vadd.f32 %v995, %v1048
      %v1054 = vmul.f32 %v1053, %v417
      %v1055 = vadd.f32 %v1054, %v422
      %vm1056 = vcmp.ge.f32.partialorder %v1055, 0.0
      %v1057 = vmul.f32 %v1055, 0.2
      %v1058 = vsel %vm1056, %v1055, %v1057
      %s1059 = scalar_lea.vmem %s170, 24
      %1060 = vst [vmem:[%s1059] sm:$0xff] %v1058
      %v1061 = vld [vmem:[%s950] sm:$0xf]
      %v1062 = vld [vmem:[%s950 + $0x4] sm:$0x1]
      %v1065 = vunpack.c.l.b16 %v1061
      %v1066 = vunpack.c.l.b16 %v1062
      %v1067 = vpack.c.b16 %v1066, %v1065
      %v1069 = vshrl.u32 %v1067, 16
      %v1071 = vshll.u32 %v1067, 16
      %v1073 = vrot.slane %v1071, 1
      %v1074 = vor.u32 %v1069, %v1073
      %v1076 = vsel %vm205, %v1074, 0
      %1078 = vmatprep.subr.bf16.mxu0 0
      %1079 = vmatpush1.bf16.msra.mxu0 0
      %1080 = vmatprep.subr.bf16.mxu0 0
      %1081 = vmatpush1.bf16.msra.mxu0 0
      %1082 = vmatprep.subr.bf16.mxu0 0
      %1083 = vmatpush1.bf16.msra.mxu0 0
      %1084 = vmatprep.subr.bf16.mxu0 0
      %1085 = vmatpush1.bf16.msra.mxu0 0
      %1086 = vmatprep.subr.bf16.mxu0 0
      %1087 = vmatpush1.bf16.msra.mxu0 0
      %1088 = vmatprep.subr.bf16.mxu0 0
      %1089 = vmatpush1.bf16.msra.mxu0 0
      %1090 = vmatprep.subr.bf16.mxu0 0
      %1091 = vmatpush1.bf16.msra.mxu0 0
      %1092 = vmatprep.subr.bf16.mxu0 0
      %1093 = vmatpush1.bf16.msra.mxu0 %v203
      %1094 = vmatprep.subr.bf16.mxu0 0
      %1095 = vmatpush2.bf16.msra.mxu0 0
      %1096 = vmatprep.subr.bf16.mxu0 0
      %1097 = vmatpush2.bf16.msra.mxu0 0
      %1098 = vmatprep.subr.bf16.mxu0 0
      %1099 = vmatpush2.bf16.msra.mxu0 0
      %1100 = vmatprep.subr.bf16.mxu0 0
      %1101 = vmatpush2.bf16.msra.mxu0 0
      %1102 = vmatprep.subr.bf16.mxu0 0
      %1103 = vmatpush2.bf16.msra.mxu0 0
      %1104 = vmatprep.subr.bf16.mxu0 0
      %1105 = vmatpush2.bf16.msra.mxu0 0
      %1106 = vmatprep.subr.bf16.mxu0 0
      %1107 = vmatpush2.bf16.msra.mxu0 0
      %1108 = vmatprep.subr.bf16.mxu0 0
      %1109 = vmatpush2.bf16.msra.mxu0 0
      %1110 = vmatprep.mubr.bf16.mxu0 0
      %1111 = vmatmul.mubr.bf16.gmra.mxu0 %v1076
      %v1112 = vpop.f32.mrf.mxu0
      %v1113 = vadd.f32 0.0, %v1112
      %v1114 = vpop.f32.mrf.mxu0
      %v1115 = vpop.f32.mrf.mxu0
      %v1116 = vpop.f32.mrf.mxu0
      %1117 = vdwg.mxu0
      %v1119 = vsel %vm205, %v1061, 0
      %1121 = vmatprep.subr.bf16.mxu0 0
      %1122 = vmatpush1.bf16.msra.mxu0 0
      %1123 = vmatprep.subr.bf16.mxu0 0
      %1124 = vmatpush1.bf16.msra.mxu0 0
      %1125 = vmatprep.subr.bf16.mxu0 0
      %1126 = vmatpush1.bf16.msra.mxu0 0
      %1127 = vmatprep.subr.bf16.mxu0 0
      %1128 = vmatpush1.bf16.msra.mxu0 0
      %1129 = vmatprep.subr.bf16.mxu0 0
      %1130 = vmatpush1.bf16.msra.mxu0 0
      %1131 = vmatprep.subr.bf16.mxu0 0
      %1132 = vmatpush1.bf16.msra.mxu0 0
      %1133 = vmatprep.subr.bf16.mxu0 0
      %1134 = vmatpush1.bf16.msra.mxu0 0
      %1135 = vmatprep.subr.bf16.mxu0 0
      %1136 = vmatpush1.bf16.msra.mxu0 %v253
      %1137 = vmatprep.subr.bf16.mxu0 0
      %1138 = vmatpush2.bf16.msra.mxu0 0
      %1139 = vmatprep.subr.bf16.mxu0 0
      %1140 = vmatpush2.bf16.msra.mxu0 0
      %1141 = vmatprep.subr.bf16.mxu0 0
      %1142 = vmatpush2.bf16.msra.mxu0 0
      %1143 = vmatprep.subr.bf16.mxu0 0
      %1144 = vmatpush2.bf16.msra.mxu0 0
      %1145 = vmatprep.subr.bf16.mxu0 0
      %1146 = vmatpush2.bf16.msra.mxu0 0
      %1147 = vmatprep.subr.bf16.mxu0 0
      %1148 = vmatpush2.bf16.msra.mxu0 0
      %1149 = vmatprep.subr.bf16.mxu0 0
      %1150 = vmatpush2.bf16.msra.mxu0 0
      %1151 = vmatprep.subr.bf16.mxu0 0
      %1152 = vmatpush2.bf16.msra.mxu0 0
      %1153 = vmatprep.mubr.bf16.mxu0 0
      %1154 = vmatmul.mubr.bf16.gmra.mxu0 %v1119
      %v1155 = vpop.f32.mrf.mxu0
      %v1156 = vadd.f32 %v1113, %v1155
      %v1157 = vpop.f32.mrf.mxu0
      %v1158 = vpop.f32.mrf.mxu0
      %v1159 = vpop.f32.mrf.mxu0
      %1160 = vdwg.mxu0
      %s1161 = scalar_lea.vmem %s165, 40
      %v1162 = vld [vmem:[%s1161] sm:$0xf]
      %v1164 = vsel %vm205, %v1162, 0
      %1166 = vmatprep.subr.bf16.mxu0 0
      %1167 = vmatpush1.bf16.msra.mxu0 0
      %1168 = vmatprep.subr.bf16.mxu0 0
      %1169 = vmatpush1.bf16.msra.mxu0 0
      %1170 = vmatprep.subr.bf16.mxu0 0
      %1171 = vmatpush1.bf16.msra.mxu0 0
      %1172 = vmatprep.subr.bf16.mxu0 0
      %1173 = vmatpush1.bf16.msra.mxu0 0
      %1174 = vmatprep.subr.bf16.mxu0 0
      %1175 = vmatpush1.bf16.msra.mxu0 0
      %1176 = vmatprep.subr.bf16.mxu0 0
      %1177 = vmatpush1.bf16.msra.mxu0 0
      %1178 = vmatprep.subr.bf16.mxu0 0
      %1179 = vmatpush1.bf16.msra.mxu0 0
      %1180 = vmatprep.subr.bf16.mxu0 0
      %1181 = vmatpush1.bf16.msra.mxu0 %v304
      %1182 = vmatprep.subr.bf16.mxu0 0
      %1183 = vmatpush2.bf16.msra.mxu0 0
      %1184 = vmatprep.subr.bf16.mxu0 0
      %1185 = vmatpush2.bf16.msra.mxu0 0
      %1186 = vmatprep.subr.bf16.mxu0 0
      %1187 = vmatpush2.bf16.msra.mxu0 0
      %1188 = vmatprep.subr.bf16.mxu0 0
      %1189 = vmatpush2.bf16.msra.mxu0 0
      %1190 = vmatprep.subr.bf16.mxu0 0
      %1191 = vmatpush2.bf16.msra.mxu0 0
      %1192 = vmatprep.subr.bf16.mxu0 0
      %1193 = vmatpush2.bf16.msra.mxu0 0
      %1194 = vmatprep.subr.bf16.mxu0 0
      %1195 = vmatpush2.bf16.msra.mxu0 0
      %1196 = vmatprep.subr.bf16.mxu0 0
      %1197 = vmatpush2.bf16.msra.mxu0 0
      %1198 = vmatprep.mubr.bf16.mxu0 0
      %1199 = vmatmul.mubr.bf16.gmra.mxu0 %v1164
      %v1200 = vpop.f32.mrf.mxu0
      %v1201 = vadd.f32 0.0, %v1200
      %v1202 = vpop.f32.mrf.mxu0
      %v1203 = vpop.f32.mrf.mxu0
      %v1204 = vpop.f32.mrf.mxu0
      %1205 = vdwg.mxu0
      %v1206 = vadd.f32 %v1156, %v1201
      %v1207 = vld [vmem:[%s1161] sm:$0xf]
      %v1208 = vld [vmem:[%s1161 + $0x4] sm:$0x1]
      %v1211 = vunpack.c.l.b16 %v1207
      %v1212 = vunpack.c.l.b16 %v1208
      %v1213 = vpack.c.b16 %v1212, %v1211
      %v1215 = vshrl.u32 %v1213, 16
      %v1217 = vshll.u32 %v1213, 16
      %v1219 = vrot.slane %v1217, 1
      %v1220 = vor.u32 %v1215, %v1219
      %v1222 = vsel %vm205, %v1220, 0
      %1224 = vmatprep.subr.bf16.mxu0 0
      %1225 = vmatpush1.bf16.msra.mxu0 0
      %1226 = vmatprep.subr.bf16.mxu0 0
      %1227 = vmatpush1.bf16.msra.mxu0 0
      %1228 = vmatprep.subr.bf16.mxu0 0
      %1229 = vmatpush1.bf16.msra.mxu0 0
      %1230 = vmatprep.subr.bf16.mxu0 0
      %1231 = vmatpush1.bf16.msra.mxu0 0
      %1232 = vmatprep.subr.bf16.mxu0 0
      %1233 = vmatpush1.bf16.msra.mxu0 0
      %1234 = vmatprep.subr.bf16.mxu0 0
      %1235 = vmatpush1.bf16.msra.mxu0 0
      %1236 = vmatprep.subr.bf16.mxu0 0
      %1237 = vmatpush1.bf16.msra.mxu0 0
      %1238 = vmatprep.subr.bf16.mxu0 0
      %1239 = vmatpush1.bf16.msra.mxu0 %v368
      %1240 = vmatprep.subr.bf16.mxu0 0
      %1241 = vmatpush2.bf16.msra.mxu0 0
      %1242 = vmatprep.subr.bf16.mxu0 0
      %1243 = vmatpush2.bf16.msra.mxu0 0
      %1244 = vmatprep.subr.bf16.mxu0 0
      %1245 = vmatpush2.bf16.msra.mxu0 0
      %1246 = vmatprep.subr.bf16.mxu0 0
      %1247 = vmatpush2.bf16.msra.mxu0 0
      %1248 = vmatprep.subr.bf16.mxu0 0
      %1249 = vmatpush2.bf16.msra.mxu0 0
      %1250 = vmatprep.subr.bf16.mxu0 0
      %1251 = vmatpush2.bf16.msra.mxu0 0
      %1252 = vmatprep.subr.bf16.mxu0 0
      %1253 = vmatpush2.bf16.msra.mxu0 0
      %1254 = vmatprep.subr.bf16.mxu0 0
      %1255 = vmatpush2.bf16.msra.mxu0 0
      %1256 = vmatprep.mubr.bf16.mxu0 0
      %1257 = vmatmul.mubr.bf16.gmra.mxu0 %v1222
      %v1258 = vpop.f32.mrf.mxu0
      %v1259 = vadd.f32 0.0, %v1258
      %v1260 = vpop.f32.mrf.mxu0
      %v1261 = vpop.f32.mrf.mxu0
      %v1262 = vpop.f32.mrf.mxu0
      %1263 = vdwg.mxu0
      %v1264 = vadd.f32 %v1206, %v1259
      %v1265 = vmul.f32 %v1264, %v417
      %v1266 = vadd.f32 %v1265, %v422
      %vm1267 = vcmp.ge.f32.partialorder %v1266, 0.0
      %v1268 = vmul.f32 %v1266, 0.2
      %v1269 = vsel %vm1267, %v1266, %v1268
      %s1270 = scalar_lea.vmem %s170, 32
      %1271 = vst [vmem:[%s1270] sm:$0xff] %v1269
      %v1272 = vld [vmem:[%s1161] sm:$0xf]
      %v1273 = vld [vmem:[%s1161 + $0x4] sm:$0x1]
      %v1276 = vunpack.c.l.b16 %v1272
      %v1277 = vunpack.c.l.b16 %v1273
      %v1278 = vpack.c.b16 %v1277, %v1276
      %v1280 = vshrl.u32 %v1278, 16
      %v1282 = vshll.u32 %v1278, 16
      %v1284 = vrot.slane %v1282, 1
      %v1285 = vor.u32 %v1280, %v1284
      %v1287 = vsel %vm205, %v1285, 0
      %1289 = vmatprep.subr.bf16.mxu0 0
      %1290 = vmatpush1.bf16.msra.mxu0 0
      %1291 = vmatprep.subr.bf16.mxu0 0
      %1292 = vmatpush1.bf16.msra.mxu0 0
      %1293 = vmatprep.subr.bf16.mxu0 0
      %1294 = vmatpush1.bf16.msra.mxu0 0
      %1295 = vmatprep.subr.bf16.mxu0 0
      %1296 = vmatpush1.bf16.msra.mxu0 0
      %1297 = vmatprep.subr.bf16.mxu0 0
      %1298 = vmatpush1.bf16.msra.mxu0 0
      %1299 = vmatprep.subr.bf16.mxu0 0
      %1300 = vmatpush1.bf16.msra.mxu0 0
      %1301 = vmatprep.subr.bf16.mxu0 0
      %1302 = vmatpush1.bf16.msra.mxu0 0
      %1303 = vmatprep.subr.bf16.mxu0 0
      %1304 = vmatpush1.bf16.msra.mxu0 %v203
      %1305 = vmatprep.subr.bf16.mxu0 0
      %1306 = vmatpush2.bf16.msra.mxu0 0
      %1307 = vmatprep.subr.bf16.mxu0 0
      %1308 = vmatpush2.bf16.msra.mxu0 0
      %1309 = vmatprep.subr.bf16.mxu0 0
      %1310 = vmatpush2.bf16.msra.mxu0 0
      %1311 = vmatprep.subr.bf16.mxu0 0
      %1312 = vmatpush2.bf16.msra.mxu0 0
      %1313 = vmatprep.subr.bf16.mxu0 0
      %1314 = vmatpush2.bf16.msra.mxu0 0
      %1315 = vmatprep.subr.bf16.mxu0 0
      %1316 = vmatpush2.bf16.msra.mxu0 0
      %1317 = vmatprep.subr.bf16.mxu0 0
      %1318 = vmatpush2.bf16.msra.mxu0 0
      %1319 = vmatprep.subr.bf16.mxu0 0
      %1320 = vmatpush2.bf16.msra.mxu0 0
      %1321 = vmatprep.mubr.bf16.mxu0 0
      %1322 = vmatmul.mubr.bf16.gmra.mxu0 %v1287
      %v1323 = vpop.f32.mrf.mxu0
      %v1324 = vadd.f32 0.0, %v1323
      %v1325 = vpop.f32.mrf.mxu0
      %v1326 = vpop.f32.mrf.mxu0
      %v1327 = vpop.f32.mrf.mxu0
      %1328 = vdwg.mxu0
      %v1330 = vsel %vm205, %v1272, 0
      %1332 = vmatprep.subr.bf16.mxu0 0
      %1333 = vmatpush1.bf16.msra.mxu0 0
      %1334 = vmatprep.subr.bf16.mxu0 0
      %1335 = vmatpush1.bf16.msra.mxu0 0
      %1336 = vmatprep.subr.bf16.mxu0 0
      %1337 = vmatpush1.bf16.msra.mxu0 0
      %1338 = vmatprep.subr.bf16.mxu0 0
      %1339 = vmatpush1.bf16.msra.mxu0 0
      %1340 = vmatprep.subr.bf16.mxu0 0
      %1341 = vmatpush1.bf16.msra.mxu0 0
      %1342 = vmatprep.subr.bf16.mxu0 0
      %1343 = vmatpush1.bf16.msra.mxu0 0
      %1344 = vmatprep.subr.bf16.mxu0 0
      %1345 = vmatpush1.bf16.msra.mxu0 0
      %1346 = vmatprep.subr.bf16.mxu0 0
      %1347 = vmatpush1.bf16.msra.mxu0 %v253
      %1348 = vmatprep.subr.bf16.mxu0 0
      %1349 = vmatpush2.bf16.msra.mxu0 0
      %1350 = vmatprep.subr.bf16.mxu0 0
      %1351 = vmatpush2.bf16.msra.mxu0 0
      %1352 = vmatprep.subr.bf16.mxu0 0
      %1353 = vmatpush2.bf16.msra.mxu0 0
      %1354 = vmatprep.subr.bf16.mxu0 0
      %1355 = vmatpush2.bf16.msra.mxu0 0
      %1356 = vmatprep.subr.bf16.mxu0 0
      %1357 = vmatpush2.bf16.msra.mxu0 0
      %1358 = vmatprep.subr.bf16.mxu0 0
      %1359 = vmatpush2.bf16.msra.mxu0 0
      %1360 = vmatprep.subr.bf16.mxu0 0
      %1361 = vmatpush2.bf16.msra.mxu0 0
      %1362 = vmatprep.subr.bf16.mxu0 0
      %1363 = vmatpush2.bf16.msra.mxu0 0
      %1364 = vmatprep.mubr.bf16.mxu0 0
      %1365 = vmatmul.mubr.bf16.gmra.mxu0 %v1330
      %v1366 = vpop.f32.mrf.mxu0
      %v1367 = vadd.f32 %v1324, %v1366
      %v1368 = vpop.f32.mrf.mxu0
      %v1369 = vpop.f32.mrf.mxu0
      %v1370 = vpop.f32.mrf.mxu0
      %1371 = vdwg.mxu0
      %s1372 = scalar_lea.vmem %s165, 48
      %v1373 = vld [vmem:[%s1372] sm:$0xf]
      %v1375 = vsel %vm205, %v1373, 0
      %1377 = vmatprep.subr.bf16.mxu0 0
      %1378 = vmatpush1.bf16.msra.mxu0 0
      %1379 = vmatprep.subr.bf16.mxu0 0
      %1380 = vmatpush1.bf16.msra.mxu0 0
      %1381 = vmatprep.subr.bf16.mxu0 0
      %1382 = vmatpush1.bf16.msra.mxu0 0
      %1383 = vmatprep.subr.bf16.mxu0 0
      %1384 = vmatpush1.bf16.msra.mxu0 0
      %1385 = vmatprep.subr.bf16.mxu0 0
      %1386 = vmatpush1.bf16.msra.mxu0 0
      %1387 = vmatprep.subr.bf16.mxu0 0
      %1388 = vmatpush1.bf16.msra.mxu0 0
      %1389 = vmatprep.subr.bf16.mxu0 0
      %1390 = vmatpush1.bf16.msra.mxu0 0
      %1391 = vmatprep.subr.bf16.mxu0 0
      %1392 = vmatpush1.bf16.msra.mxu0 %v304
      %1393 = vmatprep.subr.bf16.mxu0 0
      %1394 = vmatpush2.bf16.msra.mxu0 0
      %1395 = vmatprep.subr.bf16.mxu0 0
      %1396 = vmatpush2.bf16.msra.mxu0 0
      %1397 = vmatprep.subr.bf16.mxu0 0
      %1398 = vmatpush2.bf16.msra.mxu0 0
      %1399 = vmatprep.subr.bf16.mxu0 0
      %1400 = vmatpush2.bf16.msra.mxu0 0
      %1401 = vmatprep.subr.bf16.mxu0 0
      %1402 = vmatpush2.bf16.msra.mxu0 0
      %1403 = vmatprep.subr.bf16.mxu0 0
      %1404 = vmatpush2.bf16.msra.mxu0 0
      %1405 = vmatprep.subr.bf16.mxu0 0
      %1406 = vmatpush2.bf16.msra.mxu0 0
      %1407 = vmatprep.subr.bf16.mxu0 0
      %1408 = vmatpush2.bf16.msra.mxu0 0
      %1409 = vmatprep.mubr.bf16.mxu0 0
      %1410 = vmatmul.mubr.bf16.gmra.mxu0 %v1375
      %v1411 = vpop.f32.mrf.mxu0
      %v1412 = vadd.f32 0.0, %v1411
      %v1413 = vpop.f32.mrf.mxu0
      %v1414 = vpop.f32.mrf.mxu0
      %v1415 = vpop.f32.mrf.mxu0
      %1416 = vdwg.mxu0
      %v1417 = vadd.f32 %v1367, %v1412
      %v1418 = vld [vmem:[%s1372] sm:$0xf]
      %v1419 = vld [vmem:[%s1372 + $0x4] sm:$0x1]
      %v1422 = vunpack.c.l.b16 %v1418
      %v1423 = vunpack.c.l.b16 %v1419
      %v1424 = vpack.c.b16 %v1423, %v1422
      %v1426 = vshrl.u32 %v1424, 16
      %v1428 = vshll.u32 %v1424, 16
      %v1430 = vrot.slane %v1428, 1
      %v1431 = vor.u32 %v1426, %v1430
      %v1433 = vsel %vm205, %v1431, 0
      %1435 = vmatprep.subr.bf16.mxu0 0
      %1436 = vmatpush1.bf16.msra.mxu0 0
      %1437 = vmatprep.subr.bf16.mxu0 0
      %1438 = vmatpush1.bf16.msra.mxu0 0
      %1439 = vmatprep.subr.bf16.mxu0 0
      %1440 = vmatpush1.bf16.msra.mxu0 0
      %1441 = vmatprep.subr.bf16.mxu0 0
      %1442 = vmatpush1.bf16.msra.mxu0 0
      %1443 = vmatprep.subr.bf16.mxu0 0
      %1444 = vmatpush1.bf16.msra.mxu0 0
      %1445 = vmatprep.subr.bf16.mxu0 0
      %1446 = vmatpush1.bf16.msra.mxu0 0
      %1447 = vmatprep.subr.bf16.mxu0 0
      %1448 = vmatpush1.bf16.msra.mxu0 0
      %1449 = vmatprep.subr.bf16.mxu0 0
      %1450 = vmatpush1.bf16.msra.mxu0 %v368
      %1451 = vmatprep.subr.bf16.mxu0 0
      %1452 = vmatpush2.bf16.msra.mxu0 0
      %1453 = vmatprep.subr.bf16.mxu0 0
      %1454 = vmatpush2.bf16.msra.mxu0 0
      %1455 = vmatprep.subr.bf16.mxu0 0
      %1456 = vmatpush2.bf16.msra.mxu0 0
      %1457 = vmatprep.subr.bf16.mxu0 0
      %1458 = vmatpush2.bf16.msra.mxu0 0
      %1459 = vmatprep.subr.bf16.mxu0 0
      %1460 = vmatpush2.bf16.msra.mxu0 0
      %1461 = vmatprep.subr.bf16.mxu0 0
      %1462 = vmatpush2.bf16.msra.mxu0 0
      %1463 = vmatprep.subr.bf16.mxu0 0
      %1464 = vmatpush2.bf16.msra.mxu0 0
      %1465 = vmatprep.subr.bf16.mxu0 0
      %1466 = vmatpush2.bf16.msra.mxu0 0
      %1467 = vmatprep.mubr.bf16.mxu0 0
      %1468 = vmatmul.mubr.bf16.gmra.mxu0 %v1433
      %v1469 = vpop.f32.mrf.mxu0
      %v1470 = vadd.f32 0.0, %v1469
      %v1471 = vpop.f32.mrf.mxu0
      %v1472 = vpop.f32.mrf.mxu0
      %v1473 = vpop.f32.mrf.mxu0
      %1474 = vdwg.mxu0
      %v1475 = vadd.f32 %v1417, %v1470
      %v1476 = vmul.f32 %v1475, %v417
      %v1477 = vadd.f32 %v1476, %v422
      %vm1478 = vcmp.ge.f32.partialorder %v1477, 0.0
      %v1479 = vmul.f32 %v1477, 0.2
      %v1480 = vsel %vm1478, %v1477, %v1479
      %s1481 = scalar_lea.vmem %s170, 40
      %1482 = vst [vmem:[%s1481] sm:$0xff] %v1480
      %v1483 = vld [vmem:[%s1372] sm:$0xf]
      %v1484 = vld [vmem:[%s1372 + $0x4] sm:$0x1]
      %v1487 = vunpack.c.l.b16 %v1483
      %v1488 = vunpack.c.l.b16 %v1484
      %v1489 = vpack.c.b16 %v1488, %v1487
      %v1491 = vshrl.u32 %v1489, 16
      %v1493 = vshll.u32 %v1489, 16
      %v1495 = vrot.slane %v1493, 1
      %v1496 = vor.u32 %v1491, %v1495
      %v1498 = vsel %vm205, %v1496, 0
      %1500 = vmatprep.subr.bf16.mxu0 0
      %1501 = vmatpush1.bf16.msra.mxu0 0
      %1502 = vmatprep.subr.bf16.mxu0 0
      %1503 = vmatpush1.bf16.msra.mxu0 0
      %1504 = vmatprep.subr.bf16.mxu0 0
      %1505 = vmatpush1.bf16.msra.mxu0 0
      %1506 = vmatprep.subr.bf16.mxu0 0
      %1507 = vmatpush1.bf16.msra.mxu0 0
      %1508 = vmatprep.subr.bf16.mxu0 0
      %1509 = vmatpush1.bf16.msra.mxu0 0
      %1510 = vmatprep.subr.bf16.mxu0 0
      %1511 = vmatpush1.bf16.msra.mxu0 0
      %1512 = vmatprep.subr.bf16.mxu0 0
      %1513 = vmatpush1.bf16.msra.mxu0 0
      %1514 = vmatprep.subr.bf16.mxu0 0
      %1515 = vmatpush1.bf16.msra.mxu0 %v203
      %1516 = vmatprep.subr.bf16.mxu0 0
      %1517 = vmatpush2.bf16.msra.mxu0 0
      %1518 = vmatprep.subr.bf16.mxu0 0
      %1519 = vmatpush2.bf16.msra.mxu0 0
      %1520 = vmatprep.subr.bf16.mxu0 0
      %1521 = vmatpush2.bf16.msra.mxu0 0
      %1522 = vmatprep.subr.bf16.mxu0 0
      %1523 = vmatpush2.bf16.msra.mxu0 0
      %1524 = vmatprep.subr.bf16.mxu0 0
      %1525 = vmatpush2.bf16.msra.mxu0 0
      %1526 = vmatprep.subr.bf16.mxu0 0
      %1527 = vmatpush2.bf16.msra.mxu0 0
      %1528 = vmatprep.subr.bf16.mxu0 0
      %1529 = vmatpush2.bf16.msra.mxu0 0
      %1530 = vmatprep.subr.bf16.mxu0 0
      %1531 = vmatpush2.bf16.msra.mxu0 0
      %1532 = vmatprep.mubr.bf16.mxu0 0
      %1533 = vmatmul.mubr.bf16.gmra.mxu0 %v1498
      %v1534 = vpop.f32.mrf.mxu0
      %v1535 = vadd.f32 0.0, %v1534
      %v1536 = vpop.f32.mrf.mxu0
      %v1537 = vpop.f32.mrf.mxu0
      %v1538 = vpop.f32.mrf.mxu0
      %1539 = vdwg.mxu0
      %v1541 = vsel %vm205, %v1483, 0
      %1543 = vmatprep.subr.bf16.mxu0 0
      %1544 = vmatpush1.bf16.msra.mxu0 0
      %1545 = vmatprep.subr.bf16.mxu0 0
      %1546 = vmatpush1.bf16.msra.mxu0 0
      %1547 = vmatprep.subr.bf16.mxu0 0
      %1548 = vmatpush1.bf16.msra.mxu0 0
      %1549 = vmatprep.subr.bf16.mxu0 0
      %1550 = vmatpush1.bf16.msra.mxu0 0
      %1551 = vmatprep.subr.bf16.mxu0 0
      %1552 = vmatpush1.bf16.msra.mxu0 0
      %1553 = vmatprep.subr.bf16.mxu0 0
      %1554 = vmatpush1.bf16.msra.mxu0 0
      %1555 = vmatprep.subr.bf16.mxu0 0
      %1556 = vmatpush1.bf16.msra.mxu0 0
      %1557 = vmatprep.subr.bf16.mxu0 0
      %1558 = vmatpush1.bf16.msra.mxu0 %v253
      %1559 = vmatprep.subr.bf16.mxu0 0
      %1560 = vmatpush2.bf16.msra.mxu0 0
      %1561 = vmatprep.subr.bf16.mxu0 0
      %1562 = vmatpush2.bf16.msra.mxu0 0
      %1563 = vmatprep.subr.bf16.mxu0 0
      %1564 = vmatpush2.bf16.msra.mxu0 0
      %1565 = vmatprep.subr.bf16.mxu0 0
      %1566 = vmatpush2.bf16.msra.mxu0 0
      %1567 = vmatprep.subr.bf16.mxu0 0
      %1568 = vmatpush2.bf16.msra.mxu0 0
      %1569 = vmatprep.subr.bf16.mxu0 0
      %1570 = vmatpush2.bf16.msra.mxu0 0
      %1571 = vmatprep.subr.bf16.mxu0 0
      %1572 = vmatpush2.bf16.msra.mxu0 0
      %1573 = vmatprep.subr.bf16.mxu0 0
      %1574 = vmatpush2.bf16.msra.mxu0 0
      %1575 = vmatprep.mubr.bf16.mxu0 0
      %1576 = vmatmul.mubr.bf16.gmra.mxu0 %v1541
      %v1577 = vpop.f32.mrf.mxu0
      %v1578 = vadd.f32 %v1535, %v1577
      %v1579 = vpop.f32.mrf.mxu0
      %v1580 = vpop.f32.mrf.mxu0
      %v1581 = vpop.f32.mrf.mxu0
      %1582 = vdwg.mxu0
      %s1583 = scalar_lea.vmem %s165, 56
      %v1584 = vld [vmem:[%s1583] sm:$0xf]
      %v1586 = vsel %vm205, %v1584, 0
      %1588 = vmatprep.subr.bf16.mxu0 0
      %1589 = vmatpush1.bf16.msra.mxu0 0
      %1590 = vmatprep.subr.bf16.mxu0 0
      %1591 = vmatpush1.bf16.msra.mxu0 0
      %1592 = vmatprep.subr.bf16.mxu0 0
      %1593 = vmatpush1.bf16.msra.mxu0 0
      %1594 = vmatprep.subr.bf16.mxu0 0
      %1595 = vmatpush1.bf16.msra.mxu0 0
      %1596 = vmatprep.subr.bf16.mxu0 0
      %1597 = vmatpush1.bf16.msra.mxu0 0
      %1598 = vmatprep.subr.bf16.mxu0 0
      %1599 = vmatpush1.bf16.msra.mxu0 0
      %1600 = vmatprep.subr.bf16.mxu0 0
      %1601 = vmatpush1.bf16.msra.mxu0 0
      %1602 = vmatprep.subr.bf16.mxu0 0
      %1603 = vmatpush1.bf16.msra.mxu0 %v304
      %1604 = vmatprep.subr.bf16.mxu0 0
      %1605 = vmatpush2.bf16.msra.mxu0 0
      %1606 = vmatprep.subr.bf16.mxu0 0
      %1607 = vmatpush2.bf16.msra.mxu0 0
      %1608 = vmatprep.subr.bf16.mxu0 0
      %1609 = vmatpush2.bf16.msra.mxu0 0
      %1610 = vmatprep.subr.bf16.mxu0 0
      %1611 = vmatpush2.bf16.msra.mxu0 0
      %1612 = vmatprep.subr.bf16.mxu0 0
      %1613 = vmatpush2.bf16.msra.mxu0 0
      %1614 = vmatprep.subr.bf16.mxu0 0
      %1615 = vmatpush2.bf16.msra.mxu0 0
      %1616 = vmatprep.subr.bf16.mxu0 0
      %1617 = vmatpush2.bf16.msra.mxu0 0
      %1618 = vmatprep.subr.bf16.mxu0 0
      %1619 = vmatpush2.bf16.msra.mxu0 0
      %1620 = vmatprep.mubr.bf16.mxu0 0
      %1621 = vmatmul.mubr.bf16.gmra.mxu0 %v1586
      %v1622 = vpop.f32.mrf.mxu0
      %v1623 = vadd.f32 0.0, %v1622
      %v1624 = vpop.f32.mrf.mxu0
      %v1625 = vpop.f32.mrf.mxu0
      %v1626 = vpop.f32.mrf.mxu0
      %1627 = vdwg.mxu0
      %v1628 = vadd.f32 %v1578, %v1623
      %v1629 = vld [vmem:[%s1583] sm:$0xf]
      %v1630 = vld [vmem:[%s1583 + $0x4] sm:$0x1]
      %v1633 = vunpack.c.l.b16 %v1629
      %v1634 = vunpack.c.l.b16 %v1630
      %v1635 = vpack.c.b16 %v1634, %v1633
      %v1637 = vshrl.u32 %v1635, 16
      %v1639 = vshll.u32 %v1635, 16
      %v1641 = vrot.slane %v1639, 1
      %v1642 = vor.u32 %v1637, %v1641
      %v1644 = vsel %vm205, %v1642, 0
      %1646 = vmatprep.subr.bf16.mxu0 0
      %1647 = vmatpush1.bf16.msra.mxu0 0
      %1648 = vmatprep.subr.bf16.mxu0 0
      %1649 = vmatpush1.bf16.msra.mxu0 0
      %1650 = vmatprep.subr.bf16.mxu0 0
      %1651 = vmatpush1.bf16.msra.mxu0 0
      %1652 = vmatprep.subr.bf16.mxu0 0
      %1653 = vmatpush1.bf16.msra.mxu0 0
      %1654 = vmatprep.subr.bf16.mxu0 0
      %1655 = vmatpush1.bf16.msra.mxu0 0
      %1656 = vmatprep.subr.bf16.mxu0 0
      %1657 = vmatpush1.bf16.msra.mxu0 0
      %1658 = vmatprep.subr.bf16.mxu0 0
      %1659 = vmatpush1.bf16.msra.mxu0 0
      %1660 = vmatprep.subr.bf16.mxu0 0
      %1661 = vmatpush1.bf16.msra.mxu0 %v368
      %1662 = vmatprep.subr.bf16.mxu0 0
      %1663 = vmatpush2.bf16.msra.mxu0 0
      %1664 = vmatprep.subr.bf16.mxu0 0
      %1665 = vmatpush2.bf16.msra.mxu0 0
      %1666 = vmatprep.subr.bf16.mxu0 0
      %1667 = vmatpush2.bf16.msra.mxu0 0
      %1668 = vmatprep.subr.bf16.mxu0 0
      %1669 = vmatpush2.bf16.msra.mxu0 0
      %1670 = vmatprep.subr.bf16.mxu0 0
      %1671 = vmatpush2.bf16.msra.mxu0 0
      %1672 = vmatprep.subr.bf16.mxu0 0
      %1673 = vmatpush2.bf16.msra.mxu0 0
      %1674 = vmatprep.subr.bf16.mxu0 0
      %1675 = vmatpush2.bf16.msra.mxu0 0
      %1676 = vmatprep.subr.bf16.mxu0 0
      %1677 = vmatpush2.bf16.msra.mxu0 0
      %1678 = vmatprep.mubr.bf16.mxu0 0
      %1679 = vmatmul.mubr.bf16.gmra.mxu0 %v1644
      %v1680 = vpop.f32.mrf.mxu0
      %v1681 = vadd.f32 0.0, %v1680
      %v1682 = vpop.f32.mrf.mxu0
      %v1683 = vpop.f32.mrf.mxu0
      %v1684 = vpop.f32.mrf.mxu0
      %1685 = vdwg.mxu0
      %v1686 = vadd.f32 %v1628, %v1681
      %v1687 = vmul.f32 %v1686, %v417
      %v1688 = vadd.f32 %v1687, %v422
      %vm1689 = vcmp.ge.f32.partialorder %v1688, 0.0
      %v1690 = vmul.f32 %v1688, 0.2
      %v1691 = vsel %vm1689, %v1688, %v1690
      %s1692 = scalar_lea.vmem %s170, 48
      %1693 = vst [vmem:[%s1692] sm:$0xff] %v1691
      %v1694 = vld [vmem:[%s1583] sm:$0xf]
      %v1695 = vld [vmem:[%s1583 + $0x4] sm:$0x1]
      %v1698 = vunpack.c.l.b16 %v1694
      %v1699 = vunpack.c.l.b16 %v1695
      %v1700 = vpack.c.b16 %v1699, %v1698
      %v1702 = vshrl.u32 %v1700, 16
      %v1704 = vshll.u32 %v1700, 16
      %v1706 = vrot.slane %v1704, 1
      %v1707 = vor.u32 %v1702, %v1706
      %v1709 = vsel %vm205, %v1707, 0
      %1711 = vmatprep.subr.bf16.mxu0 0
      %1712 = vmatpush1.bf16.msra.mxu0 0
      %1713 = vmatprep.subr.bf16.mxu0 0
      %1714 = vmatpush1.bf16.msra.mxu0 0
      %1715 = vmatprep.subr.bf16.mxu0 0
      %1716 = vmatpush1.bf16.msra.mxu0 0
      %1717 = vmatprep.subr.bf16.mxu0 0
      %1718 = vmatpush1.bf16.msra.mxu0 0
      %1719 = vmatprep.subr.bf16.mxu0 0
      %1720 = vmatpush1.bf16.msra.mxu0 0
      %1721 = vmatprep.subr.bf16.mxu0 0
      %1722 = vmatpush1.bf16.msra.mxu0 0
      %1723 = vmatprep.subr.bf16.mxu0 0
      %1724 = vmatpush1.bf16.msra.mxu0 0
      %1725 = vmatprep.subr.bf16.mxu0 0
      %1726 = vmatpush1.bf16.msra.mxu0 %v203
      %1727 = vmatprep.subr.bf16.mxu0 0
      %1728 = vmatpush2.bf16.msra.mxu0 0
      %1729 = vmatprep.subr.bf16.mxu0 0
      %1730 = vmatpush2.bf16.msra.mxu0 0
      %1731 = vmatprep.subr.bf16.mxu0 0
      %1732 = vmatpush2.bf16.msra.mxu0 0
      %1733 = vmatprep.subr.bf16.mxu0 0
      %1734 = vmatpush2.bf16.msra.mxu0 0
      %1735 = vmatprep.subr.bf16.mxu0 0
      %1736 = vmatpush2.bf16.msra.mxu0 0
      %1737 = vmatprep.subr.bf16.mxu0 0
      %1738 = vmatpush2.bf16.msra.mxu0 0
      %1739 = vmatprep.subr.bf16.mxu0 0
      %1740 = vmatpush2.bf16.msra.mxu0 0
      %1741 = vmatprep.subr.bf16.mxu0 0
      %1742 = vmatpush2.bf16.msra.mxu0 0
      %1743 = vmatprep.mubr.bf16.mxu0 0
      %1744 = vmatmul.mubr.bf16.gmra.mxu0 %v1709
      %v1745 = vpop.f32.mrf.mxu0
      %v1746 = vadd.f32 0.0, %v1745
      %v1747 = vpop.f32.mrf.mxu0
      %v1748 = vpop.f32.mrf.mxu0
      %v1749 = vpop.f32.mrf.mxu0
      %1750 = vdwg.mxu0
      %v1752 = vsel %vm205, %v1694, 0
      %1754 = vmatprep.subr.bf16.mxu0 0
      %1755 = vmatpush1.bf16.msra.mxu0 0
      %1756 = vmatprep.subr.bf16.mxu0 0
      %1757 = vmatpush1.bf16.msra.mxu0 0
      %1758 = vmatprep.subr.bf16.mxu0 0
      %1759 = vmatpush1.bf16.msra.mxu0 0
      %1760 = vmatprep.subr.bf16.mxu0 0
      %1761 = vmatpush1.bf16.msra.mxu0 0
      %1762 = vmatprep.subr.bf16.mxu0 0
      %1763 = vmatpush1.bf16.msra.mxu0 0
      %1764 = vmatprep.subr.bf16.mxu0 0
      %1765 = vmatpush1.bf16.msra.mxu0 0
      %1766 = vmatprep.subr.bf16.mxu0 0
      %1767 = vmatpush1.bf16.msra.mxu0 0
      %1768 = vmatprep.subr.bf16.mxu0 0
      %1769 = vmatpush1.bf16.msra.mxu0 %v253
      %1770 = vmatprep.subr.bf16.mxu0 0
      %1771 = vmatpush2.bf16.msra.mxu0 0
      %1772 = vmatprep.subr.bf16.mxu0 0
      %1773 = vmatpush2.bf16.msra.mxu0 0
      %1774 = vmatprep.subr.bf16.mxu0 0
      %1775 = vmatpush2.bf16.msra.mxu0 0
      %1776 = vmatprep.subr.bf16.mxu0 0
      %1777 = vmatpush2.bf16.msra.mxu0 0
      %1778 = vmatprep.subr.bf16.mxu0 0
      %1779 = vmatpush2.bf16.msra.mxu0 0
      %1780 = vmatprep.subr.bf16.mxu0 0
      %1781 = vmatpush2.bf16.msra.mxu0 0
      %1782 = vmatprep.subr.bf16.mxu0 0
      %1783 = vmatpush2.bf16.msra.mxu0 0
      %1784 = vmatprep.subr.bf16.mxu0 0
      %1785 = vmatpush2.bf16.msra.mxu0 0
      %1786 = vmatprep.mubr.bf16.mxu0 0
      %1787 = vmatmul.mubr.bf16.gmra.mxu0 %v1752
      %v1788 = vpop.f32.mrf.mxu0
      %v1789 = vadd.f32 %v1746, %v1788
      %v1790 = vpop.f32.mrf.mxu0
      %v1791 = vpop.f32.mrf.mxu0
      %v1792 = vpop.f32.mrf.mxu0
      %1793 = vdwg.mxu0
      %s1794 = scalar_lea.vmem %s165, 64
      %v1795 = vld [vmem:[%s1794] sm:$0xf]
      %v1797 = vsel %vm205, %v1795, 0
      %1799 = vmatprep.subr.bf16.mxu0 0
      %1800 = vmatpush1.bf16.msra.mxu0 0
      %1801 = vmatprep.subr.bf16.mxu0 0
      %1802 = vmatpush1.bf16.msra.mxu0 0
      %1803 = vmatprep.subr.bf16.mxu0 0
      %1804 = vmatpush1.bf16.msra.mxu0 0
      %1805 = vmatprep.subr.bf16.mxu0 0
      %1806 = vmatpush1.bf16.msra.mxu0 0
      %1807 = vmatprep.subr.bf16.mxu0 0
      %1808 = vmatpush1.bf16.msra.mxu0 0
      %1809 = vmatprep.subr.bf16.mxu0 0
      %1810 = vmatpush1.bf16.msra.mxu0 0
      %1811 = vmatprep.subr.bf16.mxu0 0
      %1812 = vmatpush1.bf16.msra.mxu0 0
      %1813 = vmatprep.subr.bf16.mxu0 0
      %1814 = vmatpush1.bf16.msra.mxu0 %v304
      %1815 = vmatprep.subr.bf16.mxu0 0
      %1816 = vmatpush2.bf16.msra.mxu0 0
      %1817 = vmatprep.subr.bf16.mxu0 0
      %1818 = vmatpush2.bf16.msra.mxu0 0
      %1819 = vmatprep.subr.bf16.mxu0 0
      %1820 = vmatpush2.bf16.msra.mxu0 0
      %1821 = vmatprep.subr.bf16.mxu0 0
      %1822 = vmatpush2.bf16.msra.mxu0 0
      %1823 = vmatprep.subr.bf16.mxu0 0
      %1824 = vmatpush2.bf16.msra.mxu0 0
      %1825 = vmatprep.subr.bf16.mxu0 0
      %1826 = vmatpush2.bf16.msra.mxu0 0
      %1827 = vmatprep.subr.bf16.mxu0 0
      %1828 = vmatpush2.bf16.msra.mxu0 0
      %1829 = vmatprep.subr.bf16.mxu0 0
      %1830 = vmatpush2.bf16.msra.mxu0 0
      %1831 = vmatprep.mubr.bf16.mxu0 0
      %1832 = vmatmul.mubr.bf16.gmra.mxu0 %v1797
      %v1833 = vpop.f32.mrf.mxu0
      %v1834 = vadd.f32 0.0, %v1833
      %v1835 = vpop.f32.mrf.mxu0
      %v1836 = vpop.f32.mrf.mxu0
      %v1837 = vpop.f32.mrf.mxu0
      %1838 = vdwg.mxu0
      %v1839 = vadd.f32 %v1789, %v1834
      %v1840 = vld [vmem:[%s1794] sm:$0xf]
      %v1841 = vld [vmem:[%s1794 + $0x4] sm:$0x1]
      %v1844 = vunpack.c.l.b16 %v1840
      %v1845 = vunpack.c.l.b16 %v1841
      %v1846 = vpack.c.b16 %v1845, %v1844
      %v1848 = vshrl.u32 %v1846, 16
      %v1850 = vshll.u32 %v1846, 16
      %v1852 = vrot.slane %v1850, 1
      %v1853 = vor.u32 %v1848, %v1852
      %v1855 = vsel %vm205, %v1853, 0
      %1857 = vmatprep.subr.bf16.mxu0 0
      %1858 = vmatpush1.bf16.msra.mxu0 0
      %1859 = vmatprep.subr.bf16.mxu0 0
      %1860 = vmatpush1.bf16.msra.mxu0 0
      %1861 = vmatprep.subr.bf16.mxu0 0
      %1862 = vmatpush1.bf16.msra.mxu0 0
      %1863 = vmatprep.subr.bf16.mxu0 0
      %1864 = vmatpush1.bf16.msra.mxu0 0
      %1865 = vmatprep.subr.bf16.mxu0 0
      %1866 = vmatpush1.bf16.msra.mxu0 0
      %1867 = vmatprep.subr.bf16.mxu0 0
      %1868 = vmatpush1.bf16.msra.mxu0 0
      %1869 = vmatprep.subr.bf16.mxu0 0
      %1870 = vmatpush1.bf16.msra.mxu0 0
      %1871 = vmatprep.subr.bf16.mxu0 0
      %1872 = vmatpush1.bf16.msra.mxu0 %v368
      %1873 = vmatprep.subr.bf16.mxu0 0
      %1874 = vmatpush2.bf16.msra.mxu0 0
      %1875 = vmatprep.subr.bf16.mxu0 0
      %1876 = vmatpush2.bf16.msra.mxu0 0
      %1877 = vmatprep.subr.bf16.mxu0 0
      %1878 = vmatpush2.bf16.msra.mxu0 0
      %1879 = vmatprep.subr.bf16.mxu0 0
      %1880 = vmatpush2.bf16.msra.mxu0 0
      %1881 = vmatprep.subr.bf16.mxu0 0
      %1882 = vmatpush2.bf16.msra.mxu0 0
      %1883 = vmatprep.subr.bf16.mxu0 0
      %1884 = vmatpush2.bf16.msra.mxu0 0
      %1885 = vmatprep.subr.bf16.mxu0 0
      %1886 = vmatpush2.bf16.msra.mxu0 0
      %1887 = vmatprep.subr.bf16.mxu0 0
      %1888 = vmatpush2.bf16.msra.mxu0 0
      %1889 = vmatprep.mubr.bf16.mxu0 0
      %1890 = vmatmul.mubr.bf16.gmra.mxu0 %v1855
      %v1891 = vpop.f32.mrf.mxu0
      %v1892 = vadd.f32 0.0, %v1891
      %v1893 = vpop.f32.mrf.mxu0
      %v1894 = vpop.f32.mrf.mxu0
      %v1895 = vpop.f32.mrf.mxu0
      %1896 = vdwg.mxu0
      %v1897 = vadd.f32 %v1839, %v1892
      %v1898 = vmul.f32 %v1897, %v417
      %v1899 = vadd.f32 %v1898, %v422
      %vm1900 = vcmp.ge.f32.partialorder %v1899, 0.0
      %v1901 = vmul.f32 %v1899, 0.2
      %v1902 = vsel %vm1900, %v1899, %v1901
      %s1903 = scalar_lea.vmem %s170, 56
      %1904 = vst [vmem:[%s1903] sm:$0xff] %v1902
      %p1905 = scmp.lt.s32.totalorder %s14, 1
      %s1906 = scalar_select %p1905, %s14, 1
      %s1907 = smul.addr %s1906, 8
      %s1908 = smul.addr %s1907, 8
      %s1909 = scalar_lea.vmem %s3, %s1908
      // Predicated region
      $region33: #{down_block.3} parent=31 // pred_check
        %p1910 = pneg %p100
      $region34: #{down_block.3} parent=31 // pred_check_branch
        %1912 = sbr.rel (%p1910) target = $region36
      $region35: #{down_block.3} parent=31 // pred_region
        _
      $region36: #{down_block.3} parent=31 // pred_fallthru
        _
    $region32: #{down_block.3} parent=5 // pred_fallthru
      _
    %p1913 = scmp.le.s32.totalorder 2, %s9
    // Predicated region
    $region37: #{down_block.3} parent=5 // pred_check
      %p1914 = pneg %p1913
    $region38: #{down_block.3} parent=5 // pred_check_branch
      %1916 = sbr.rel (%p1914) target = $region40
    $region39: #{down_block.3} parent=5 // pred_region
      %s1917 = ssub.s32 %s9, 2
      // Predicated region
      $region41: #{down_block.3} parent=39 // pred_check
        %p1918 = pneg %p106
      $region42: #{down_block.3} parent=39 // pred_check_branch
        %1920 = sbr.rel (%p1918) target = $region44
      $region43: #{down_block.3} parent=39 // pred_region
        %p1921 = scmp.lt.s32.totalorder %s15, 1
        %s1922 = scalar_select %p1921, %s15, 1
        %s1923 = smul.addr %s1922, 8
        %s1924 = smul.addr %s1923, 8
        %s1925 = scalar_lea.vmem %s3, %s1924
      $region44: #{down_block.3} parent=39 // pred_fallthru
        _
    $region40: #{down_block.3} parent=5 // pred_fallthru
      _
  $region6: #{down_block.3} parent=0 // loop_footer
    %s13 = sadd.s32 1, %s9
  $region7: #{down_block.3} parent=0 // loop_footer_branch
    %8 = sbr.rel target = $region3
  $region8: #{down_block.3} parent=0 // loop_exit
    _

</llo_original>
